<compile_context>
chip_gen: v7x
topology: tpu7x:2x2x1
jax: 0.10.0
libtpu: 0.0.40
codegen_flags: <defaults>
</compile_context>

<pallas_src>
import jax
import jax.numpy as jnp
from jax import lax
from jax.experimental import pallas as pl
from jax.experimental.pallas import tpu as pltpu

IN_DIM = 1000
HIDDEN_DIM = 10000
OUT_DIM = 5

IN_PAD = 1024            # 1000 -> 1024 (multiple of 128; clean MXU K tiles, lane-dense rows)
HIDDEN_PAD = 10240       # multiple of HIDDEN_TILE and of 128
OUT_PAD = 128            # 5 -> 128 (lane-dense accumulator / unmasked stores)
HIDDEN_TILE = 2560       # 10240 / 2560 = 4 hidden tiles total (~2.6 MB int8 W1 tile each)


def _num_core_splits() -> int:
    """Split the hidden reduction 2-way only on dual-TensorCore chips (v7x)."""
    try:
        kind = jax.devices()[0].device_kind.lower()
    except Exception:
        return 1
    return 2 if ("v7" in kind or "7x" in kind) else 1


NUM_CORE_SPLITS = _num_core_splits()


def _mlp_kernel(x_ref, w1q_ref, s1_ref, b1_ref, w2_ref, b2_ref, o_ref):
    c = pl.program_id(0)   # core-split axis ("parallel")
    k = pl.program_id(1)   # hidden-tile reduction axis ("arbitrary")

    # Init the resident accumulator; fold b2 in on core-split 0 only, so that summing the
    # per-split partials in the wrapper adds it exactly once.
    @pl.when(k == 0)
    def _():
        first = (c == 0).astype(jnp.float32)
        o_ref[...] = jnp.zeros_like(o_ref) + first * b2_ref[...]

    # h = relu((x @ W1_tile) * scale + b1_tile), shape (B, HIDDEN_TILE).
    # W1 tile arrives int8; dequant = cast to bf16 (ints <= 127 are exact in bf16) and apply the
    # per-hidden-channel scale AFTER the matmul ((B, TILE) muls instead of (TILE, IN)).
    xb = x_ref[...].astype(jnp.bfloat16)
    w1b = w1q_ref[...].astype(jnp.bfloat16)
    h = lax.dot_general(
        xb, w1b,                                   # (B, IN) x (TILE, IN), contracting IN
        dimension_numbers=(((1,), (1,)), ((), ())),
        preferred_element_type=jnp.float32,
    )
    h = jnp.maximum(h * s1_ref[...] + b1_ref[...], 0.0)

    # Accumulate this tile's contribution: (B, TILE) @ (TILE, OUT_PAD), f32 accumulation.
    o_ref[...] += jnp.dot(h.astype(jnp.bfloat16), w2_ref[...],
                          preferred_element_type=jnp.float32)


def prepare_params(w1, b1, w2, b2):
    """One-time param prep (outside the per-call path).

    Inputs (math layout): w1 (IN_DIM, HIDDEN_DIM), b1 (HIDDEN_DIM,),
                          w2 (HIDDEN_DIM, OUT_DIM), b2 (OUT_DIM,)
    Returns:
      w1q: (HIDDEN_PAD, IN_PAD)  int8  — transposed, padded, per-row symmetric quantized
      s1 : (1, HIDDEN_PAD)       f32   — per-hidden-channel dequant scales
      b1p: (1, HIDDEN_PAD)       f32
      w2p: (HIDDEN_PAD, OUT_PAD) bf16
      b2p: (1, OUT_PAD)          f32
    """
    hpad = HIDDEN_PAD - HIDDEN_DIM
    ipad = IN_PAD - IN_DIM
    opad = OUT_PAD - OUT_DIM

    w1t = jnp.pad(w1.astype(jnp.float32), ((0, ipad), (0, hpad))).T      # (HIDDEN_PAD, IN_PAD)
    amax = jnp.max(jnp.abs(w1t), axis=1, keepdims=True)                  # (HIDDEN_PAD, 1)
    scale = jnp.where(amax > 0, amax / 127.0, 1.0)                       # avoid /0 on pad rows
    w1q = jnp.clip(jnp.round(w1t / scale), -127.0, 127.0).astype(jnp.int8)
    s1 = scale.reshape(1, HIDDEN_PAD).astype(jnp.float32)

    b1p = jnp.pad(b1, (0, hpad)).reshape(1, HIDDEN_PAD).astype(jnp.float32)
    w2p = jnp.pad(w2, ((0, hpad), (0, opad))).astype(jnp.bfloat16)       # (HIDDEN_PAD, OUT_PAD)
    b2p = jnp.pad(b2, (0, opad)).reshape(1, OUT_PAD).astype(jnp.float32)
    return w1q, s1, b1p, w2p, b2p


@jax.jit
def toy_model_forward(x, w1q, s1, b1p, w2p, b2p):
    """x: (B, 1000) f32. Params as returned by prepare_params. Returns (B, 5) f32."""
    B = x.shape[0]
    x_pad = jnp.pad(x, ((0, 0), (0, IN_PAD - IN_DIM)))

    n_tiles = HIDDEN_PAD // HIDDEN_TILE
    per_core = n_tiles // NUM_CORE_SPLITS

    partials = pl.pallas_call(
        _mlp_kernel,
        out_shape=jax.ShapeDtypeStruct((NUM_CORE_SPLITS, B, OUT_PAD), jnp.float32),
        grid_spec=pltpu.PrefetchScalarGridSpec(
            num_scalar_prefetch=0,
            grid=(NUM_CORE_SPLITS, per_core),
            in_specs=[
                # x: small (B, 1024) block, same index every step -> stays resident in VMEM
                pl.BlockSpec((B, IN_PAD), lambda c, k: (0, 0)),
                # int8 W1^T hidden tile: one contiguous ~2.6 MB slab per step
                pl.BlockSpec((HIDDEN_TILE, IN_PAD),
                             lambda c, k: (c * per_core + k, 0)),
                # per-channel dequant scales for this hidden tile
                pl.BlockSpec((1, HIDDEN_TILE),
                             lambda c, k: (0, c * per_core + k)),
                # b1 hidden tile
                pl.BlockSpec((1, HIDDEN_TILE),
                             lambda c, k: (0, c * per_core + k)),
                # bf16 W2 hidden tile: (HIDDEN_TILE, 128), contiguous
                pl.BlockSpec((HIDDEN_TILE, OUT_PAD),
                             lambda c, k: (c * per_core + k, 0)),
                # b2 (folded into the accumulator init)
                pl.BlockSpec((1, OUT_PAD), lambda c, k: (0, 0)),
            ],
            # one lane-dense (B, 128) accumulator per core-split, resident over k
            out_specs=pl.BlockSpec((None, B, OUT_PAD), lambda c, k: (c, 0, 0)),
        ),
        compiler_params=pltpu.CompilerParams(
            dimension_semantics=("parallel", "arbitrary"),
            vmem_limit_bytes=28 << 20,
        ),
    )(x_pad, w1q, s1, b1p, w2p, b2p)

    # On single-TC chips NUM_CORE_SPLITS == 1, so this collapses to a reshape + tiny slice.
    return partials.sum(axis=0)[:, :OUT_DIM]


def _init_params(key):
    """Deterministic init mirroring nn.Linear's U(-1/sqrt(fan_in), 1/sqrt(fan_in))."""
    k1, k2, k3, k4 = jax.random.split(key, 4)
    lim1 = 1.0 / jnp.sqrt(IN_DIM)
    lim2 = 1.0 / jnp.sqrt(HIDDEN_DIM)
    # Stored as [in, out] (transposed relative to PyTorch's [out, in]).
    w1 = jax.random.uniform(k1, (IN_DIM, HIDDEN_DIM), jnp.float32, -lim1, lim1)
    b1 = jax.random.uniform(k2, (HIDDEN_DIM,), jnp.float32, -lim1, lim1)
    w2 = jax.random.uniform(k3, (HIDDEN_DIM, OUT_DIM), jnp.float32, -lim2, lim2)
    b2 = jax.random.uniform(k4, (OUT_DIM,), jnp.float32, -lim2, lim2)
    return w1, b1, w2, b2


if __name__ == "__main__":
    key = jax.random.PRNGKey(0)
    kx, kp = jax.random.split(key)

    B = 8
    x = jax.random.normal(kx, (B, IN_DIM), jnp.float32)
    w1, b1, w2, b2 = _init_params(kp)

    # One-time param preparation (pad / transpose / quantize) — outside the per-call path.
    params = prepare_params(w1, b1, w2, b2)

    out = toy_model_forward(x, *params)
    out = jax.block_until_ready(out)

    # Reference in plain f32 JAX (same math as the PyTorch forward).
    ref = jnp.maximum(x @ w1 + b1, 0.0) @ w2 + b2
    assert out.shape == (B, OUT_DIM)
    # int8-per-channel W1 + bf16 activations/W2 introduce ~1e-3-scale absolute differences.
    assert jnp.allclose(out, ref, atol=5e-2, rtol=5e-2), "mismatch vs reference"

    print("KERNEL_OK")
</pallas_src>

<mosaic_0001>
module attributes {stable_mosaic.version = 11 : i64} {
  func.func @_mlp_kernel(%arg0: i32, %arg1: i32, %arg2: memref<8x1024xf32, #tpu.memory_space<vmem>>, %arg3: memref<2560x1024xi8, #tpu.memory_space<vmem>>, %arg4: memref<1x2560xf32, #tpu.memory_space<vmem>>, %arg5: memref<1x2560xf32, #tpu.memory_space<vmem>>, %arg6: memref<2560x128xbf16, #tpu.memory_space<vmem>>, %arg7: memref<1x128xf32, #tpu.memory_space<vmem>>, %arg8: memref<1x8x128xf32, #tpu.memory_space<vmem>>) attributes {dimension_semantics = [#tpu.dimension_semantics<parallel>, #tpu.dimension_semantics<arbitrary>], iteration_bounds = array<i64: 1, 4>, scalar_prefetch = 0 : i64, scratch_operands = 0 : i64, tpu.core_type = #tpu.core_type<tc>, window_params = [{pipeline_mode = #tpu.pipeline_mode<synchronous>, transform_indices = @transform_0, window_bounds = array<i64: 8, 1024>}, {transform_indices = @transform_1, window_bounds = array<i64: 2560, 1024>}, {transform_indices = @transform_2, window_bounds = array<i64: 1, 2560>}, {transform_indices = @transform_3, window_bounds = array<i64: 1, 2560>}, {transform_indices = @transform_4, window_bounds = array<i64: 2560, 128>}, {pipeline_mode = #tpu.pipeline_mode<synchronous>, transform_indices = @transform_5, window_bounds = array<i64: 1, 128>}, {transform_indices = @transform_6, window_bounds = array<i64: 1, 8, 128>}]} {
    %c0_i32 = arith.constant 0 : i32
    %0 = arith.cmpi eq, %arg1, %c0_i32 : i32
    %1 = arith.extui %0 : i1 to i32
    %c0_i32_0 = arith.constant 0 : i32
    %2 = arith.cmpi ne, %1, %c0_i32_0 : i32
    scf.if %2 {
      %c0_i32_18 = arith.constant 0 : i32
      %25 = arith.cmpi eq, %arg0, %c0_i32_18 : i32
      %26 = arith.extui %25 : i1 to i32
      %27 = arith.sitofp %26 : i32 to f32
      %cst_19 = arith.constant 0.000000e+00 : f32
      %28 = vector.broadcast %cst_19 : f32 to vector<8x128xf32>
      %c0_20 = arith.constant 0 : index
      %c0_21 = arith.constant 0 : index
      %29 = vector.load %arg7[%c0_20, %c0_21] : memref<1x128xf32, #tpu.memory_space<vmem>>, vector<1x128xf32>
      %30 = vector.broadcast %27 : f32 to vector<1x128xf32>
      %31 = arith.mulf %30, %29 : vector<1x128xf32>
      %32 = vector.broadcast %31 : vector<1x128xf32> to vector<8x128xf32>
      %33 = arith.addf %28, %32 : vector<8x128xf32>
      %c0_22 = arith.constant 0 : index
      %c0_23 = arith.constant 0 : index
      %c0_24 = arith.constant 0 : index
      %34 = vector.load %arg8[%c0_22, %c0_23, %c0_24] : memref<1x8x128xf32, #tpu.memory_space<vmem>>, vector<1x8x128xf32>
      %35 = vector.shape_cast %34 : vector<1x8x128xf32> to vector<8x128xf32>
      %36 = vector.shape_cast %33 : vector<8x128xf32> to vector<1x8x128xf32>
      tpu.vector_store %arg8[%c0_22, %c0_23, %c0_24], %36 {strides = array<i32>} : memref<1x8x128xf32, #tpu.memory_space<vmem>>, vector<1x8x128xf32>,
    } else {
    }
    %c0 = arith.constant 0 : index
    %c0_1 = arith.constant 0 : index
    %3 = vector.load %arg2[%c0, %c0_1] : memref<8x1024xf32, #tpu.memory_space<vmem>>, vector<8x1024xf32>
    %4 = arith.truncf %3 : vector<8x1024xf32> to vector<8x1024xbf16>
    %c0_2 = arith.constant 0 : index
    %c0_3 = arith.constant 0 : index
    %5 = vector.load %arg3[%c0_2, %c0_3] : memref<2560x1024xi8, #tpu.memory_space<vmem>>, vector<2560x1024xi8>
    %6 = arith.sitofp %5 : vector<2560x1024xi8> to vector<2560x1024xbf16>
    %cst = arith.constant dense<0.000000e+00> : vector<8x2560xf32>
    %7 = tpu.matmul %4, %6, %cst {dimension_numbers = #tpu.dot_dimension_numbers<[1], [1], [0], [0], [0, 0, 1, 0], [], []>} : vector<8x1024xbf16>, vector<2560x1024xbf16>, vector<8x2560xf32> -> vector<8x2560xf32>
    %c0_4 = arith.constant 0 : index
    %c0_5 = arith.constant 0 : index
    %8 = vector.load %arg4[%c0_4, %c0_5] : memref<1x2560xf32, #tpu.memory_space<vmem>>, vector<1x2560xf32>
    %9 = vector.broadcast %8 : vector<1x2560xf32> to vector<8x2560xf32>
    %10 = arith.mulf %7, %9 : vector<8x2560xf32>
    %c0_6 = arith.constant 0 : index
    %c0_7 = arith.constant 0 : index
    %11 = vector.load %arg5[%c0_6, %c0_7] : memref<1x2560xf32, #tpu.memory_space<vmem>>, vector<1x2560xf32>
    %12 = vector.broadcast %11 : vector<1x2560xf32> to vector<8x2560xf32>
    %13 = arith.addf %10, %12 : vector<8x2560xf32>
    %cst_8 = arith.constant 0.000000e+00 : f32
    %14 = vector.broadcast %cst_8 : f32 to vector<8x2560xf32>
    %15 = arith.maximumf %13, %14 : vector<8x2560xf32>
    %c0_9 = arith.constant 0 : index
    %c0_10 = arith.constant 0 : index
    %c0_11 = arith.constant 0 : index
    %16 = vector.load %arg8[%c0_9, %c0_10, %c0_11] : memref<1x8x128xf32, #tpu.memory_space<vmem>>, vector<1x8x128xf32>
    %17 = vector.shape_cast %16 : vector<1x8x128xf32> to vector<8x128xf32>
    %18 = arith.truncf %15 : vector<8x2560xf32> to vector<8x2560xbf16>
    %c0_12 = arith.constant 0 : index
    %c0_13 = arith.constant 0 : index
    %19 = vector.load %arg6[%c0_12, %c0_13] : memref<2560x128xbf16, #tpu.memory_space<vmem>>, vector<2560x128xbf16>
    %cst_14 = arith.constant dense<0.000000e+00> : vector<8x128xf32>
    %20 = tpu.matmul %18, %19, %cst_14 {dimension_numbers = #tpu.dot_dimension_numbers<[1], [0], [0], [1], [0, 0, 1, 1], [], []>} : vector<8x2560xbf16>, vector<2560x128xbf16>, vector<8x128xf32> -> vector<8x128xf32>
    %21 = arith.addf %17, %20 : vector<8x128xf32>
    %c0_15 = arith.constant 0 : index
    %c0_16 = arith.constant 0 : index
    %c0_17 = arith.constant 0 : index
    %22 = vector.load %arg8[%c0_15, %c0_16, %c0_17] : memref<1x8x128xf32, #tpu.memory_space<vmem>>, vector<1x8x128xf32>
    %23 = vector.shape_cast %22 : vector<1x8x128xf32> to vector<8x128xf32>
    %24 = vector.shape_cast %21 : vector<8x128xf32> to vector<1x8x128xf32>
    tpu.vector_store %arg8[%c0_15, %c0_16, %c0_17], %24 {strides = array<i32>} : memref<1x8x128xf32, #tpu.memory_space<vmem>>, vector<1x8x128xf32>,
    return
  }
  func.func @transform_0(%arg0: i32, %arg1: i32) -> (i32, i32) {
    %c0_i32 = arith.constant 0 : i32
    %c0_i32_0 = arith.constant 0 : i32
    %c0_i32_1 = arith.constant 0 : i32
    return %c0_i32, %c0_i32_0 : i32, i32
  }
  func.func @transform_1(%arg0: i32, %arg1: i32) -> (i32, i32) {
    %c4_i32 = arith.constant 4 : i32
    %0 = arith.muli %arg0, %c4_i32 : i32
    %1 = arith.addi %0, %arg1 : i32
    %c0_i32 = arith.constant 0 : i32
    %c0_i32_0 = arith.constant 0 : i32
    return %1, %c0_i32 : i32, i32
  }
  func.func @transform_2(%arg0: i32, %arg1: i32) -> (i32, i32) {
    %c4_i32 = arith.constant 4 : i32
    %0 = arith.muli %arg0, %c4_i32 : i32
    %1 = arith.addi %0, %arg1 : i32
    %c0_i32 = arith.constant 0 : i32
    %c0_i32_0 = arith.constant 0 : i32
    return %c0_i32, %1 : i32, i32
  }
  func.func @transform_3(%arg0: i32, %arg1: i32) -> (i32, i32) {
    %c4_i32 = arith.constant 4 : i32
    %0 = arith.muli %arg0, %c4_i32 : i32
    %1 = arith.addi %0, %arg1 : i32
    %c0_i32 = arith.constant 0 : i32
    %c0_i32_0 = arith.constant 0 : i32
    return %c0_i32, %1 : i32, i32
  }
  func.func @transform_4(%arg0: i32, %arg1: i32) -> (i32, i32) {
    %c4_i32 = arith.constant 4 : i32
    %0 = arith.muli %arg0, %c4_i32 : i32
    %1 = arith.addi %0, %arg1 : i32
    %c0_i32 = arith.constant 0 : i32
    %c0_i32_0 = arith.constant 0 : i32
    return %1, %c0_i32 : i32, i32
  }
  func.func @transform_5(%arg0: i32, %arg1: i32) -> (i32, i32) {
    %c0_i32 = arith.constant 0 : i32
    %c0_i32_0 = arith.constant 0 : i32
    %c0_i32_1 = arith.constant 0 : i32
    return %c0_i32, %c0_i32_0 : i32, i32
  }
  func.func @transform_6(%arg0: i32, %arg1: i32) -> (i32, i32, i32) {
    %c0_i32 = arith.constant 0 : i32
    %c0_i32_0 = arith.constant 0 : i32
    %c0_i32_1 = arith.constant 0 : i32
    return %arg0, %c0_i32, %c0_i32_0 : i32, i32, i32
  }
}

</mosaic_0001>

<llo_original>
// kernel: toy_model_forward.1
$region0: #{toy_model_forward.1}
  #allocation0 [shape = 'u32[]', space=smem, size = 0x4, offset = 0x4, fixed_abs, tag = 'smem constant byte address 0x4 - core index']
  #allocation1 [shape = 'u32[144,128]{1,0:T(1,128)}', space=vmem, size = 0x12000, scoped, tag = 'internal scratch']
  %s0 = inlined_call_operand.vmem [shape: f32[8,1024], index: 0, kind: input, shape index: {}]
  %s1 = inlined_call_operand.hbm [shape: s8[10240,1024], index: 1, kind: input, shape index: {}]
  %s2 = inlined_call_operand.hbm [shape: f32[1,10240], index: 2, kind: input, shape index: {}]
  %s3 = inlined_call_operand.hbm [shape: f32[1,10240], index: 3, kind: input, shape index: {}]
  %s4 = inlined_call_operand.hbm [shape: bf16[10240,128], index: 4, kind: input, shape index: {}]
  %s5 = inlined_call_operand.hbm [shape: f32[1,128], index: 5, kind: input, shape index: {}]
  %s6 = inlined_call_operand.hbm [shape: f32[1,8,128], index: 6, kind: output, shape index: {}]
  %s7 = sld [smem:[#allocation0]]
  $region81: #{toy_model_forward.1} parent=0
    _
  %s9 = ssub.s32 1, %s7
  %s10 = scalar_select 0, %s9, %s7
  $region1: #{toy_model_forward.1} parent=0
    #allocation2 [shape = 'u8[5242880]{0}', space=vmem, size = 0x500000, scoped, tag = 'input window, operand 1']
    #allocation3 [shape = 's32[2]{0}', space=sflag, size = 0x8, scoped, tag = 'scoped memory for toy_model_forward.1']
    #allocation4 [shape = 's32[2]{0}', space=sflag, size = 0x8, scoped, tag = 'scoped memory for toy_model_forward.1']
    #allocation5 [shape = 'u8[20480]{0}', space=vmem, size = 0x5000, scoped, tag = 'input window, operand 2']
    #allocation6 [shape = 's32[2]{0}', space=sflag, size = 0x8, scoped, tag = 'scoped memory for toy_model_forward.1']
    #allocation7 [shape = 'u8[20480]{0}', space=vmem, size = 0x5000, scoped, tag = 'input window, operand 3']
    #allocation8 [shape = 'u8[1310720]{0}', space=vmem, size = 0x140000, scoped, tag = 'input window, operand 4']
    #allocation9 [shape = 's32[2]{0}', space=sflag, size = 0x8, scoped, tag = 'scoped memory for toy_model_forward.1']
    #allocation10 [shape = 'u8[512]{0}', space=vmem, size = 0x400, scoped, tag = 'input window, operand 5, single buffered']
    #allocation11 [shape = 'u8[4096]{0}', space=vmem, size = 0x1000, scoped, tag = 'output window, operand 0, single buffered']
    %11 = vsyncpa [#allocation3], 0
    %s12 = scalar_lea.sflag [#allocation3], 1
    %13 = vsyncpa %s12, 0
    %14 = vsyncpa [#allocation6], 0
    %s15 = scalar_lea.sflag [#allocation6], 1
    %16 = vsyncpa %s15, 0
    %17 = vsyncpa [#allocation9], 0
    %s18 = scalar_lea.sflag [#allocation9], 1
    %19 = vsyncpa %s18, 0
    %20 = vsyncpa [#allocation4], 0
    loop: start=0, step=1, limit=6
    $region2: #{toy_model_forward.1} parent=1 // loop_pre_header
      _
    $region3: #{toy_model_forward.1} parent=1 // loop_header
      %s22 = sphi 0, %s26
      %p23 = scmp.ge.s32.totalorder %s22, 6
      %s29 = sphi 0, %s41
      %s30 = sphi 0, %s37
      %s31 = sphi 0, %s29
      %s32 = sphi 0, %s30
      %s33 = sphi 0, %s31
      %s34 = sphi 0, %s32
      %s42 = sphi 0, %s42
      %s44 = sphi 0, %s42
      %s45 = sphi 0, %s44
      %s59 = sphi 0, %s45
      %s69 = sphi 0, %s71
      %s72 = sphi 0, %s69
      %s73 = sphi 0, %s72
      %s89 = sphi 0, %s73
      %s99 = sphi 0, %s101
      %s102 = sphi 0, %s99
      %s103 = sphi 0, %s102
      %s119 = sphi 0, %s103
      %s129 = sphi 0, %s131
      %s132 = sphi 0, %s129
      %s133 = sphi 0, %s132
      %s149 = sphi 0, %s133
      %s159 = sphi 0, %s161
      %s162 = sphi 0, %s159
      %s163 = sphi 0, %s162
      %s179 = sphi 0, %s163
      %s183 = sphi 0, %s183
      %s185 = sphi 0, %s183
      %s186 = sphi 0, %s185
      %s200 = sphi 0, %s186
      %s206 = sphi 0, %s208
      %s209 = sphi 0, %s206
      %s210 = sphi 0, %s209
      %s226 = sphi 0, %s210
    $region4: #{toy_model_forward.1} parent=1 // loop_header_branch
      %25 = sbr.rel (%p23) target = $region8
    $region5: #{toy_model_forward.1} parent=1 // loop_body
      %s27 = ssub.s32 %s22, 1
      %s28 = ssub.s32 %s22, 2
      %s35 = sadd.s32 1, %s30
      %p36 = scmp.ge.s32.totalorder %s35, 4
      %s37 = scalar_select %p36, 0, %s35
      %s38 = sadd.s32 1, %s29
      %s39 = scalar_select %p36, %s38, %s29
      %p40 = scmp.ge.s32.totalorder %s39, 1
      %s41 = scalar_select %p40, 0, %s39
      %s43 = sadd.s32 %s42, 1
      %p46 = scmp.eq.s32.totalorder %s22, 3
      %p47 = scmp.ne.s32.totalorder %s42, %s44
      %p48 = scmp.eq.s32.totalorder %s22, 0
      %p49 = por %p47, %p48
      %p50 = scmp.ne.s32.totalorder %s42, %s44
      %p51 = scmp.eq.s32.totalorder %s27, 3
      %p52 = por %p50, %p51
      %p53 = scmp.ne.s32.totalorder %s44, %s45
      %p54 = scmp.eq.s32.totalorder %s27, 0
      %p55 = por %p53, %p54
      %p56 = scmp.ne.s32.totalorder %s44, %s45
      %p57 = scmp.eq.s32.totalorder %s28, 3
      %p58 = por %p56, %p57
      %p60 = scmp.ne.s32.totalorder %s45, %s59
      %p61 = scmp.eq.s32.totalorder %s28, 0
      %p62 = por %p60, %p61
      %s63 = smul.u32 %s29, 4
      %s64 = sadd.s32 %s63, %s30
      %s65 = smul.u32 %s41, 4
      %s66 = sadd.s32 %s65, %s37
      %s67 = ssub.s32 %s64, %s66
      %p68 = scmp.eq.s32.totalorder %s67, 0
      %s70 = sadd.s32 %s69, 1
      %s71 = scalar_select %p68, %s69, %s70
      %p74 = pneg %p68
      %p75 = scmp.eq.s32.totalorder %s22, 3
      %p76 = por %p74, %p75
      %p77 = scmp.ne.s32.totalorder %s69, %s72
      %p78 = scmp.eq.s32.totalorder %s22, 0
      %p79 = por %p77, %p78
      %p80 = scmp.ne.s32.totalorder %s69, %s72
      %p81 = scmp.eq.s32.totalorder %s27, 3
      %p82 = por %p80, %p81
      %p83 = scmp.ne.s32.totalorder %s72, %s73
      %p84 = scmp.eq.s32.totalorder %s27, 0
      %p85 = por %p83, %p84
      %p86 = scmp.ne.s32.totalorder %s72, %s73
      %p87 = scmp.eq.s32.totalorder %s28, 3
      %p88 = por %p86, %p87
      %p90 = scmp.ne.s32.totalorder %s73, %s89
      %p91 = scmp.eq.s32.totalorder %s28, 0
      %p92 = por %p90, %p91
      %s93 = smul.u32 %s29, 4
      %s94 = sadd.s32 %s93, %s30
      %s95 = smul.u32 %s41, 4
      %s96 = sadd.s32 %s95, %s37
      %s97 = ssub.s32 %s94, %s96
      %p98 = scmp.eq.s32.totalorder %s97, 0
      %s100 = sadd.s32 %s99, 1
      %s101 = scalar_select %p98, %s99, %s100
      %p104 = pneg %p98
      %p105 = scmp.eq.s32.totalorder %s22, 3
      %p106 = por %p104, %p105
      %p107 = scmp.ne.s32.totalorder %s99, %s102
      %p108 = scmp.eq.s32.totalorder %s22, 0
      %p109 = por %p107, %p108
      %p110 = scmp.ne.s32.totalorder %s99, %s102
      %p111 = scmp.eq.s32.totalorder %s27, 3
      %p112 = por %p110, %p111
      %p113 = scmp.ne.s32.totalorder %s102, %s103
      %p114 = scmp.eq.s32.totalorder %s27, 0
      %p115 = por %p113, %p114
      %p116 = scmp.ne.s32.totalorder %s102, %s103
      %p117 = scmp.eq.s32.totalorder %s28, 3
      %p118 = por %p116, %p117
      %p120 = scmp.ne.s32.totalorder %s103, %s119
      %p121 = scmp.eq.s32.totalorder %s28, 0
      %p122 = por %p120, %p121
      %s123 = smul.u32 %s29, 4
      %s124 = sadd.s32 %s123, %s30
      %s125 = smul.u32 %s41, 4
      %s126 = sadd.s32 %s125, %s37
      %s127 = ssub.s32 %s124, %s126
      %p128 = scmp.eq.s32.totalorder %s127, 0
      %s130 = sadd.s32 %s129, 1
      %s131 = scalar_select %p128, %s129, %s130
      %p134 = pneg %p128
      %p135 = scmp.eq.s32.totalorder %s22, 3
      %p136 = por %p134, %p135
      %p137 = scmp.ne.s32.totalorder %s129, %s132
      %p138 = scmp.eq.s32.totalorder %s22, 0
      %p139 = por %p137, %p138
      %p140 = scmp.ne.s32.totalorder %s129, %s132
      %p141 = scmp.eq.s32.totalorder %s27, 3
      %p142 = por %p140, %p141
      %p143 = scmp.ne.s32.totalorder %s132, %s133
      %p144 = scmp.eq.s32.totalorder %s27, 0
      %p145 = por %p143, %p144
      %p146 = scmp.ne.s32.totalorder %s132, %s133
      %p147 = scmp.eq.s32.totalorder %s28, 3
      %p148 = por %p146, %p147
      %p150 = scmp.ne.s32.totalorder %s133, %s149
      %p151 = scmp.eq.s32.totalorder %s28, 0
      %p152 = por %p150, %p151
      %s153 = smul.u32 %s29, 4
      %s154 = sadd.s32 %s153, %s30
      %s155 = smul.u32 %s41, 4
      %s156 = sadd.s32 %s155, %s37
      %s157 = ssub.s32 %s154, %s156
      %p158 = scmp.eq.s32.totalorder %s157, 0
      %s160 = sadd.s32 %s159, 1
      %s161 = scalar_select %p158, %s159, %s160
      %p164 = pneg %p158
      %p165 = scmp.eq.s32.totalorder %s22, 3
      %p166 = por %p164, %p165
      %p167 = scmp.ne.s32.totalorder %s159, %s162
      %p168 = scmp.eq.s32.totalorder %s22, 0
      %p169 = por %p167, %p168
      %p170 = scmp.ne.s32.totalorder %s159, %s162
      %p171 = scmp.eq.s32.totalorder %s27, 3
      %p172 = por %p170, %p171
      %p173 = scmp.ne.s32.totalorder %s162, %s163
      %p174 = scmp.eq.s32.totalorder %s27, 0
      %p175 = por %p173, %p174
      %p176 = scmp.ne.s32.totalorder %s162, %s163
      %p177 = scmp.eq.s32.totalorder %s28, 3
      %p178 = por %p176, %p177
      %p180 = scmp.ne.s32.totalorder %s163, %s179
      %p181 = scmp.eq.s32.totalorder %s28, 0
      %p182 = por %p180, %p181
      %s184 = sadd.s32 %s183, 1
      %p187 = scmp.eq.s32.totalorder %s22, 3
      %p188 = scmp.ne.s32.totalorder %s183, %s185
      %p189 = scmp.eq.s32.totalorder %s22, 0
      %p190 = por %p188, %p189
      %p191 = scmp.ne.s32.totalorder %s183, %s185
      %p192 = scmp.eq.s32.totalorder %s27, 3
      %p193 = por %p191, %p192
      %p194 = scmp.ne.s32.totalorder %s185, %s186
      %p195 = scmp.eq.s32.totalorder %s27, 0
      %p196 = por %p194, %p195
      %p197 = scmp.ne.s32.totalorder %s185, %s186
      %p198 = scmp.eq.s32.totalorder %s28, 3
      %p199 = por %p197, %p198
      %p201 = scmp.ne.s32.totalorder %s186, %s200
      %p202 = scmp.eq.s32.totalorder %s28, 0
      %p203 = por %p201, %p202
      %s204 = ssub.s32 %s29, %s41
      %p205 = scmp.eq.s32.totalorder %s204, 0
      %s207 = sadd.s32 %s206, 1
      %s208 = scalar_select %p205, %s206, %s207
      %p211 = pneg %p205
      %p212 = scmp.eq.s32.totalorder %s22, 3
      %p213 = por %p211, %p212
      %p214 = scmp.ne.s32.totalorder %s206, %s209
      %p215 = scmp.eq.s32.totalorder %s22, 0
      %p216 = por %p214, %p215
      %p217 = scmp.ne.s32.totalorder %s206, %s209
      %p218 = scmp.eq.s32.totalorder %s27, 3
      %p219 = por %p217, %p218
      %p220 = scmp.ne.s32.totalorder %s209, %s210
      %p221 = scmp.eq.s32.totalorder %s27, 0
      %p222 = por %p220, %p221
      %p223 = scmp.ne.s32.totalorder %s209, %s210
      %p224 = scmp.eq.s32.totalorder %s28, 3
      %p225 = por %p223, %p224
      %p227 = scmp.ne.s32.totalorder %s210, %s226
      %p228 = scmp.eq.s32.totalorder %s28, 0
      %p229 = por %p227, %p228
      %p230 = scmp.le.s32.totalorder 1, %s22
      %p231 = scmp.lt.s32.totalorder %s22, 5
      %p232 = pnand %p230, %p231
      %p233 = pneg %p232
      // Predicated region
      $region9: #{toy_model_forward.1} parent=5 // pred_check
        _
      $region10: #{toy_model_forward.1} parent=5 // pred_check_branch
        %235 = sbr.rel (%p232) target = $region12
      $region11: #{toy_model_forward.1} parent=5 // pred_region
        %s236 = ssub.s32 %s22, 1
        // Predicated region
        $region13: #{toy_model_forward.1} parent=11 // pred_check
          %p237 = pneg %p55
        $region14: #{toy_model_forward.1} parent=11 // pred_check_branch
          %239 = sbr.rel (%p237) target = $region16
        $region15: #{toy_model_forward.1} parent=11 // pred_region
          _
        $region16: #{toy_model_forward.1} parent=11 // pred_fallthru
          _
        // Predicated region
        $region17: #{toy_model_forward.1} parent=11 // pred_check
          %p240 = pneg %p196
        $region18: #{toy_model_forward.1} parent=11 // pred_check_branch
          %242 = sbr.rel (%p240) target = $region20
        $region19: #{toy_model_forward.1} parent=11 // pred_region
          %s244 = ssub.s32 16, 16
          %245 = vsyncadd [#allocation9], %s244
          %s247 = sshll.u32 [#allocation10], 4
          %s248 = int_to_ptr.vmem [resolvable:$true] %s247
          %250 = dma.hbm_to_vmem [thread:$0]  %s5, 16, %s248, [#allocation9]
        $region20: #{toy_model_forward.1} parent=11 // pred_fallthru
          _
      $region12: #{toy_model_forward.1} parent=5 // pred_fallthru
        _
      %p251 = scmp.lt.s32.totalorder %s22, 4
      // Predicated region
      $region21: #{toy_model_forward.1} parent=5 // pred_check
        %p252 = pneg %p251
      $region22: #{toy_model_forward.1} parent=5 // pred_check_branch
        %254 = sbr.rel (%p252) target = $region24
      $region23: #{toy_model_forward.1} parent=5 // pred_region
        // Predicated region
        $region25: #{toy_model_forward.1} parent=23 // pred_check
          %p255 = pneg %p79
        $region26: #{toy_model_forward.1} parent=23 // pred_check_branch
          %257 = sbr.rel (%p255) target = $region28
        $region27: #{toy_model_forward.1} parent=23 // pred_region
          %s258 = sand.u32 %s69, 1
          %s259 = scalar_lea.sflag [#allocation3], %s258
          %s260 = sand.u32 %s69, 1
          %s261 = smul.addr %s260, 5120
          %s262 = scalar_lea.vmem [#allocation2], %s261
          %s263 = smul.u32 %s29, 4
          %s264 = sadd.s32 %s263, %s30
          %s265 = smul.u32 80, %s264
          %s267 = ssub.s32 81920, 81920
          %268 = vsyncadd %s259, %s267
          %s269 = smul.addr %s265, 8
          %s270 = smul.addr %s269, 128
          %s271 = scalar_lea.hbm %s1, %s270
          %s272 = sshll.u32 %s262, 4
          %s273 = int_to_ptr.vmem [resolvable:$true] %s272
          %278 = dma.hbm_to_vmem [thread:$0]  %s271, 81920, %s273, %s259, 1024, 1024, 64
        $region28: #{toy_model_forward.1} parent=23 // pred_fallthru
          _
        // Predicated region
        $region29: #{toy_model_forward.1} parent=23 // pred_check
          %p279 = pneg %p109
        $region30: #{toy_model_forward.1} parent=23 // pred_check_branch
          %281 = sbr.rel (%p279) target = $region32
        $region31: #{toy_model_forward.1} parent=23 // pred_region
          %s282 = sand.u32 %s22, 1
          %s283 = scalar_lea.sflag [#allocation6], %s282
          %s284 = sand.u32 %s99, 1
          %s285 = smul.addr %s284, 20
          %s286 = scalar_lea.vmem [#allocation5], %s285
          %s287 = smul.u32 %s29, 4
          %s288 = sadd.s32 %s287, %s30
          %s289 = smul.u32 20, %s288
          %s291 = ssub.s32 320, 320
          %292 = vsyncadd %s283, %s291
          %s293 = smul.addr %s289, 16
          %s294 = scalar_lea.hbm %s2, %s293
          %s296 = sshll.u32 %s286, 4
          %s297 = int_to_ptr.vmem [resolvable:$true] %s296
          %299 = dma.hbm_to_vmem [thread:$0]  %s294, 320, %s297, %s283
        $region32: #{toy_model_forward.1} parent=23 // pred_fallthru
          _
        // Predicated region
        $region33: #{toy_model_forward.1} parent=23 // pred_check
          %p300 = pneg %p139
        $region34: #{toy_model_forward.1} parent=23 // pred_check_branch
          %302 = sbr.rel (%p300) target = $region36
        $region35: #{toy_model_forward.1} parent=23 // pred_region
          %s303 = sand.u32 %s22, 1
          %s304 = scalar_lea.sflag [#allocation6], %s303
          %s305 = sand.u32 %s129, 1
          %s306 = smul.addr %s305, 20
          %s307 = scalar_lea.vmem [#allocation7], %s306
          %s308 = smul.u32 %s29, 4
          %s309 = sadd.s32 %s308, %s30
          %s310 = smul.u32 20, %s309
          %s312 = ssub.s32 320, 320
          %313 = vsyncadd %s304, %s312
          %s314 = smul.addr %s310, 16
          %s315 = scalar_lea.hbm %s3, %s314
          %s317 = sshll.u32 %s307, 4
          %s318 = int_to_ptr.vmem [resolvable:$true] %s317
          %320 = dma.hbm_to_vmem [thread:$0]  %s315, 320, %s318, %s304
        $region36: #{toy_model_forward.1} parent=23 // pred_fallthru
          _
        // Predicated region
        $region37: #{toy_model_forward.1} parent=23 // pred_check
          %p321 = pneg %p169
        $region38: #{toy_model_forward.1} parent=23 // pred_check_branch
          %323 = sbr.rel (%p321) target = $region40
        $region39: #{toy_model_forward.1} parent=23 // pred_region
          %s324 = sand.u32 %s22, 1
          %s325 = scalar_lea.sflag [#allocation9], %s324
          %s326 = sand.u32 %s159, 1
          %s327 = smul.addr %s326, 1280
          %s328 = scalar_lea.vmem [#allocation8], %s327
          %s329 = smul.u32 %s29, 4
          %s330 = sadd.s32 %s329, %s30
          %s331 = smul.u32 320, %s330
          %s333 = ssub.s32 20480, 20480
          %334 = vsyncadd %s325, %s333
          %s335 = smul.addr %s331, 64
          %s336 = scalar_lea.hbm %s4, %s335
          %s337 = sshll.u32 %s328, 4
          %s338 = int_to_ptr.vmem [resolvable:$true] %s337
          %343 = dma.hbm_to_vmem [thread:$0]  %s336, 20480, %s338, %s325, 64, 64, 4
        $region40: #{toy_model_forward.1} parent=23 // pred_fallthru
          _
      $region24: #{toy_model_forward.1} parent=5 // pred_fallthru
        _
      %p344 = scmp.le.s32.totalorder 1, %s22
      %p345 = scmp.lt.s32.totalorder %s22, 5
      %p346 = pnand %p344, %p345
      %p347 = pneg %p346
      // Predicated region
      $region41: #{toy_model_forward.1} parent=5 // pred_check
        _
      $region42: #{toy_model_forward.1} parent=5 // pred_check_branch
        %349 = sbr.rel (%p346) target = $region44
      $region43: #{toy_model_forward.1} parent=5 // pred_region
        %s350 = ssub.s32 %s22, 1
        %s351 = sand.u32 %s72, 1
        %s352 = scalar_lea.sflag [#allocation3], %s351
        %s353 = sand.u32 %s72, 1
        %s354 = smul.addr %s353, 5120
        %s355 = scalar_lea.vmem [#allocation2], %s354
        // Predicated region
        $region45: #{toy_model_forward.1} parent=43 // pred_check
          %p356 = pneg %p85
        $region46: #{toy_model_forward.1} parent=43 // pred_check_branch
          %358 = sbr.rel (%p356) target = $region48
        $region47: #{toy_model_forward.1} parent=43 // pred_region
          %359 = dma.done %s352, 81920
        $region48: #{toy_model_forward.1} parent=43 // pred_fallthru
          _
        %s360 = sand.u32 %s27, 1
        %s361 = scalar_lea.sflag [#allocation6], %s360
        %s362 = sand.u32 %s102, 1
        %s363 = smul.addr %s362, 20
        %s364 = scalar_lea.vmem [#allocation5], %s363
        // Predicated region
        $region49: #{toy_model_forward.1} parent=43 // pred_check
          %p365 = pneg %p115
        $region50: #{toy_model_forward.1} parent=43 // pred_check_branch
          %367 = sbr.rel (%p365) target = $region52
        $region51: #{toy_model_forward.1} parent=43 // pred_region
          %368 = dma.done %s361, 320
        $region52: #{toy_model_forward.1} parent=43 // pred_fallthru
          _
        %s369 = sand.u32 %s27, 1
        %s370 = scalar_lea.sflag [#allocation6], %s369
        %s371 = sand.u32 %s132, 1
        %s372 = smul.addr %s371, 20
        %s373 = scalar_lea.vmem [#allocation7], %s372
        // Predicated region
        $region53: #{toy_model_forward.1} parent=43 // pred_check
          %p374 = pneg %p145
        $region54: #{toy_model_forward.1} parent=43 // pred_check_branch
          %376 = sbr.rel (%p374) target = $region56
        $region55: #{toy_model_forward.1} parent=43 // pred_region
          %377 = dma.done %s370, 320
        $region56: #{toy_model_forward.1} parent=43 // pred_fallthru
          _
        %s378 = sand.u32 %s27, 1
        %s379 = scalar_lea.sflag [#allocation9], %s378
        %s380 = sand.u32 %s162, 1
        %s381 = smul.addr %s380, 1280
        %s382 = scalar_lea.vmem [#allocation8], %s381
        // Predicated region
        $region57: #{toy_model_forward.1} parent=43 // pred_check
          %p383 = pneg %p175
        $region58: #{toy_model_forward.1} parent=43 // pred_check_branch
          %385 = sbr.rel (%p383) target = $region60
        $region59: #{toy_model_forward.1} parent=43 // pred_region
          %386 = dma.done %s379, 20480
        $region60: #{toy_model_forward.1} parent=43 // pred_fallthru
          _
        // Predicated region
        $region61: #{toy_model_forward.1} parent=43 // pred_check
          %p387 = pneg %p196
        $region62: #{toy_model_forward.1} parent=43 // pred_check_branch
          %389 = sbr.rel (%p387) target = $region64
        $region63: #{toy_model_forward.1} parent=43 // pred_region
          %390 = dma.done [#allocation9], 16
        $region64: #{toy_model_forward.1} parent=43 // pred_fallthru
          _
        %p391 = pneg %p55
        %p392 = pneg %p52
        %s393 = sand.u32 %s72, 1
        %s394 = scalar_lea.sflag [#allocation3], %s393
        %s395 = sand.u32 %s72, 1
        %s396 = smul.addr %s395, 5120
        %s397 = scalar_lea.vmem [#allocation2], %s396
        %p398 = pneg %p85
        %p399 = pneg %p82
        %s400 = sand.u32 %s27, 1
        %s401 = scalar_lea.sflag [#allocation6], %s400
        %s402 = sand.u32 %s102, 1
        %s403 = smul.addr %s402, 20
        %s404 = scalar_lea.vmem [#allocation5], %s403
        %p405 = pneg %p115
        %p406 = pneg %p112
        %s407 = sand.u32 %s27, 1
        %s408 = scalar_lea.sflag [#allocation6], %s407
        %s409 = sand.u32 %s132, 1
        %s410 = smul.addr %s409, 20
        %s411 = scalar_lea.vmem [#allocation7], %s410
        %p412 = pneg %p145
        %p413 = pneg %p142
        %s414 = sand.u32 %s27, 1
        %s415 = scalar_lea.sflag [#allocation9], %s414
        %s416 = sand.u32 %s162, 1
        %s417 = smul.addr %s416, 1280
        %s418 = scalar_lea.vmem [#allocation8], %s417
        %p419 = pneg %p175
        %p420 = pneg %p172
        %p421 = pneg %p196
        %p422 = pneg %p193
        %p423 = pneg %p222
        %p424 = pneg %p219
        %s425 = smul.u32 %s31, 4
        %s426 = sadd.s32 %s425, %s32
        %s427 = smul.u32 80, %s426
        %s428 = smul.u32 %s31, 4
        %s429 = sadd.s32 %s428, %s32
        %s430 = smul.u32 20, %s429
        %s431 = smul.u32 %s31, 4
        %s432 = sadd.s32 %s431, %s32
        %s433 = smul.u32 20, %s432
        %s434 = smul.u32 %s31, 4
        %s435 = sadd.s32 %s434, %s32
        %s436 = smul.u32 320, %s435
        %p438 = scmp.eq.s32.totalorder %s32, 0
        // Predicated region
        $region65: #{toy_model_forward.1} parent=43 // pred_check
          %p439 = pneg %p438
        $region66: #{toy_model_forward.1} parent=43 // pred_check_branch
          %441 = sbr.rel (%p439) target = $region68
        $region67: #{toy_model_forward.1} parent=43 // pred_region
          %p442 = scmp.eq.s32.totalorder %s31, 0
          %s443 = scalar_select %p442, 1, 0
          %s444 = scvt.s32.f32 %s443
          %v445 = vld [vmem:[#allocation10] sm:$0x1]
          %v446 = vstv %s444
          %v447 = vmul.f32 %v446, %v445
          %v449 = vlaneseq
          %v450 = vshrl.u32 %v449, 7
          %v451 = vsub.s32 0, %v450
          %v452 = vrot.slane %v447, %v451
          %v454 = vadd.f32 %v452, 0.0
          %455 = vst [vmem:[#allocation11] sm:$0xff] %v454
        $region68: #{toy_model_forward.1} parent=43 // pred_fallthru
          _
        %v456 = vld [vmem:[%s0] sm:$0xff]
        %v457 = vld [vmem:[%s0 + $0x8] sm:$0xff]
        %v458 = vld [vmem:[%s0 + $0x10] sm:$0xff]
        %v459 = vld [vmem:[%s0 + $0x18] sm:$0xff]
        %v460 = vld [vmem:[%s0 + $0x20] sm:$0xff]
        %v461 = vld [vmem:[%s0 + $0x28] sm:$0xff]
        %v462 = vld [vmem:[%s0 + $0x30] sm:$0xff]
        %v463 = vld [vmem:[%s0 + $0x38] sm:$0xff]
        %v464 = vpack.c.bf16 %v456, %v456
        %v465 = vpack.c.bf16 %v457, %v457
        %v466 = vpack.c.bf16 %v458, %v458
        %v467 = vpack.c.bf16 %v459, %v459
        %v468 = vpack.c.bf16 %v460, %v460
        %v469 = vpack.c.bf16 %v461, %v461
        %v470 = vpack.c.bf16 %v462, %v462
        %v471 = vpack.c.bf16 %v463, %v463
        %v472 = vld [vmem:[%s355] sm:$0xff]
        %v473 = vld [vmem:[%s355 + $0x8] sm:$0xff]
        %v474 = vld [vmem:[%s355 + $0x10] sm:$0xff]
        %v475 = vld [vmem:[%s355 + $0x18] sm:$0xff]
        %v476 = vld [vmem:[%s355 + $0x20] sm:$0xff]
        %v477 = vld [vmem:[%s355 + $0x28] sm:$0xff]
        %v478 = vld [vmem:[%s355 + $0x30] sm:$0xff]
        %v479 = vld [vmem:[%s355 + $0x38] sm:$0xff]
        %v480 = vld [vmem:[%s355 + $0x40] sm:$0xff]
        %v481 = vld [vmem:[%s355 + $0x48] sm:$0xff]
        %v482 = vld [vmem:[%s355 + $0x50] sm:$0xff]
        %v483 = vld [vmem:[%s355 + $0x58] sm:$0xff]
        %v484 = vld [vmem:[%s355 + $0x60] sm:$0xff]
        %v485 = vld [vmem:[%s355 + $0x68] sm:$0xff]
        %v486 = vld [vmem:[%s355 + $0x70] sm:$0xff]
        %v487 = vld [vmem:[%s355 + $0x78] sm:$0xff]
        %v488 = vld [vmem:[%s355 + $0x80] sm:$0xff]
        %v489 = vld [vmem:[%s355 + $0x88] sm:$0xff]
        %v490 = vld [vmem:[%s355 + $0x90] sm:$0xff]
        %v491 = vld [vmem:[%s355 + $0x98] sm:$0xff]
        %v492 = vld [vmem:[%s355 + $0xa0] sm:$0xff]
        %v493 = vld [vmem:[%s355 + $0xa8] sm:$0xff]
        %v494 = vld [vmem:[%s355 + $0xb0] sm:$0xff]
        %v495 = vld [vmem:[%s355 + $0xb8] sm:$0xff]
        %v496 = vld [vmem:[%s355 + $0xc0] sm:$0xff]
        %v497 = vld [vmem:[%s355 + $0xc8] sm:$0xff]
        %v498 = vld [vmem:[%s355 + $0xd0] sm:$0xff]
        %v499 = vld [vmem:[%s355 + $0xd8] sm:$0xff]
        %v500 = vld [vmem:[%s355 + $0xe0] sm:$0xff]
        %v501 = vld [vmem:[%s355 + $0xe8] sm:$0xff]
        %v502 = vld [vmem:[%s355 + $0xf0] sm:$0xff]
        %v503 = vld [vmem:[%s355 + $0xf8] sm:$0xff]
        %v504 = vld [vmem:[%s355 + $0x100] sm:$0xff]
        %v505 = vld [vmem:[%s355 + $0x108] sm:$0xff]
        %v506 = vld [vmem:[%s355 + $0x110] sm:$0xff]
        %v507 = vld [vmem:[%s355 + $0x118] sm:$0xff]
        %v508 = vld [vmem:[%s355 + $0x120] sm:$0xff]
        %v509 = vld [vmem:[%s355 + $0x128] sm:$0xff]
        %v510 = vld [vmem:[%s355 + $0x130] sm:$0xff]
        %v511 = vld [vmem:[%s355 + $0x138] sm:$0xff]
        %v512 = vld [vmem:[%s355 + $0x140] sm:$0xff]
        %v513 = vld [vmem:[%s355 + $0x148] sm:$0xff]
        %v514 = vld [vmem:[%s355 + $0x150] sm:$0xff]
        %v515 = vld [vmem:[%s355 + $0x158] sm:$0xff]
        %v516 = vld [vmem:[%s355 + $0x160] sm:$0xff]
        %v517 = vld [vmem:[%s355 + $0x168] sm:$0xff]
        %v518 = vld [vmem:[%s355 + $0x170] sm:$0xff]
        %v519 = vld [vmem:[%s355 + $0x178] sm:$0xff]
        %v520 = vld [vmem:[%s355 + $0x180] sm:$0xff]
        %v521 = vld [vmem:[%s355 + $0x188] sm:$0xff]
        %v522 = vld [vmem:[%s355 + $0x190] sm:$0xff]
        %v523 = vld [vmem:[%s355 + $0x198] sm:$0xff]
        %v524 = vld [vmem:[%s355 + $0x1a0] sm:$0xff]
        %v525 = vld [vmem:[%s355 + $0x1a8] sm:$0xff]
        %v526 = vld [vmem:[%s355 + $0x1b0] sm:$0xff]
        %v527 = vld [vmem:[%s355 + $0x1b8] sm:$0xff]
        %v528 = vld [vmem:[%s355 + $0x1c0] sm:$0xff]
        %v529 = vld [vmem:[%s355 + $0x1c8] sm:$0xff]
        %v530 = vld [vmem:[%s355 + $0x1d0] sm:$0xff]
        %v531 = vld [vmem:[%s355 + $0x1d8] sm:$0xff]
        %v532 = vld [vmem:[%s355 + $0x1e0] sm:$0xff]
        %v533 = vld [vmem:[%s355 + $0x1e8] sm:$0xff]
        %v534 = vld [vmem:[%s355 + $0x1f0] sm:$0xff]
        %v535 = vld [vmem:[%s355 + $0x1f8] sm:$0xff]
        %v536 = vld [vmem:[%s355 + $0x200] sm:$0xff]
        %v537 = vld [vmem:[%s355 + $0x208] sm:$0xff]
        %v538 = vld [vmem:[%s355 + $0x210] sm:$0xff]
        %v539 = vld [vmem:[%s355 + $0x218] sm:$0xff]
        %v540 = vld [vmem:[%s355 + $0x220] sm:$0xff]
        %v541 = vld [vmem:[%s355 + $0x228] sm:$0xff]
        %v542 = vld [vmem:[%s355 + $0x230] sm:$0xff]
        %v543 = vld [vmem:[%s355 + $0x238] sm:$0xff]
        %v544 = vld [vmem:[%s355 + $0x240] sm:$0xff]
        %v545 = vld [vmem:[%s355 + $0x248] sm:$0xff]
        %v546 = vld [vmem:[%s355 + $0x250] sm:$0xff]
        %v547 = vld [vmem:[%s355 + $0x258] sm:$0xff]
        %v548 = vld [vmem:[%s355 + $0x260] sm:$0xff]
        %v549 = vld [vmem:[%s355 + $0x268] sm:$0xff]
        %v550 = vld [vmem:[%s355 + $0x270] sm:$0xff]
        %v551 = vld [vmem:[%s355 + $0x278] sm:$0xff]
        %v552 = vld [vmem:[%s355 + $0x280] sm:$0xff]
        %v553 = vld [vmem:[%s355 + $0x288] sm:$0xff]
        %v554 = vld [vmem:[%s355 + $0x290] sm:$0xff]
        %v555 = vld [vmem:[%s355 + $0x298] sm:$0xff]
        %v556 = vld [vmem:[%s355 + $0x2a0] sm:$0xff]
        %v557 = vld [vmem:[%s355 + $0x2a8] sm:$0xff]
        %v558 = vld [vmem:[%s355 + $0x2b0] sm:$0xff]
        %v559 = vld [vmem:[%s355 + $0x2b8] sm:$0xff]
        %v560 = vld [vmem:[%s355 + $0x2c0] sm:$0xff]
        %v561 = vld [vmem:[%s355 + $0x2c8] sm:$0xff]
        %v562 = vld [vmem:[%s355 + $0x2d0] sm:$0xff]
        %v563 = vld [vmem:[%s355 + $0x2d8] sm:$0xff]
        %v564 = vld [vmem:[%s355 + $0x2e0] sm:$0xff]
        %v565 = vld [vmem:[%s355 + $0x2e8] sm:$0xff]
        %v566 = vld [vmem:[%s355 + $0x2f0] sm:$0xff]
        %v567 = vld [vmem:[%s355 + $0x2f8] sm:$0xff]
        %v568 = vld [vmem:[%s355 + $0x300] sm:$0xff]
        %v569 = vld [vmem:[%s355 + $0x308] sm:$0xff]
        %v570 = vld [vmem:[%s355 + $0x310] sm:$0xff]
        %v571 = vld [vmem:[%s355 + $0x318] sm:$0xff]
        %v572 = vld [vmem:[%s355 + $0x320] sm:$0xff]
        %v573 = vld [vmem:[%s355 + $0x328] sm:$0xff]
        %v574 = vld [vmem:[%s355 + $0x330] sm:$0xff]
        %v575 = vld [vmem:[%s355 + $0x338] sm:$0xff]
        %v576 = vld [vmem:[%s355 + $0x340] sm:$0xff]
        %v577 = vld [vmem:[%s355 + $0x348] sm:$0xff]
        %v578 = vld [vmem:[%s355 + $0x350] sm:$0xff]
        %v579 = vld [vmem:[%s355 + $0x358] sm:$0xff]
        %v580 = vld [vmem:[%s355 + $0x360] sm:$0xff]
        %v581 = vld [vmem:[%s355 + $0x368] sm:$0xff]
        %v582 = vld [vmem:[%s355 + $0x370] sm:$0xff]
        %v583 = vld [vmem:[%s355 + $0x378] sm:$0xff]
        %v584 = vld [vmem:[%s355 + $0x380] sm:$0xff]
        %v585 = vld [vmem:[%s355 + $0x388] sm:$0xff]
        %v586 = vld [vmem:[%s355 + $0x390] sm:$0xff]
        %v587 = vld [vmem:[%s355 + $0x398] sm:$0xff]
        %v588 = vld [vmem:[%s355 + $0x3a0] sm:$0xff]
        %v589 = vld [vmem:[%s355 + $0x3a8] sm:$0xff]
        %v590 = vld [vmem:[%s355 + $0x3b0] sm:$0xff]
        %v591 = vld [vmem:[%s355 + $0x3b8] sm:$0xff]
        %v592 = vld [vmem:[%s355 + $0x3c0] sm:$0xff]
        %v593 = vld [vmem:[%s355 + $0x3c8] sm:$0xff]
        %v594 = vld [vmem:[%s355 + $0x3d0] sm:$0xff]
        %v595 = vld [vmem:[%s355 + $0x3d8] sm:$0xff]
        %v596 = vld [vmem:[%s355 + $0x3e0] sm:$0xff]
        %v597 = vld [vmem:[%s355 + $0x3e8] sm:$0xff]
        %v598 = vld [vmem:[%s355 + $0x3f0] sm:$0xff]
        %v599 = vld [vmem:[%s355 + $0x3f8] sm:$0xff]
        %v600 = vld [vmem:[%s355 + $0x400] sm:$0xff]
        %v601 = vld [vmem:[%s355 + $0x408] sm:$0xff]
        %v602 = vld [vmem:[%s355 + $0x410] sm:$0xff]
        %v603 = vld [vmem:[%s355 + $0x418] sm:$0xff]
        %v604 = vld [vmem:[%s355 + $0x420] sm:$0xff]
        %v605 = vld [vmem:[%s355 + $0x428] sm:$0xff]
        %v606 = vld [vmem:[%s355 + $0x430] sm:$0xff]
        %v607 = vld [vmem:[%s355 + $0x438] sm:$0xff]
        %v608 = vld [vmem:[%s355 + $0x440] sm:$0xff]
        %v609 = vld [vmem:[%s355 + $0x448] sm:$0xff]
        %v610 = vld [vmem:[%s355 + $0x450] sm:$0xff]
        %v611 = vld [vmem:[%s355 + $0x458] sm:$0xff]
        %v612 = vld [vmem:[%s355 + $0x460] sm:$0xff]
        %v613 = vld [vmem:[%s355 + $0x468] sm:$0xff]
        %v614 = vld [vmem:[%s355 + $0x470] sm:$0xff]
        %v615 = vld [vmem:[%s355 + $0x478] sm:$0xff]
        %v616 = vld [vmem:[%s355 + $0x480] sm:$0xff]
        %v617 = vld [vmem:[%s355 + $0x488] sm:$0xff]
        %v618 = vld [vmem:[%s355 + $0x490] sm:$0xff]
        %v619 = vld [vmem:[%s355 + $0x498] sm:$0xff]
        %v620 = vld [vmem:[%s355 + $0x4a0] sm:$0xff]
        %v621 = vld [vmem:[%s355 + $0x4a8] sm:$0xff]
        %v622 = vld [vmem:[%s355 + $0x4b0] sm:$0xff]
        %v623 = vld [vmem:[%s355 + $0x4b8] sm:$0xff]
        %v624 = vld [vmem:[%s355 + $0x4c0] sm:$0xff]
        %v625 = vld [vmem:[%s355 + $0x4c8] sm:$0xff]
        %v626 = vld [vmem:[%s355 + $0x4d0] sm:$0xff]
        %v627 = vld [vmem:[%s355 + $0x4d8] sm:$0xff]
        %v628 = vld [vmem:[%s355 + $0x4e0] sm:$0xff]
        %v629 = vld [vmem:[%s355 + $0x4e8] sm:$0xff]
        %v630 = vld [vmem:[%s355 + $0x4f0] sm:$0xff]
        %v631 = vld [vmem:[%s355 + $0x4f8] sm:$0xff]
        %v632 = vld [vmem:[%s355 + $0x500] sm:$0xff]
        %v633 = vld [vmem:[%s355 + $0x508] sm:$0xff]
        %v634 = vld [vmem:[%s355 + $0x510] sm:$0xff]
        %v635 = vld [vmem:[%s355 + $0x518] sm:$0xff]
        %v636 = vld [vmem:[%s355 + $0x520] sm:$0xff]
        %v637 = vld [vmem:[%s355 + $0x528] sm:$0xff]
        %v638 = vld [vmem:[%s355 + $0x530] sm:$0xff]
        %v639 = vld [vmem:[%s355 + $0x538] sm:$0xff]
        %v640 = vld [vmem:[%s355 + $0x540] sm:$0xff]
        %v641 = vld [vmem:[%s355 + $0x548] sm:$0xff]
        %v642 = vld [vmem:[%s355 + $0x550] sm:$0xff]
        %v643 = vld [vmem:[%s355 + $0x558] sm:$0xff]
        %v644 = vld [vmem:[%s355 + $0x560] sm:$0xff]
        %v645 = vld [vmem:[%s355 + $0x568] sm:$0xff]
        %v646 = vld [vmem:[%s355 + $0x570] sm:$0xff]
        %v647 = vld [vmem:[%s355 + $0x578] sm:$0xff]
        %v648 = vld [vmem:[%s355 + $0x580] sm:$0xff]
        %v649 = vld [vmem:[%s355 + $0x588] sm:$0xff]
        %v650 = vld [vmem:[%s355 + $0x590] sm:$0xff]
        %v651 = vld [vmem:[%s355 + $0x598] sm:$0xff]
        %v652 = vld [vmem:[%s355 + $0x5a0] sm:$0xff]
        %v653 = vld [vmem:[%s355 + $0x5a8] sm:$0xff]
        %v654 = vld [vmem:[%s355 + $0x5b0] sm:$0xff]
        %v655 = vld [vmem:[%s355 + $0x5b8] sm:$0xff]
        %v656 = vld [vmem:[%s355 + $0x5c0] sm:$0xff]
        %v657 = vld [vmem:[%s355 + $0x5c8] sm:$0xff]
        %v658 = vld [vmem:[%s355 + $0x5d0] sm:$0xff]
        %v659 = vld [vmem:[%s355 + $0x5d8] sm:$0xff]
        %v660 = vld [vmem:[%s355 + $0x5e0] sm:$0xff]
        %v661 = vld [vmem:[%s355 + $0x5e8] sm:$0xff]
        %v662 = vld [vmem:[%s355 + $0x5f0] sm:$0xff]
        %v663 = vld [vmem:[%s355 + $0x5f8] sm:$0xff]
        %v664 = vld [vmem:[%s355 + $0x600] sm:$0xff]
        %v665 = vld [vmem:[%s355 + $0x608] sm:$0xff]
        %v666 = vld [vmem:[%s355 + $0x610] sm:$0xff]
        %v667 = vld [vmem:[%s355 + $0x618] sm:$0xff]
        %v668 = vld [vmem:[%s355 + $0x620] sm:$0xff]
        %v669 = vld [vmem:[%s355 + $0x628] sm:$0xff]
        %v670 = vld [vmem:[%s355 + $0x630] sm:$0xff]
        %v671 = vld [vmem:[%s355 + $0x638] sm:$0xff]
        %v672 = vld [vmem:[%s355 + $0x640] sm:$0xff]
        %v673 = vld [vmem:[%s355 + $0x648] sm:$0xff]
        %v674 = vld [vmem:[%s355 + $0x650] sm:$0xff]
        %v675 = vld [vmem:[%s355 + $0x658] sm:$0xff]
        %v676 = vld [vmem:[%s355 + $0x660] sm:$0xff]
        %v677 = vld [vmem:[%s355 + $0x668] sm:$0xff]
        %v678 = vld [vmem:[%s355 + $0x670] sm:$0xff]
        %v679 = vld [vmem:[%s355 + $0x678] sm:$0xff]
        %v680 = vld [vmem:[%s355 + $0x680] sm:$0xff]
        %v681 = vld [vmem:[%s355 + $0x688] sm:$0xff]
        %v682 = vld [vmem:[%s355 + $0x690] sm:$0xff]
        %v683 = vld [vmem:[%s355 + $0x698] sm:$0xff]
        %v684 = vld [vmem:[%s355 + $0x6a0] sm:$0xff]
        %v685 = vld [vmem:[%s355 + $0x6a8] sm:$0xff]
        %v686 = vld [vmem:[%s355 + $0x6b0] sm:$0xff]
        %v687 = vld [vmem:[%s355 + $0x6b8] sm:$0xff]
        %v688 = vld [vmem:[%s355 + $0x6c0] sm:$0xff]
        %v689 = vld [vmem:[%s355 + $0x6c8] sm:$0xff]
        %v690 = vld [vmem:[%s355 + $0x6d0] sm:$0xff]
        %v691 = vld [vmem:[%s355 + $0x6d8] sm:$0xff]
        %v692 = vld [vmem:[%s355 + $0x6e0] sm:$0xff]
        %v693 = vld [vmem:[%s355 + $0x6e8] sm:$0xff]
        %v694 = vld [vmem:[%s355 + $0x6f0] sm:$0xff]
        %v695 = vld [vmem:[%s355 + $0x6f8] sm:$0xff]
        %v696 = vld [vmem:[%s355 + $0x700] sm:$0xff]
        %v697 = vld [vmem:[%s355 + $0x708] sm:$0xff]
        %v698 = vld [vmem:[%s355 + $0x710] sm:$0xff]
        %v699 = vld [vmem:[%s355 + $0x718] sm:$0xff]
        %v700 = vld [vmem:[%s355 + $0x720] sm:$0xff]
        %v701 = vld [vmem:[%s355 + $0x728] sm:$0xff]
        %v702 = vld [vmem:[%s355 + $0x730] sm:$0xff]
        %v703 = vld [vmem:[%s355 + $0x738] sm:$0xff]
        %v704 = vld [vmem:[%s355 + $0x740] sm:$0xff]
        %v705 = vld [vmem:[%s355 + $0x748] sm:$0xff]
        %v706 = vld [vmem:[%s355 + $0x750] sm:$0xff]
        %v707 = vld [vmem:[%s355 + $0x758] sm:$0xff]
        %v708 = vld [vmem:[%s355 + $0x760] sm:$0xff]
        %v709 = vld [vmem:[%s355 + $0x768] sm:$0xff]
        %v710 = vld [vmem:[%s355 + $0x770] sm:$0xff]
        %v711 = vld [vmem:[%s355 + $0x778] sm:$0xff]
        %v712 = vld [vmem:[%s355 + $0x780] sm:$0xff]
        %v713 = vld [vmem:[%s355 + $0x788] sm:$0xff]
        %v714 = vld [vmem:[%s355 + $0x790] sm:$0xff]
        %v715 = vld [vmem:[%s355 + $0x798] sm:$0xff]
        %v716 = vld [vmem:[%s355 + $0x7a0] sm:$0xff]
        %v717 = vld [vmem:[%s355 + $0x7a8] sm:$0xff]
        %v718 = vld [vmem:[%s355 + $0x7b0] sm:$0xff]
        %v719 = vld [vmem:[%s355 + $0x7b8] sm:$0xff]
        %v720 = vld [vmem:[%s355 + $0x7c0] sm:$0xff]
        %v721 = vld [vmem:[%s355 + $0x7c8] sm:$0xff]
        %v722 = vld [vmem:[%s355 + $0x7d0] sm:$0xff]
        %v723 = vld [vmem:[%s355 + $0x7d8] sm:$0xff]
        %v724 = vld [vmem:[%s355 + $0x7e0] sm:$0xff]
        %v725 = vld [vmem:[%s355 + $0x7e8] sm:$0xff]
        %v726 = vld [vmem:[%s355 + $0x7f0] sm:$0xff]
        %v727 = vld [vmem:[%s355 + $0x7f8] sm:$0xff]
        %v728 = vld [vmem:[%s355 + $0x800] sm:$0xff]
        %v729 = vld [vmem:[%s355 + $0x808] sm:$0xff]
        %v730 = vld [vmem:[%s355 + $0x810] sm:$0xff]
        %v731 = vld [vmem:[%s355 + $0x818] sm:$0xff]
        %v732 = vld [vmem:[%s355 + $0x820] sm:$0xff]
        %v733 = vld [vmem:[%s355 + $0x828] sm:$0xff]
        %v734 = vld [vmem:[%s355 + $0x830] sm:$0xff]
        %v735 = vld [vmem:[%s355 + $0x838] sm:$0xff]
        %v736 = vld [vmem:[%s355 + $0x840] sm:$0xff]
        %v737 = vld [vmem:[%s355 + $0x848] sm:$0xff]
        %v738 = vld [vmem:[%s355 + $0x850] sm:$0xff]
        %v739 = vld [vmem:[%s355 + $0x858] sm:$0xff]
        %v740 = vld [vmem:[%s355 + $0x860] sm:$0xff]
        %v741 = vld [vmem:[%s355 + $0x868] sm:$0xff]
        %v742 = vld [vmem:[%s355 + $0x870] sm:$0xff]
        %v743 = vld [vmem:[%s355 + $0x878] sm:$0xff]
        %v744 = vld [vmem:[%s355 + $0x880] sm:$0xff]
        %v745 = vld [vmem:[%s355 + $0x888] sm:$0xff]
        %v746 = vld [vmem:[%s355 + $0x890] sm:$0xff]
        %v747 = vld [vmem:[%s355 + $0x898] sm:$0xff]
        %v748 = vld [vmem:[%s355 + $0x8a0] sm:$0xff]
        %v749 = vld [vmem:[%s355 + $0x8a8] sm:$0xff]
        %v750 = vld [vmem:[%s355 + $0x8b0] sm:$0xff]
        %v751 = vld [vmem:[%s355 + $0x8b8] sm:$0xff]
        %v752 = vld [vmem:[%s355 + $0x8c0] sm:$0xff]
        %v753 = vld [vmem:[%s355 + $0x8c8] sm:$0xff]
        %v754 = vld [vmem:[%s355 + $0x8d0] sm:$0xff]
        %v755 = vld [vmem:[%s355 + $0x8d8] sm:$0xff]
        %v756 = vld [vmem:[%s355 + $0x8e0] sm:$0xff]
        %v757 = vld [vmem:[%s355 + $0x8e8] sm:$0xff]
        %v758 = vld [vmem:[%s355 + $0x8f0] sm:$0xff]
        %v759 = vld [vmem:[%s355 + $0x8f8] sm:$0xff]
        %v760 = vld [vmem:[%s355 + $0x900] sm:$0xff]
        %v761 = vld [vmem:[%s355 + $0x908] sm:$0xff]
        %v762 = vld [vmem:[%s355 + $0x910] sm:$0xff]
        %v763 = vld [vmem:[%s355 + $0x918] sm:$0xff]
        %v764 = vld [vmem:[%s355 + $0x920] sm:$0xff]
        %v765 = vld [vmem:[%s355 + $0x928] sm:$0xff]
        %v766 = vld [vmem:[%s355 + $0x930] sm:$0xff]
        %v767 = vld [vmem:[%s355 + $0x938] sm:$0xff]
        %v768 = vld [vmem:[%s355 + $0x940] sm:$0xff]
        %v769 = vld [vmem:[%s355 + $0x948] sm:$0xff]
        %v770 = vld [vmem:[%s355 + $0x950] sm:$0xff]
        %v771 = vld [vmem:[%s355 + $0x958] sm:$0xff]
        %v772 = vld [vmem:[%s355 + $0x960] sm:$0xff]
        %v773 = vld [vmem:[%s355 + $0x968] sm:$0xff]
        %v774 = vld [vmem:[%s355 + $0x970] sm:$0xff]
        %v775 = vld [vmem:[%s355 + $0x978] sm:$0xff]
        %v776 = vld [vmem:[%s355 + $0x980] sm:$0xff]
        %v777 = vld [vmem:[%s355 + $0x988] sm:$0xff]
        %v778 = vld [vmem:[%s355 + $0x990] sm:$0xff]
        %v779 = vld [vmem:[%s355 + $0x998] sm:$0xff]
        %v780 = vld [vmem:[%s355 + $0x9a0] sm:$0xff]
        %v781 = vld [vmem:[%s355 + $0x9a8] sm:$0xff]
        %v782 = vld [vmem:[%s355 + $0x9b0] sm:$0xff]
        %v783 = vld [vmem:[%s355 + $0x9b8] sm:$0xff]
        %v784 = vld [vmem:[%s355 + $0x9c0] sm:$0xff]
        %v785 = vld [vmem:[%s355 + $0x9c8] sm:$0xff]
        %v786 = vld [vmem:[%s355 + $0x9d0] sm:$0xff]
        %v787 = vld [vmem:[%s355 + $0x9d8] sm:$0xff]
        %v788 = vld [vmem:[%s355 + $0x9e0] sm:$0xff]
        %v789 = vld [vmem:[%s355 + $0x9e8] sm:$0xff]
        %v790 = vld [vmem:[%s355 + $0x9f0] sm:$0xff]
        %v791 = vld [vmem:[%s355 + $0x9f8] sm:$0xff]
        %v792 = vld [vmem:[%s355 + $0xa00] sm:$0xff]
        %v793 = vld [vmem:[%s355 + $0xa08] sm:$0xff]
        %v794 = vld [vmem:[%s355 + $0xa10] sm:$0xff]
        %v795 = vld [vmem:[%s355 + $0xa18] sm:$0xff]
        %v796 = vld [vmem:[%s355 + $0xa20] sm:$0xff]
        %v797 = vld [vmem:[%s355 + $0xa28] sm:$0xff]
        %v798 = vld [vmem:[%s355 + $0xa30] sm:$0xff]
        %v799 = vld [vmem:[%s355 + $0xa38] sm:$0xff]
        %v800 = vld [vmem:[%s355 + $0xa40] sm:$0xff]
        %v801 = vld [vmem:[%s355 + $0xa48] sm:$0xff]
        %v802 = vld [vmem:[%s355 + $0xa50] sm:$0xff]
        %v803 = vld [vmem:[%s355 + $0xa58] sm:$0xff]
        %v804 = vld [vmem:[%s355 + $0xa60] sm:$0xff]
        %v805 = vld [vmem:[%s355 + $0xa68] sm:$0xff]
        %v806 = vld [vmem:[%s355 + $0xa70] sm:$0xff]
        %v807 = vld [vmem:[%s355 + $0xa78] sm:$0xff]
        %v808 = vld [vmem:[%s355 + $0xa80] sm:$0xff]
        %v809 = vld [vmem:[%s355 + $0xa88] sm:$0xff]
        %v810 = vld [vmem:[%s355 + $0xa90] sm:$0xff]
        %v811 = vld [vmem:[%s355 + $0xa98] sm:$0xff]
        %v812 = vld [vmem:[%s355 + $0xaa0] sm:$0xff]
        %v813 = vld [vmem:[%s355 + $0xaa8] sm:$0xff]
        %v814 = vld [vmem:[%s355 + $0xab0] sm:$0xff]
        %v815 = vld [vmem:[%s355 + $0xab8] sm:$0xff]
        %v816 = vld [vmem:[%s355 + $0xac0] sm:$0xff]
        %v817 = vld [vmem:[%s355 + $0xac8] sm:$0xff]
        %v818 = vld [vmem:[%s355 + $0xad0] sm:$0xff]
        %v819 = vld [vmem:[%s355 + $0xad8] sm:$0xff]
        %v820 = vld [vmem:[%s355 + $0xae0] sm:$0xff]
        %v821 = vld [vmem:[%s355 + $0xae8] sm:$0xff]
        %v822 = vld [vmem:[%s355 + $0xaf0] sm:$0xff]
        %v823 = vld [vmem:[%s355 + $0xaf8] sm:$0xff]
        %v824 = vld [vmem:[%s355 + $0xb00] sm:$0xff]
        %v825 = vld [vmem:[%s355 + $0xb08] sm:$0xff]
        %v826 = vld [vmem:[%s355 + $0xb10] sm:$0xff]
        %v827 = vld [vmem:[%s355 + $0xb18] sm:$0xff]
        %v828 = vld [vmem:[%s355 + $0xb20] sm:$0xff]
        %v829 = vld [vmem:[%s355 + $0xb28] sm:$0xff]
        %v830 = vld [vmem:[%s355 + $0xb30] sm:$0xff]
        %v831 = vld [vmem:[%s355 + $0xb38] sm:$0xff]
        %v832 = vld [vmem:[%s355 + $0xb40] sm:$0xff]
        %v833 = vld [vmem:[%s355 + $0xb48] sm:$0xff]
        %v834 = vld [vmem:[%s355 + $0xb50] sm:$0xff]
        %v835 = vld [vmem:[%s355 + $0xb58] sm:$0xff]
        %v836 = vld [vmem:[%s355 + $0xb60] sm:$0xff]
        %v837 = vld [vmem:[%s355 + $0xb68] sm:$0xff]
        %v838 = vld [vmem:[%s355 + $0xb70] sm:$0xff]
        %v839 = vld [vmem:[%s355 + $0xb78] sm:$0xff]
        %v840 = vld [vmem:[%s355 + $0xb80] sm:$0xff]
        %v841 = vld [vmem:[%s355 + $0xb88] sm:$0xff]
        %v842 = vld [vmem:[%s355 + $0xb90] sm:$0xff]
        %v843 = vld [vmem:[%s355 + $0xb98] sm:$0xff]
        %v844 = vld [vmem:[%s355 + $0xba0] sm:$0xff]
        %v845 = vld [vmem:[%s355 + $0xba8] sm:$0xff]
        %v846 = vld [vmem:[%s355 + $0xbb0] sm:$0xff]
        %v847 = vld [vmem:[%s355 + $0xbb8] sm:$0xff]
        %v848 = vld [vmem:[%s355 + $0xbc0] sm:$0xff]
        %v849 = vld [vmem:[%s355 + $0xbc8] sm:$0xff]
        %v850 = vld [vmem:[%s355 + $0xbd0] sm:$0xff]
        %v851 = vld [vmem:[%s355 + $0xbd8] sm:$0xff]
        %v852 = vld [vmem:[%s355 + $0xbe0] sm:$0xff]
        %v853 = vld [vmem:[%s355 + $0xbe8] sm:$0xff]
        %v854 = vld [vmem:[%s355 + $0xbf0] sm:$0xff]
        %v855 = vld [vmem:[%s355 + $0xbf8] sm:$0xff]
        %v856 = vld [vmem:[%s355 + $0xc00] sm:$0xff]
        %v857 = vld [vmem:[%s355 + $0xc08] sm:$0xff]
        %v858 = vld [vmem:[%s355 + $0xc10] sm:$0xff]
        %v859 = vld [vmem:[%s355 + $0xc18] sm:$0xff]
        %v860 = vld [vmem:[%s355 + $0xc20] sm:$0xff]
        %v861 = vld [vmem:[%s355 + $0xc28] sm:$0xff]
        %v862 = vld [vmem:[%s355 + $0xc30] sm:$0xff]
        %v863 = vld [vmem:[%s355 + $0xc38] sm:$0xff]
        %v864 = vld [vmem:[%s355 + $0xc40] sm:$0xff]
        %v865 = vld [vmem:[%s355 + $0xc48] sm:$0xff]
        %v866 = vld [vmem:[%s355 + $0xc50] sm:$0xff]
        %v867 = vld [vmem:[%s355 + $0xc58] sm:$0xff]
        %v868 = vld [vmem:[%s355 + $0xc60] sm:$0xff]
        %v869 = vld [vmem:[%s355 + $0xc68] sm:$0xff]
        %v870 = vld [vmem:[%s355 + $0xc70] sm:$0xff]
        %v871 = vld [vmem:[%s355 + $0xc78] sm:$0xff]
        %v872 = vld [vmem:[%s355 + $0xc80] sm:$0xff]
        %v873 = vld [vmem:[%s355 + $0xc88] sm:$0xff]
        %v874 = vld [vmem:[%s355 + $0xc90] sm:$0xff]
        %v875 = vld [vmem:[%s355 + $0xc98] sm:$0xff]
        %v876 = vld [vmem:[%s355 + $0xca0] sm:$0xff]
        %v877 = vld [vmem:[%s355 + $0xca8] sm:$0xff]
        %v878 = vld [vmem:[%s355 + $0xcb0] sm:$0xff]
        %v879 = vld [vmem:[%s355 + $0xcb8] sm:$0xff]
        %v880 = vld [vmem:[%s355 + $0xcc0] sm:$0xff]
        %v881 = vld [vmem:[%s355 + $0xcc8] sm:$0xff]
        %v882 = vld [vmem:[%s355 + $0xcd0] sm:$0xff]
        %v883 = vld [vmem:[%s355 + $0xcd8] sm:$0xff]
        %v884 = vld [vmem:[%s355 + $0xce0] sm:$0xff]
        %v885 = vld [vmem:[%s355 + $0xce8] sm:$0xff]
        %v886 = vld [vmem:[%s355 + $0xcf0] sm:$0xff]
        %v887 = vld [vmem:[%s355 + $0xcf8] sm:$0xff]
        %v888 = vld [vmem:[%s355 + $0xd00] sm:$0xff]
        %v889 = vld [vmem:[%s355 + $0xd08] sm:$0xff]
        %v890 = vld [vmem:[%s355 + $0xd10] sm:$0xff]
        %v891 = vld [vmem:[%s355 + $0xd18] sm:$0xff]
        %v892 = vld [vmem:[%s355 + $0xd20] sm:$0xff]
        %v893 = vld [vmem:[%s355 + $0xd28] sm:$0xff]
        %v894 = vld [vmem:[%s355 + $0xd30] sm:$0xff]
        %v895 = vld [vmem:[%s355 + $0xd38] sm:$0xff]
        %v896 = vld [vmem:[%s355 + $0xd40] sm:$0xff]
        %v897 = vld [vmem:[%s355 + $0xd48] sm:$0xff]
        %v898 = vld [vmem:[%s355 + $0xd50] sm:$0xff]
        %v899 = vld [vmem:[%s355 + $0xd58] sm:$0xff]
        %v900 = vld [vmem:[%s355 + $0xd60] sm:$0xff]
        %v901 = vld [vmem:[%s355 + $0xd68] sm:$0xff]
        %v902 = vld [vmem:[%s355 + $0xd70] sm:$0xff]
        %v903 = vld [vmem:[%s355 + $0xd78] sm:$0xff]
        %v904 = vld [vmem:[%s355 + $0xd80] sm:$0xff]
        %v905 = vld [vmem:[%s355 + $0xd88] sm:$0xff]
        %v906 = vld [vmem:[%s355 + $0xd90] sm:$0xff]
        %v907 = vld [vmem:[%s355 + $0xd98] sm:$0xff]
        %v908 = vld [vmem:[%s355 + $0xda0] sm:$0xff]
        %v909 = vld [vmem:[%s355 + $0xda8] sm:$0xff]
        %v910 = vld [vmem:[%s355 + $0xdb0] sm:$0xff]
        %v911 = vld [vmem:[%s355 + $0xdb8] sm:$0xff]
        %v912 = vld [vmem:[%s355 + $0xdc0] sm:$0xff]
        %v913 = vld [vmem:[%s355 + $0xdc8] sm:$0xff]
        %v914 = vld [vmem:[%s355 + $0xdd0] sm:$0xff]
        %v915 = vld [vmem:[%s355 + $0xdd8] sm:$0xff]
        %v916 = vld [vmem:[%s355 + $0xde0] sm:$0xff]
        %v917 = vld [vmem:[%s355 + $0xde8] sm:$0xff]
        %v918 = vld [vmem:[%s355 + $0xdf0] sm:$0xff]
        %v919 = vld [vmem:[%s355 + $0xdf8] sm:$0xff]
        %v920 = vld [vmem:[%s355 + $0xe00] sm:$0xff]
        %v921 = vld [vmem:[%s355 + $0xe08] sm:$0xff]
        %v922 = vld [vmem:[%s355 + $0xe10] sm:$0xff]
        %v923 = vld [vmem:[%s355 + $0xe18] sm:$0xff]
        %v924 = vld [vmem:[%s355 + $0xe20] sm:$0xff]
        %v925 = vld [vmem:[%s355 + $0xe28] sm:$0xff]
        %v926 = vld [vmem:[%s355 + $0xe30] sm:$0xff]
        %v927 = vld [vmem:[%s355 + $0xe38] sm:$0xff]
        %v928 = vld [vmem:[%s355 + $0xe40] sm:$0xff]
        %v929 = vld [vmem:[%s355 + $0xe48] sm:$0xff]
        %v930 = vld [vmem:[%s355 + $0xe50] sm:$0xff]
        %v931 = vld [vmem:[%s355 + $0xe58] sm:$0xff]
        %v932 = vld [vmem:[%s355 + $0xe60] sm:$0xff]
        %v933 = vld [vmem:[%s355 + $0xe68] sm:$0xff]
        %v934 = vld [vmem:[%s355 + $0xe70] sm:$0xff]
        %v935 = vld [vmem:[%s355 + $0xe78] sm:$0xff]
        %v936 = vld [vmem:[%s355 + $0xe80] sm:$0xff]
        %v937 = vld [vmem:[%s355 + $0xe88] sm:$0xff]
        %v938 = vld [vmem:[%s355 + $0xe90] sm:$0xff]
        %v939 = vld [vmem:[%s355 + $0xe98] sm:$0xff]
        %v940 = vld [vmem:[%s355 + $0xea0] sm:$0xff]
        %v941 = vld [vmem:[%s355 + $0xea8] sm:$0xff]
        %v942 = vld [vmem:[%s355 + $0xeb0] sm:$0xff]
        %v943 = vld [vmem:[%s355 + $0xeb8] sm:$0xff]
        %v944 = vld [vmem:[%s355 + $0xec0] sm:$0xff]
        %v945 = vld [vmem:[%s355 + $0xec8] sm:$0xff]
        %v946 = vld [vmem:[%s355 + $0xed0] sm:$0xff]
        %v947 = vld [vmem:[%s355 + $0xed8] sm:$0xff]
        %v948 = vld [vmem:[%s355 + $0xee0] sm:$0xff]
        %v949 = vld [vmem:[%s355 + $0xee8] sm:$0xff]
        %v950 = vld [vmem:[%s355 + $0xef0] sm:$0xff]
        %v951 = vld [vmem:[%s355 + $0xef8] sm:$0xff]
        %v952 = vld [vmem:[%s355 + $0xf00] sm:$0xff]
        %v953 = vld [vmem:[%s355 + $0xf08] sm:$0xff]
        %v954 = vld [vmem:[%s355 + $0xf10] sm:$0xff]
        %v955 = vld [vmem:[%s355 + $0xf18] sm:$0xff]
        %v956 = vld [vmem:[%s355 + $0xf20] sm:$0xff]
        %v957 = vld [vmem:[%s355 + $0xf28] sm:$0xff]
        %v958 = vld [vmem:[%s355 + $0xf30] sm:$0xff]
        %v959 = vld [vmem:[%s355 + $0xf38] sm:$0xff]
        %v960 = vld [vmem:[%s355 + $0xf40] sm:$0xff]
        %v961 = vld [vmem:[%s355 + $0xf48] sm:$0xff]
        %v962 = vld [vmem:[%s355 + $0xf50] sm:$0xff]
        %v963 = vld [vmem:[%s355 + $0xf58] sm:$0xff]
        %v964 = vld [vmem:[%s355 + $0xf60] sm:$0xff]
        %v965 = vld [vmem:[%s355 + $0xf68] sm:$0xff]
        %v966 = vld [vmem:[%s355 + $0xf70] sm:$0xff]
        %v967 = vld [vmem:[%s355 + $0xf78] sm:$0xff]
        %v968 = vld [vmem:[%s355 + $0xf80] sm:$0xff]
        %v969 = vld [vmem:[%s355 + $0xf88] sm:$0xff]
        %v970 = vld [vmem:[%s355 + $0xf90] sm:$0xff]
        %v971 = vld [vmem:[%s355 + $0xf98] sm:$0xff]
        %v972 = vld [vmem:[%s355 + $0xfa0] sm:$0xff]
        %v973 = vld [vmem:[%s355 + $0xfa8] sm:$0xff]
        %v974 = vld [vmem:[%s355 + $0xfb0] sm:$0xff]
        %v975 = vld [vmem:[%s355 + $0xfb8] sm:$0xff]
        %v976 = vld [vmem:[%s355 + $0xfc0] sm:$0xff]
        %v977 = vld [vmem:[%s355 + $0xfc8] sm:$0xff]
        %v978 = vld [vmem:[%s355 + $0xfd0] sm:$0xff]
        %v979 = vld [vmem:[%s355 + $0xfd8] sm:$0xff]
        %v980 = vld [vmem:[%s355 + $0xfe0] sm:$0xff]
        %v981 = vld [vmem:[%s355 + $0xfe8] sm:$0xff]
        %v982 = vld [vmem:[%s355 + $0xff0] sm:$0xff]
        %v983 = vld [vmem:[%s355 + $0xff8] sm:$0xff]
        %v984 = vld [vmem:[%s355 + $0x1000] sm:$0xff]
        %v985 = vld [vmem:[%s355 + $0x1008] sm:$0xff]
        %v986 = vld [vmem:[%s355 + $0x1010] sm:$0xff]
        %v987 = vld [vmem:[%s355 + $0x1018] sm:$0xff]
        %v988 = vld [vmem:[%s355 + $0x1020] sm:$0xff]
        %v989 = vld [vmem:[%s355 + $0x1028] sm:$0xff]
        %v990 = vld [vmem:[%s355 + $0x1030] sm:$0xff]
        %v991 = vld [vmem:[%s355 + $0x1038] sm:$0xff]
        %v992 = vld [vmem:[%s355 + $0x1040] sm:$0xff]
        %v993 = vld [vmem:[%s355 + $0x1048] sm:$0xff]
        %v994 = vld [vmem:[%s355 + $0x1050] sm:$0xff]
        %v995 = vld [vmem:[%s355 + $0x1058] sm:$0xff]
        %v996 = vld [vmem:[%s355 + $0x1060] sm:$0xff]
        %v997 = vld [vmem:[%s355 + $0x1068] sm:$0xff]
        %v998 = vld [vmem:[%s355 + $0x1070] sm:$0xff]
        %v999 = vld [vmem:[%s355 + $0x1078] sm:$0xff]
        %v1000 = vld [vmem:[%s355 + $0x1080] sm:$0xff]
        %v1001 = vld [vmem:[%s355 + $0x1088] sm:$0xff]
        %v1002 = vld [vmem:[%s355 + $0x1090] sm:$0xff]
        %v1003 = vld [vmem:[%s355 + $0x1098] sm:$0xff]
        %v1004 = vld [vmem:[%s355 + $0x10a0] sm:$0xff]
        %v1005 = vld [vmem:[%s355 + $0x10a8] sm:$0xff]
        %v1006 = vld [vmem:[%s355 + $0x10b0] sm:$0xff]
        %v1007 = vld [vmem:[%s355 + $0x10b8] sm:$0xff]
        %v1008 = vld [vmem:[%s355 + $0x10c0] sm:$0xff]
        %v1009 = vld [vmem:[%s355 + $0x10c8] sm:$0xff]
        %v1010 = vld [vmem:[%s355 + $0x10d0] sm:$0xff]
        %v1011 = vld [vmem:[%s355 + $0x10d8] sm:$0xff]
        %v1012 = vld [vmem:[%s355 + $0x10e0] sm:$0xff]
        %v1013 = vld [vmem:[%s355 + $0x10e8] sm:$0xff]
        %v1014 = vld [vmem:[%s355 + $0x10f0] sm:$0xff]
        %v1015 = vld [vmem:[%s355 + $0x10f8] sm:$0xff]
        %v1016 = vld [vmem:[%s355 + $0x1100] sm:$0xff]
        %v1017 = vld [vmem:[%s355 + $0x1108] sm:$0xff]
        %v1018 = vld [vmem:[%s355 + $0x1110] sm:$0xff]
        %v1019 = vld [vmem:[%s355 + $0x1118] sm:$0xff]
        %v1020 = vld [vmem:[%s355 + $0x1120] sm:$0xff]
        %v1021 = vld [vmem:[%s355 + $0x1128] sm:$0xff]
        %v1022 = vld [vmem:[%s355 + $0x1130] sm:$0xff]
        %v1023 = vld [vmem:[%s355 + $0x1138] sm:$0xff]
        %v1024 = vld [vmem:[%s355 + $0x1140] sm:$0xff]
        %v1025 = vld [vmem:[%s355 + $0x1148] sm:$0xff]
        %v1026 = vld [vmem:[%s355 + $0x1150] sm:$0xff]
        %v1027 = vld [vmem:[%s355 + $0x1158] sm:$0xff]
        %v1028 = vld [vmem:[%s355 + $0x1160] sm:$0xff]
        %v1029 = vld [vmem:[%s355 + $0x1168] sm:$0xff]
        %v1030 = vld [vmem:[%s355 + $0x1170] sm:$0xff]
        %v1031 = vld [vmem:[%s355 + $0x1178] sm:$0xff]
        %v1032 = vld [vmem:[%s355 + $0x1180] sm:$0xff]
        %v1033 = vld [vmem:[%s355 + $0x1188] sm:$0xff]
        %v1034 = vld [vmem:[%s355 + $0x1190] sm:$0xff]
        %v1035 = vld [vmem:[%s355 + $0x1198] sm:$0xff]
        %v1036 = vld [vmem:[%s355 + $0x11a0] sm:$0xff]
        %v1037 = vld [vmem:[%s355 + $0x11a8] sm:$0xff]
        %v1038 = vld [vmem:[%s355 + $0x11b0] sm:$0xff]
        %v1039 = vld [vmem:[%s355 + $0x11b8] sm:$0xff]
        %v1040 = vld [vmem:[%s355 + $0x11c0] sm:$0xff]
        %v1041 = vld [vmem:[%s355 + $0x11c8] sm:$0xff]
        %v1042 = vld [vmem:[%s355 + $0x11d0] sm:$0xff]
        %v1043 = vld [vmem:[%s355 + $0x11d8] sm:$0xff]
        %v1044 = vld [vmem:[%s355 + $0x11e0] sm:$0xff]
        %v1045 = vld [vmem:[%s355 + $0x11e8] sm:$0xff]
        %v1046 = vld [vmem:[%s355 + $0x11f0] sm:$0xff]
        %v1047 = vld [vmem:[%s355 + $0x11f8] sm:$0xff]
        %v1048 = vld [vmem:[%s355 + $0x1200] sm:$0xff]
        %v1049 = vld [vmem:[%s355 + $0x1208] sm:$0xff]
        %v1050 = vld [vmem:[%s355 + $0x1210] sm:$0xff]
        %v1051 = vld [vmem:[%s355 + $0x1218] sm:$0xff]
        %v1052 = vld [vmem:[%s355 + $0x1220] sm:$0xff]
        %v1053 = vld [vmem:[%s355 + $0x1228] sm:$0xff]
        %v1054 = vld [vmem:[%s355 + $0x1230] sm:$0xff]
        %v1055 = vld [vmem:[%s355 + $0x1238] sm:$0xff]
        %v1056 = vld [vmem:[%s355 + $0x1240] sm:$0xff]
        %v1057 = vld [vmem:[%s355 + $0x1248] sm:$0xff]
        %v1058 = vld [vmem:[%s355 + $0x1250] sm:$0xff]
        %v1059 = vld [vmem:[%s355 + $0x1258] sm:$0xff]
        %v1060 = vld [vmem:[%s355 + $0x1260] sm:$0xff]
        %v1061 = vld [vmem:[%s355 + $0x1268] sm:$0xff]
        %v1062 = vld [vmem:[%s355 + $0x1270] sm:$0xff]
        %v1063 = vld [vmem:[%s355 + $0x1278] sm:$0xff]
        %v1064 = vld [vmem:[%s355 + $0x1280] sm:$0xff]
        %v1065 = vld [vmem:[%s355 + $0x1288] sm:$0xff]
        %v1066 = vld [vmem:[%s355 + $0x1290] sm:$0xff]
        %v1067 = vld [vmem:[%s355 + $0x1298] sm:$0xff]
        %v1068 = vld [vmem:[%s355 + $0x12a0] sm:$0xff]
        %v1069 = vld [vmem:[%s355 + $0x12a8] sm:$0xff]
        %v1070 = vld [vmem:[%s355 + $0x12b0] sm:$0xff]
        %v1071 = vld [vmem:[%s355 + $0x12b8] sm:$0xff]
        %v1072 = vld [vmem:[%s355 + $0x12c0] sm:$0xff]
        %v1073 = vld [vmem:[%s355 + $0x12c8] sm:$0xff]
        %v1074 = vld [vmem:[%s355 + $0x12d0] sm:$0xff]
        %v1075 = vld [vmem:[%s355 + $0x12d8] sm:$0xff]
        %v1076 = vld [vmem:[%s355 + $0x12e0] sm:$0xff]
        %v1077 = vld [vmem:[%s355 + $0x12e8] sm:$0xff]
        %v1078 = vld [vmem:[%s355 + $0x12f0] sm:$0xff]
        %v1079 = vld [vmem:[%s355 + $0x12f8] sm:$0xff]
        %v1080 = vld [vmem:[%s355 + $0x1300] sm:$0xff]
        %v1081 = vld [vmem:[%s355 + $0x1308] sm:$0xff]
        %v1082 = vld [vmem:[%s355 + $0x1310] sm:$0xff]
        %v1083 = vld [vmem:[%s355 + $0x1318] sm:$0xff]
        %v1084 = vld [vmem:[%s355 + $0x1320] sm:$0xff]
        %v1085 = vld [vmem:[%s355 + $0x1328] sm:$0xff]
        %v1086 = vld [vmem:[%s355 + $0x1330] sm:$0xff]
        %v1087 = vld [vmem:[%s355 + $0x1338] sm:$0xff]
        %v1088 = vld [vmem:[%s355 + $0x1340] sm:$0xff]
        %v1089 = vld [vmem:[%s355 + $0x1348] sm:$0xff]
        %v1090 = vld [vmem:[%s355 + $0x1350] sm:$0xff]
        %v1091 = vld [vmem:[%s355 + $0x1358] sm:$0xff]
        %v1092 = vld [vmem:[%s355 + $0x1360] sm:$0xff]
        %v1093 = vld [vmem:[%s355 + $0x1368] sm:$0xff]
        %v1094 = vld [vmem:[%s355 + $0x1370] sm:$0xff]
        %v1095 = vld [vmem:[%s355 + $0x1378] sm:$0xff]
        %v1096 = vld [vmem:[%s355 + $0x1380] sm:$0xff]
        %v1097 = vld [vmem:[%s355 + $0x1388] sm:$0xff]
        %v1098 = vld [vmem:[%s355 + $0x1390] sm:$0xff]
        %v1099 = vld [vmem:[%s355 + $0x1398] sm:$0xff]
        %v1100 = vld [vmem:[%s355 + $0x13a0] sm:$0xff]
        %v1101 = vld [vmem:[%s355 + $0x13a8] sm:$0xff]
        %v1102 = vld [vmem:[%s355 + $0x13b0] sm:$0xff]
        %v1103 = vld [vmem:[%s355 + $0x13b8] sm:$0xff]
        %v1104 = vld [vmem:[%s355 + $0x13c0] sm:$0xff]
        %v1105 = vld [vmem:[%s355 + $0x13c8] sm:$0xff]
        %v1106 = vld [vmem:[%s355 + $0x13d0] sm:$0xff]
        %v1107 = vld [vmem:[%s355 + $0x13d8] sm:$0xff]
        %v1108 = vld [vmem:[%s355 + $0x13e0] sm:$0xff]
        %v1109 = vld [vmem:[%s355 + $0x13e8] sm:$0xff]
        %v1110 = vld [vmem:[%s355 + $0x13f0] sm:$0xff]
        %v1111 = vld [vmem:[%s355 + $0x13f8] sm:$0xff]
        %v1112 = vunpack.c.l.s8.bf16 %v472
        %v1113 = vunpack.c.l.s8.bf16 %v473
        %v1114 = vunpack.c.l.s8.bf16 %v474
        %v1115 = vunpack.c.l.s8.bf16 %v475
        %v1116 = vunpack.c.l.s8.bf16 %v476
        %v1117 = vunpack.c.l.s8.bf16 %v477
        %v1118 = vunpack.c.l.s8.bf16 %v478
        %v1119 = vunpack.c.l.s8.bf16 %v479
        %v1120 = vunpack.c.h.s8.bf16 %v472
        %v1121 = vunpack.c.h.s8.bf16 %v473
        %v1122 = vunpack.c.h.s8.bf16 %v474
        %v1123 = vunpack.c.h.s8.bf16 %v475
        %v1124 = vunpack.c.h.s8.bf16 %v476
        %v1125 = vunpack.c.h.s8.bf16 %v477
        %v1126 = vunpack.c.h.s8.bf16 %v478
        %v1127 = vunpack.c.h.s8.bf16 %v479
        %v1128 = vunpack.c.l.s8.bf16 %v480
        %v1129 = vunpack.c.l.s8.bf16 %v481
        %v1130 = vunpack.c.l.s8.bf16 %v482
        %v1131 = vunpack.c.l.s8.bf16 %v483
        %v1132 = vunpack.c.l.s8.bf16 %v484
        %v1133 = vunpack.c.l.s8.bf16 %v485
        %v1134 = vunpack.c.l.s8.bf16 %v486
        %v1135 = vunpack.c.l.s8.bf16 %v487
        %v1136 = vunpack.c.h.s8.bf16 %v480
        %v1137 = vunpack.c.h.s8.bf16 %v481
        %v1138 = vunpack.c.h.s8.bf16 %v482
        %v1139 = vunpack.c.h.s8.bf16 %v483
        %v1140 = vunpack.c.h.s8.bf16 %v484
        %v1141 = vunpack.c.h.s8.bf16 %v485
        %v1142 = vunpack.c.h.s8.bf16 %v486
        %v1143 = vunpack.c.h.s8.bf16 %v487
        %v1144 = vunpack.c.l.s8.bf16 %v488
        %v1145 = vunpack.c.l.s8.bf16 %v489
        %v1146 = vunpack.c.l.s8.bf16 %v490
        %v1147 = vunpack.c.l.s8.bf16 %v491
        %v1148 = vunpack.c.l.s8.bf16 %v492
        %v1149 = vunpack.c.l.s8.bf16 %v493
        %v1150 = vunpack.c.l.s8.bf16 %v494
        %v1151 = vunpack.c.l.s8.bf16 %v495
        %v1152 = vunpack.c.h.s8.bf16 %v488
        %v1153 = vunpack.c.h.s8.bf16 %v489
        %v1154 = vunpack.c.h.s8.bf16 %v490
        %v1155 = vunpack.c.h.s8.bf16 %v491
        %v1156 = vunpack.c.h.s8.bf16 %v492
        %v1157 = vunpack.c.h.s8.bf16 %v493
        %v1158 = vunpack.c.h.s8.bf16 %v494
        %v1159 = vunpack.c.h.s8.bf16 %v495
        %v1160 = vunpack.c.l.s8.bf16 %v496
        %v1161 = vunpack.c.l.s8.bf16 %v497
        %v1162 = vunpack.c.l.s8.bf16 %v498
        %v1163 = vunpack.c.l.s8.bf16 %v499
        %v1164 = vunpack.c.l.s8.bf16 %v500
        %v1165 = vunpack.c.l.s8.bf16 %v501
        %v1166 = vunpack.c.l.s8.bf16 %v502
        %v1167 = vunpack.c.l.s8.bf16 %v503
        %v1168 = vunpack.c.h.s8.bf16 %v496
        %v1169 = vunpack.c.h.s8.bf16 %v497
        %v1170 = vunpack.c.h.s8.bf16 %v498
        %v1171 = vunpack.c.h.s8.bf16 %v499
        %v1172 = vunpack.c.h.s8.bf16 %v500
        %v1173 = vunpack.c.h.s8.bf16 %v501
        %v1174 = vunpack.c.h.s8.bf16 %v502
        %v1175 = vunpack.c.h.s8.bf16 %v503
        %v1176 = vunpack.c.l.s8.bf16 %v504
        %v1177 = vunpack.c.l.s8.bf16 %v505
        %v1178 = vunpack.c.l.s8.bf16 %v506
        %v1179 = vunpack.c.l.s8.bf16 %v507
        %v1180 = vunpack.c.l.s8.bf16 %v508
        %v1181 = vunpack.c.l.s8.bf16 %v509
        %v1182 = vunpack.c.l.s8.bf16 %v510
        %v1183 = vunpack.c.l.s8.bf16 %v511
        %v1184 = vunpack.c.h.s8.bf16 %v504
        %v1185 = vunpack.c.h.s8.bf16 %v505
        %v1186 = vunpack.c.h.s8.bf16 %v506
        %v1187 = vunpack.c.h.s8.bf16 %v507
        %v1188 = vunpack.c.h.s8.bf16 %v508
        %v1189 = vunpack.c.h.s8.bf16 %v509
        %v1190 = vunpack.c.h.s8.bf16 %v510
        %v1191 = vunpack.c.h.s8.bf16 %v511
        %v1192 = vunpack.c.l.s8.bf16 %v512
        %v1193 = vunpack.c.l.s8.bf16 %v513
        %v1194 = vunpack.c.l.s8.bf16 %v514
        %v1195 = vunpack.c.l.s8.bf16 %v515
        %v1196 = vunpack.c.l.s8.bf16 %v516
        %v1197 = vunpack.c.l.s8.bf16 %v517
        %v1198 = vunpack.c.l.s8.bf16 %v518
        %v1199 = vunpack.c.l.s8.bf16 %v519
        %v1200 = vunpack.c.h.s8.bf16 %v512
        %v1201 = vunpack.c.h.s8.bf16 %v513
        %v1202 = vunpack.c.h.s8.bf16 %v514
        %v1203 = vunpack.c.h.s8.bf16 %v515
        %v1204 = vunpack.c.h.s8.bf16 %v516
        %v1205 = vunpack.c.h.s8.bf16 %v517
        %v1206 = vunpack.c.h.s8.bf16 %v518
        %v1207 = vunpack.c.h.s8.bf16 %v519
        %v1208 = vunpack.c.l.s8.bf16 %v520
        %v1209 = vunpack.c.l.s8.bf16 %v521
        %v1210 = vunpack.c.l.s8.bf16 %v522
        %v1211 = vunpack.c.l.s8.bf16 %v523
        %v1212 = vunpack.c.l.s8.bf16 %v524
        %v1213 = vunpack.c.l.s8.bf16 %v525
        %v1214 = vunpack.c.l.s8.bf16 %v526
        %v1215 = vunpack.c.l.s8.bf16 %v527
        %v1216 = vunpack.c.h.s8.bf16 %v520
        %v1217 = vunpack.c.h.s8.bf16 %v521
        %v1218 = vunpack.c.h.s8.bf16 %v522
        %v1219 = vunpack.c.h.s8.bf16 %v523
        %v1220 = vunpack.c.h.s8.bf16 %v524
        %v1221 = vunpack.c.h.s8.bf16 %v525
        %v1222 = vunpack.c.h.s8.bf16 %v526
        %v1223 = vunpack.c.h.s8.bf16 %v527
        %v1224 = vunpack.c.l.s8.bf16 %v528
        %v1225 = vunpack.c.l.s8.bf16 %v529
        %v1226 = vunpack.c.l.s8.bf16 %v530
        %v1227 = vunpack.c.l.s8.bf16 %v531
        %v1228 = vunpack.c.l.s8.bf16 %v532
        %v1229 = vunpack.c.l.s8.bf16 %v533
        %v1230 = vunpack.c.l.s8.bf16 %v534
        %v1231 = vunpack.c.l.s8.bf16 %v535
        %v1232 = vunpack.c.h.s8.bf16 %v528
        %v1233 = vunpack.c.h.s8.bf16 %v529
        %v1234 = vunpack.c.h.s8.bf16 %v530
        %v1235 = vunpack.c.h.s8.bf16 %v531
        %v1236 = vunpack.c.h.s8.bf16 %v532
        %v1237 = vunpack.c.h.s8.bf16 %v533
        %v1238 = vunpack.c.h.s8.bf16 %v534
        %v1239 = vunpack.c.h.s8.bf16 %v535
        %v1240 = vunpack.c.l.s8.bf16 %v536
        %v1241 = vunpack.c.l.s8.bf16 %v537
        %v1242 = vunpack.c.l.s8.bf16 %v538
        %v1243 = vunpack.c.l.s8.bf16 %v539
        %v1244 = vunpack.c.l.s8.bf16 %v540
        %v1245 = vunpack.c.l.s8.bf16 %v541
        %v1246 = vunpack.c.l.s8.bf16 %v542
        %v1247 = vunpack.c.l.s8.bf16 %v543
        %v1248 = vunpack.c.h.s8.bf16 %v536
        %v1249 = vunpack.c.h.s8.bf16 %v537
        %v1250 = vunpack.c.h.s8.bf16 %v538
        %v1251 = vunpack.c.h.s8.bf16 %v539
        %v1252 = vunpack.c.h.s8.bf16 %v540
        %v1253 = vunpack.c.h.s8.bf16 %v541
        %v1254 = vunpack.c.h.s8.bf16 %v542
        %v1255 = vunpack.c.h.s8.bf16 %v543
        %v1256 = vunpack.c.l.s8.bf16 %v544
        %v1257 = vunpack.c.l.s8.bf16 %v545
        %v1258 = vunpack.c.l.s8.bf16 %v546
        %v1259 = vunpack.c.l.s8.bf16 %v547
        %v1260 = vunpack.c.l.s8.bf16 %v548
        %v1261 = vunpack.c.l.s8.bf16 %v549
        %v1262 = vunpack.c.l.s8.bf16 %v550
        %v1263 = vunpack.c.l.s8.bf16 %v551
        %v1264 = vunpack.c.h.s8.bf16 %v544
        %v1265 = vunpack.c.h.s8.bf16 %v545
        %v1266 = vunpack.c.h.s8.bf16 %v546
        %v1267 = vunpack.c.h.s8.bf16 %v547
        %v1268 = vunpack.c.h.s8.bf16 %v548
        %v1269 = vunpack.c.h.s8.bf16 %v549
        %v1270 = vunpack.c.h.s8.bf16 %v550
        %v1271 = vunpack.c.h.s8.bf16 %v551
        %v1272 = vunpack.c.l.s8.bf16 %v552
        %v1273 = vunpack.c.l.s8.bf16 %v553
        %v1274 = vunpack.c.l.s8.bf16 %v554
        %v1275 = vunpack.c.l.s8.bf16 %v555
        %v1276 = vunpack.c.l.s8.bf16 %v556
        %v1277 = vunpack.c.l.s8.bf16 %v557
        %v1278 = vunpack.c.l.s8.bf16 %v558
        %v1279 = vunpack.c.l.s8.bf16 %v559
        %v1280 = vunpack.c.h.s8.bf16 %v552
        %v1281 = vunpack.c.h.s8.bf16 %v553
        %v1282 = vunpack.c.h.s8.bf16 %v554
        %v1283 = vunpack.c.h.s8.bf16 %v555
        %v1284 = vunpack.c.h.s8.bf16 %v556
        %v1285 = vunpack.c.h.s8.bf16 %v557
        %v1286 = vunpack.c.h.s8.bf16 %v558
        %v1287 = vunpack.c.h.s8.bf16 %v559
        %v1288 = vunpack.c.l.s8.bf16 %v560
        %v1289 = vunpack.c.l.s8.bf16 %v561
        %v1290 = vunpack.c.l.s8.bf16 %v562
        %v1291 = vunpack.c.l.s8.bf16 %v563
        %v1292 = vunpack.c.l.s8.bf16 %v564
        %v1293 = vunpack.c.l.s8.bf16 %v565
        %v1294 = vunpack.c.l.s8.bf16 %v566
        %v1295 = vunpack.c.l.s8.bf16 %v567
        %v1296 = vunpack.c.h.s8.bf16 %v560
        %v1297 = vunpack.c.h.s8.bf16 %v561
        %v1298 = vunpack.c.h.s8.bf16 %v562
        %v1299 = vunpack.c.h.s8.bf16 %v563
        %v1300 = vunpack.c.h.s8.bf16 %v564
        %v1301 = vunpack.c.h.s8.bf16 %v565
        %v1302 = vunpack.c.h.s8.bf16 %v566
        %v1303 = vunpack.c.h.s8.bf16 %v567
        %v1304 = vunpack.c.l.s8.bf16 %v568
        %v1305 = vunpack.c.l.s8.bf16 %v569
        %v1306 = vunpack.c.l.s8.bf16 %v570
        %v1307 = vunpack.c.l.s8.bf16 %v571
        %v1308 = vunpack.c.l.s8.bf16 %v572
        %v1309 = vunpack.c.l.s8.bf16 %v573
        %v1310 = vunpack.c.l.s8.bf16 %v574
        %v1311 = vunpack.c.l.s8.bf16 %v575
        %v1312 = vunpack.c.h.s8.bf16 %v568
        %v1313 = vunpack.c.h.s8.bf16 %v569
        %v1314 = vunpack.c.h.s8.bf16 %v570
        %v1315 = vunpack.c.h.s8.bf16 %v571
        %v1316 = vunpack.c.h.s8.bf16 %v572
        %v1317 = vunpack.c.h.s8.bf16 %v573
        %v1318 = vunpack.c.h.s8.bf16 %v574
        %v1319 = vunpack.c.h.s8.bf16 %v575
        %v1320 = vunpack.c.l.s8.bf16 %v576
        %v1321 = vunpack.c.l.s8.bf16 %v577
        %v1322 = vunpack.c.l.s8.bf16 %v578
        %v1323 = vunpack.c.l.s8.bf16 %v579
        %v1324 = vunpack.c.l.s8.bf16 %v580
        %v1325 = vunpack.c.l.s8.bf16 %v581
        %v1326 = vunpack.c.l.s8.bf16 %v582
        %v1327 = vunpack.c.l.s8.bf16 %v583
        %v1328 = vunpack.c.h.s8.bf16 %v576
        %v1329 = vunpack.c.h.s8.bf16 %v577
        %v1330 = vunpack.c.h.s8.bf16 %v578
        %v1331 = vunpack.c.h.s8.bf16 %v579
        %v1332 = vunpack.c.h.s8.bf16 %v580
        %v1333 = vunpack.c.h.s8.bf16 %v581
        %v1334 = vunpack.c.h.s8.bf16 %v582
        %v1335 = vunpack.c.h.s8.bf16 %v583
        %v1336 = vunpack.c.l.s8.bf16 %v584
        %v1337 = vunpack.c.l.s8.bf16 %v585
        %v1338 = vunpack.c.l.s8.bf16 %v586
        %v1339 = vunpack.c.l.s8.bf16 %v587
        %v1340 = vunpack.c.l.s8.bf16 %v588
        %v1341 = vunpack.c.l.s8.bf16 %v589
        %v1342 = vunpack.c.l.s8.bf16 %v590
        %v1343 = vunpack.c.l.s8.bf16 %v591
        %v1344 = vunpack.c.h.s8.bf16 %v584
        %v1345 = vunpack.c.h.s8.bf16 %v585
        %v1346 = vunpack.c.h.s8.bf16 %v586
        %v1347 = vunpack.c.h.s8.bf16 %v587
        %v1348 = vunpack.c.h.s8.bf16 %v588
        %v1349 = vunpack.c.h.s8.bf16 %v589
        %v1350 = vunpack.c.h.s8.bf16 %v590
        %v1351 = vunpack.c.h.s8.bf16 %v591
        %v1352 = vunpack.c.l.s8.bf16 %v592
        %v1353 = vunpack.c.l.s8.bf16 %v593
        %v1354 = vunpack.c.l.s8.bf16 %v594
        %v1355 = vunpack.c.l.s8.bf16 %v595
        %v1356 = vunpack.c.l.s8.bf16 %v596
        %v1357 = vunpack.c.l.s8.bf16 %v597
        %v1358 = vunpack.c.l.s8.bf16 %v598
        %v1359 = vunpack.c.l.s8.bf16 %v599
        %v1360 = vunpack.c.h.s8.bf16 %v592
        %v1361 = vunpack.c.h.s8.bf16 %v593
        %v1362 = vunpack.c.h.s8.bf16 %v594
        %v1363 = vunpack.c.h.s8.bf16 %v595
        %v1364 = vunpack.c.h.s8.bf16 %v596
        %v1365 = vunpack.c.h.s8.bf16 %v597
        %v1366 = vunpack.c.h.s8.bf16 %v598
        %v1367 = vunpack.c.h.s8.bf16 %v599
        %v1368 = vunpack.c.l.s8.bf16 %v600
        %v1369 = vunpack.c.l.s8.bf16 %v601
        %v1370 = vunpack.c.l.s8.bf16 %v602
        %v1371 = vunpack.c.l.s8.bf16 %v603
        %v1372 = vunpack.c.l.s8.bf16 %v604
        %v1373 = vunpack.c.l.s8.bf16 %v605
        %v1374 = vunpack.c.l.s8.bf16 %v606
        %v1375 = vunpack.c.l.s8.bf16 %v607
        %v1376 = vunpack.c.h.s8.bf16 %v600
        %v1377 = vunpack.c.h.s8.bf16 %v601
        %v1378 = vunpack.c.h.s8.bf16 %v602
        %v1379 = vunpack.c.h.s8.bf16 %v603
        %v1380 = vunpack.c.h.s8.bf16 %v604
        %v1381 = vunpack.c.h.s8.bf16 %v605
        %v1382 = vunpack.c.h.s8.bf16 %v606
        %v1383 = vunpack.c.h.s8.bf16 %v607
        %v1384 = vunpack.c.l.s8.bf16 %v608
        %v1385 = vunpack.c.l.s8.bf16 %v609
        %v1386 = vunpack.c.l.s8.bf16 %v610
        %v1387 = vunpack.c.l.s8.bf16 %v611
        %v1388 = vunpack.c.l.s8.bf16 %v612
        %v1389 = vunpack.c.l.s8.bf16 %v613
        %v1390 = vunpack.c.l.s8.bf16 %v614
        %v1391 = vunpack.c.l.s8.bf16 %v615
        %v1392 = vunpack.c.h.s8.bf16 %v608
        %v1393 = vunpack.c.h.s8.bf16 %v609
        %v1394 = vunpack.c.h.s8.bf16 %v610
        %v1395 = vunpack.c.h.s8.bf16 %v611
        %v1396 = vunpack.c.h.s8.bf16 %v612
        %v1397 = vunpack.c.h.s8.bf16 %v613
        %v1398 = vunpack.c.h.s8.bf16 %v614
        %v1399 = vunpack.c.h.s8.bf16 %v615
        %v1400 = vunpack.c.l.s8.bf16 %v616
        %v1401 = vunpack.c.l.s8.bf16 %v617
        %v1402 = vunpack.c.l.s8.bf16 %v618
        %v1403 = vunpack.c.l.s8.bf16 %v619
        %v1404 = vunpack.c.l.s8.bf16 %v620
        %v1405 = vunpack.c.l.s8.bf16 %v621
        %v1406 = vunpack.c.l.s8.bf16 %v622
        %v1407 = vunpack.c.l.s8.bf16 %v623
        %v1408 = vunpack.c.h.s8.bf16 %v616
        %v1409 = vunpack.c.h.s8.bf16 %v617
        %v1410 = vunpack.c.h.s8.bf16 %v618
        %v1411 = vunpack.c.h.s8.bf16 %v619
        %v1412 = vunpack.c.h.s8.bf16 %v620
        %v1413 = vunpack.c.h.s8.bf16 %v621
        %v1414 = vunpack.c.h.s8.bf16 %v622
        %v1415 = vunpack.c.h.s8.bf16 %v623
        %v1416 = vunpack.c.l.s8.bf16 %v624
        %v1417 = vunpack.c.l.s8.bf16 %v625
        %v1418 = vunpack.c.l.s8.bf16 %v626
        %v1419 = vunpack.c.l.s8.bf16 %v627
        %v1420 = vunpack.c.l.s8.bf16 %v628
        %v1421 = vunpack.c.l.s8.bf16 %v629
        %v1422 = vunpack.c.l.s8.bf16 %v630
        %v1423 = vunpack.c.l.s8.bf16 %v631
        %v1424 = vunpack.c.h.s8.bf16 %v624
        %v1425 = vunpack.c.h.s8.bf16 %v625
        %v1426 = vunpack.c.h.s8.bf16 %v626
        %v1427 = vunpack.c.h.s8.bf16 %v627
        %v1428 = vunpack.c.h.s8.bf16 %v628
        %v1429 = vunpack.c.h.s8.bf16 %v629
        %v1430 = vunpack.c.h.s8.bf16 %v630
        %v1431 = vunpack.c.h.s8.bf16 %v631
        %v1432 = vunpack.c.l.s8.bf16 %v632
        %v1433 = vunpack.c.l.s8.bf16 %v633
        %v1434 = vunpack.c.l.s8.bf16 %v634
        %v1435 = vunpack.c.l.s8.bf16 %v635
        %v1436 = vunpack.c.l.s8.bf16 %v636
        %v1437 = vunpack.c.l.s8.bf16 %v637
        %v1438 = vunpack.c.l.s8.bf16 %v638
        %v1439 = vunpack.c.l.s8.bf16 %v639
        %v1440 = vunpack.c.h.s8.bf16 %v632
        %v1441 = vunpack.c.h.s8.bf16 %v633
        %v1442 = vunpack.c.h.s8.bf16 %v634
        %v1443 = vunpack.c.h.s8.bf16 %v635
        %v1444 = vunpack.c.h.s8.bf16 %v636
        %v1445 = vunpack.c.h.s8.bf16 %v637
        %v1446 = vunpack.c.h.s8.bf16 %v638
        %v1447 = vunpack.c.h.s8.bf16 %v639
        %v1448 = vunpack.c.l.s8.bf16 %v640
        %v1449 = vunpack.c.l.s8.bf16 %v641
        %v1450 = vunpack.c.l.s8.bf16 %v642
        %v1451 = vunpack.c.l.s8.bf16 %v643
        %v1452 = vunpack.c.l.s8.bf16 %v644
        %v1453 = vunpack.c.l.s8.bf16 %v645
        %v1454 = vunpack.c.l.s8.bf16 %v646
        %v1455 = vunpack.c.l.s8.bf16 %v647
        %v1456 = vunpack.c.h.s8.bf16 %v640
        %v1457 = vunpack.c.h.s8.bf16 %v641
        %v1458 = vunpack.c.h.s8.bf16 %v642
        %v1459 = vunpack.c.h.s8.bf16 %v643
        %v1460 = vunpack.c.h.s8.bf16 %v644
        %v1461 = vunpack.c.h.s8.bf16 %v645
        %v1462 = vunpack.c.h.s8.bf16 %v646
        %v1463 = vunpack.c.h.s8.bf16 %v647
        %v1464 = vunpack.c.l.s8.bf16 %v648
        %v1465 = vunpack.c.l.s8.bf16 %v649
        %v1466 = vunpack.c.l.s8.bf16 %v650
        %v1467 = vunpack.c.l.s8.bf16 %v651
        %v1468 = vunpack.c.l.s8.bf16 %v652
        %v1469 = vunpack.c.l.s8.bf16 %v653
        %v1470 = vunpack.c.l.s8.bf16 %v654
        %v1471 = vunpack.c.l.s8.bf16 %v655
        %v1472 = vunpack.c.h.s8.bf16 %v648
        %v1473 = vunpack.c.h.s8.bf16 %v649
        %v1474 = vunpack.c.h.s8.bf16 %v650
        %v1475 = vunpack.c.h.s8.bf16 %v651
        %v1476 = vunpack.c.h.s8.bf16 %v652
        %v1477 = vunpack.c.h.s8.bf16 %v653
        %v1478 = vunpack.c.h.s8.bf16 %v654
        %v1479 = vunpack.c.h.s8.bf16 %v655
        %v1480 = vunpack.c.l.s8.bf16 %v656
        %v1481 = vunpack.c.l.s8.bf16 %v657
        %v1482 = vunpack.c.l.s8.bf16 %v658
        %v1483 = vunpack.c.l.s8.bf16 %v659
        %v1484 = vunpack.c.l.s8.bf16 %v660
        %v1485 = vunpack.c.l.s8.bf16 %v661
        %v1486 = vunpack.c.l.s8.bf16 %v662
        %v1487 = vunpack.c.l.s8.bf16 %v663
        %v1488 = vunpack.c.h.s8.bf16 %v656
        %v1489 = vunpack.c.h.s8.bf16 %v657
        %v1490 = vunpack.c.h.s8.bf16 %v658
        %v1491 = vunpack.c.h.s8.bf16 %v659
        %v1492 = vunpack.c.h.s8.bf16 %v660
        %v1493 = vunpack.c.h.s8.bf16 %v661
        %v1494 = vunpack.c.h.s8.bf16 %v662
        %v1495 = vunpack.c.h.s8.bf16 %v663
        %v1496 = vunpack.c.l.s8.bf16 %v664
        %v1497 = vunpack.c.l.s8.bf16 %v665
        %v1498 = vunpack.c.l.s8.bf16 %v666
        %v1499 = vunpack.c.l.s8.bf16 %v667
        %v1500 = vunpack.c.l.s8.bf16 %v668
        %v1501 = vunpack.c.l.s8.bf16 %v669
        %v1502 = vunpack.c.l.s8.bf16 %v670
        %v1503 = vunpack.c.l.s8.bf16 %v671
        %v1504 = vunpack.c.h.s8.bf16 %v664
        %v1505 = vunpack.c.h.s8.bf16 %v665
        %v1506 = vunpack.c.h.s8.bf16 %v666
        %v1507 = vunpack.c.h.s8.bf16 %v667
        %v1508 = vunpack.c.h.s8.bf16 %v668
        %v1509 = vunpack.c.h.s8.bf16 %v669
        %v1510 = vunpack.c.h.s8.bf16 %v670
        %v1511 = vunpack.c.h.s8.bf16 %v671
        %v1512 = vunpack.c.l.s8.bf16 %v672
        %v1513 = vunpack.c.l.s8.bf16 %v673
        %v1514 = vunpack.c.l.s8.bf16 %v674
        %v1515 = vunpack.c.l.s8.bf16 %v675
        %v1516 = vunpack.c.l.s8.bf16 %v676
        %v1517 = vunpack.c.l.s8.bf16 %v677
        %v1518 = vunpack.c.l.s8.bf16 %v678
        %v1519 = vunpack.c.l.s8.bf16 %v679
        %v1520 = vunpack.c.h.s8.bf16 %v672
        %v1521 = vunpack.c.h.s8.bf16 %v673
        %v1522 = vunpack.c.h.s8.bf16 %v674
        %v1523 = vunpack.c.h.s8.bf16 %v675
        %v1524 = vunpack.c.h.s8.bf16 %v676
        %v1525 = vunpack.c.h.s8.bf16 %v677
        %v1526 = vunpack.c.h.s8.bf16 %v678
        %v1527 = vunpack.c.h.s8.bf16 %v679
        %v1528 = vunpack.c.l.s8.bf16 %v680
        %v1529 = vunpack.c.l.s8.bf16 %v681
        %v1530 = vunpack.c.l.s8.bf16 %v682
        %v1531 = vunpack.c.l.s8.bf16 %v683
        %v1532 = vunpack.c.l.s8.bf16 %v684
        %v1533 = vunpack.c.l.s8.bf16 %v685
        %v1534 = vunpack.c.l.s8.bf16 %v686
        %v1535 = vunpack.c.l.s8.bf16 %v687
        %v1536 = vunpack.c.h.s8.bf16 %v680
        %v1537 = vunpack.c.h.s8.bf16 %v681
        %v1538 = vunpack.c.h.s8.bf16 %v682
        %v1539 = vunpack.c.h.s8.bf16 %v683
        %v1540 = vunpack.c.h.s8.bf16 %v684
        %v1541 = vunpack.c.h.s8.bf16 %v685
        %v1542 = vunpack.c.h.s8.bf16 %v686
        %v1543 = vunpack.c.h.s8.bf16 %v687
        %v1544 = vunpack.c.l.s8.bf16 %v688
        %v1545 = vunpack.c.l.s8.bf16 %v689
        %v1546 = vunpack.c.l.s8.bf16 %v690
        %v1547 = vunpack.c.l.s8.bf16 %v691
        %v1548 = vunpack.c.l.s8.bf16 %v692
        %v1549 = vunpack.c.l.s8.bf16 %v693
        %v1550 = vunpack.c.l.s8.bf16 %v694
        %v1551 = vunpack.c.l.s8.bf16 %v695
        %v1552 = vunpack.c.h.s8.bf16 %v688
        %v1553 = vunpack.c.h.s8.bf16 %v689
        %v1554 = vunpack.c.h.s8.bf16 %v690
        %v1555 = vunpack.c.h.s8.bf16 %v691
        %v1556 = vunpack.c.h.s8.bf16 %v692
        %v1557 = vunpack.c.h.s8.bf16 %v693
        %v1558 = vunpack.c.h.s8.bf16 %v694
        %v1559 = vunpack.c.h.s8.bf16 %v695
        %v1560 = vunpack.c.l.s8.bf16 %v696
        %v1561 = vunpack.c.l.s8.bf16 %v697
        %v1562 = vunpack.c.l.s8.bf16 %v698
        %v1563 = vunpack.c.l.s8.bf16 %v699
        %v1564 = vunpack.c.l.s8.bf16 %v700
        %v1565 = vunpack.c.l.s8.bf16 %v701
        %v1566 = vunpack.c.l.s8.bf16 %v702
        %v1567 = vunpack.c.l.s8.bf16 %v703
        %v1568 = vunpack.c.h.s8.bf16 %v696
        %v1569 = vunpack.c.h.s8.bf16 %v697
        %v1570 = vunpack.c.h.s8.bf16 %v698
        %v1571 = vunpack.c.h.s8.bf16 %v699
        %v1572 = vunpack.c.h.s8.bf16 %v700
        %v1573 = vunpack.c.h.s8.bf16 %v701
        %v1574 = vunpack.c.h.s8.bf16 %v702
        %v1575 = vunpack.c.h.s8.bf16 %v703
        %v1576 = vunpack.c.l.s8.bf16 %v704
        %v1577 = vunpack.c.l.s8.bf16 %v705
        %v1578 = vunpack.c.l.s8.bf16 %v706
        %v1579 = vunpack.c.l.s8.bf16 %v707
        %v1580 = vunpack.c.l.s8.bf16 %v708
        %v1581 = vunpack.c.l.s8.bf16 %v709
        %v1582 = vunpack.c.l.s8.bf16 %v710
        %v1583 = vunpack.c.l.s8.bf16 %v711
        %v1584 = vunpack.c.h.s8.bf16 %v704
        %v1585 = vunpack.c.h.s8.bf16 %v705
        %v1586 = vunpack.c.h.s8.bf16 %v706
        %v1587 = vunpack.c.h.s8.bf16 %v707
        %v1588 = vunpack.c.h.s8.bf16 %v708
        %v1589 = vunpack.c.h.s8.bf16 %v709
        %v1590 = vunpack.c.h.s8.bf16 %v710
        %v1591 = vunpack.c.h.s8.bf16 %v711
        %v1592 = vunpack.c.l.s8.bf16 %v712
        %v1593 = vunpack.c.l.s8.bf16 %v713
        %v1594 = vunpack.c.l.s8.bf16 %v714
        %v1595 = vunpack.c.l.s8.bf16 %v715
        %v1596 = vunpack.c.l.s8.bf16 %v716
        %v1597 = vunpack.c.l.s8.bf16 %v717
        %v1598 = vunpack.c.l.s8.bf16 %v718
        %v1599 = vunpack.c.l.s8.bf16 %v719
        %v1600 = vunpack.c.h.s8.bf16 %v712
        %v1601 = vunpack.c.h.s8.bf16 %v713
        %v1602 = vunpack.c.h.s8.bf16 %v714
        %v1603 = vunpack.c.h.s8.bf16 %v715
        %v1604 = vunpack.c.h.s8.bf16 %v716
        %v1605 = vunpack.c.h.s8.bf16 %v717
        %v1606 = vunpack.c.h.s8.bf16 %v718
        %v1607 = vunpack.c.h.s8.bf16 %v719
        %v1608 = vunpack.c.l.s8.bf16 %v720
        %v1609 = vunpack.c.l.s8.bf16 %v721
        %v1610 = vunpack.c.l.s8.bf16 %v722
        %v1611 = vunpack.c.l.s8.bf16 %v723
        %v1612 = vunpack.c.l.s8.bf16 %v724
        %v1613 = vunpack.c.l.s8.bf16 %v725
        %v1614 = vunpack.c.l.s8.bf16 %v726
        %v1615 = vunpack.c.l.s8.bf16 %v727
        %v1616 = vunpack.c.h.s8.bf16 %v720
        %v1617 = vunpack.c.h.s8.bf16 %v721
        %v1618 = vunpack.c.h.s8.bf16 %v722
        %v1619 = vunpack.c.h.s8.bf16 %v723
        %v1620 = vunpack.c.h.s8.bf16 %v724
        %v1621 = vunpack.c.h.s8.bf16 %v725
        %v1622 = vunpack.c.h.s8.bf16 %v726
        %v1623 = vunpack.c.h.s8.bf16 %v727
        %v1624 = vunpack.c.l.s8.bf16 %v728
        %v1625 = vunpack.c.l.s8.bf16 %v729
        %v1626 = vunpack.c.l.s8.bf16 %v730
        %v1627 = vunpack.c.l.s8.bf16 %v731
        %v1628 = vunpack.c.l.s8.bf16 %v732
        %v1629 = vunpack.c.l.s8.bf16 %v733
        %v1630 = vunpack.c.l.s8.bf16 %v734
        %v1631 = vunpack.c.l.s8.bf16 %v735
        %v1632 = vunpack.c.h.s8.bf16 %v728
        %v1633 = vunpack.c.h.s8.bf16 %v729
        %v1634 = vunpack.c.h.s8.bf16 %v730
        %v1635 = vunpack.c.h.s8.bf16 %v731
        %v1636 = vunpack.c.h.s8.bf16 %v732
        %v1637 = vunpack.c.h.s8.bf16 %v733
        %v1638 = vunpack.c.h.s8.bf16 %v734
        %v1639 = vunpack.c.h.s8.bf16 %v735
        %v1640 = vunpack.c.l.s8.bf16 %v736
        %v1641 = vunpack.c.l.s8.bf16 %v737
        %v1642 = vunpack.c.l.s8.bf16 %v738
        %v1643 = vunpack.c.l.s8.bf16 %v739
        %v1644 = vunpack.c.l.s8.bf16 %v740
        %v1645 = vunpack.c.l.s8.bf16 %v741
        %v1646 = vunpack.c.l.s8.bf16 %v742
        %v1647 = vunpack.c.l.s8.bf16 %v743
        %v1648 = vunpack.c.h.s8.bf16 %v736
        %v1649 = vunpack.c.h.s8.bf16 %v737
        %v1650 = vunpack.c.h.s8.bf16 %v738
        %v1651 = vunpack.c.h.s8.bf16 %v739
        %v1652 = vunpack.c.h.s8.bf16 %v740
        %v1653 = vunpack.c.h.s8.bf16 %v741
        %v1654 = vunpack.c.h.s8.bf16 %v742
        %v1655 = vunpack.c.h.s8.bf16 %v743
        %v1656 = vunpack.c.l.s8.bf16 %v744
        %v1657 = vunpack.c.l.s8.bf16 %v745
        %v1658 = vunpack.c.l.s8.bf16 %v746
        %v1659 = vunpack.c.l.s8.bf16 %v747
        %v1660 = vunpack.c.l.s8.bf16 %v748
        %v1661 = vunpack.c.l.s8.bf16 %v749
        %v1662 = vunpack.c.l.s8.bf16 %v750
        %v1663 = vunpack.c.l.s8.bf16 %v751
        %v1664 = vunpack.c.h.s8.bf16 %v744
        %v1665 = vunpack.c.h.s8.bf16 %v745
        %v1666 = vunpack.c.h.s8.bf16 %v746
        %v1667 = vunpack.c.h.s8.bf16 %v747
        %v1668 = vunpack.c.h.s8.bf16 %v748
        %v1669 = vunpack.c.h.s8.bf16 %v749
        %v1670 = vunpack.c.h.s8.bf16 %v750
        %v1671 = vunpack.c.h.s8.bf16 %v751
        %v1672 = vunpack.c.l.s8.bf16 %v752
        %v1673 = vunpack.c.l.s8.bf16 %v753
        %v1674 = vunpack.c.l.s8.bf16 %v754
        %v1675 = vunpack.c.l.s8.bf16 %v755
        %v1676 = vunpack.c.l.s8.bf16 %v756
        %v1677 = vunpack.c.l.s8.bf16 %v757
        %v1678 = vunpack.c.l.s8.bf16 %v758
        %v1679 = vunpack.c.l.s8.bf16 %v759
        %v1680 = vunpack.c.h.s8.bf16 %v752
        %v1681 = vunpack.c.h.s8.bf16 %v753
        %v1682 = vunpack.c.h.s8.bf16 %v754
        %v1683 = vunpack.c.h.s8.bf16 %v755
        %v1684 = vunpack.c.h.s8.bf16 %v756
        %v1685 = vunpack.c.h.s8.bf16 %v757
        %v1686 = vunpack.c.h.s8.bf16 %v758
        %v1687 = vunpack.c.h.s8.bf16 %v759
        %v1688 = vunpack.c.l.s8.bf16 %v760
        %v1689 = vunpack.c.l.s8.bf16 %v761
        %v1690 = vunpack.c.l.s8.bf16 %v762
        %v1691 = vunpack.c.l.s8.bf16 %v763
        %v1692 = vunpack.c.l.s8.bf16 %v764
        %v1693 = vunpack.c.l.s8.bf16 %v765
        %v1694 = vunpack.c.l.s8.bf16 %v766
        %v1695 = vunpack.c.l.s8.bf16 %v767
        %v1696 = vunpack.c.h.s8.bf16 %v760
        %v1697 = vunpack.c.h.s8.bf16 %v761
        %v1698 = vunpack.c.h.s8.bf16 %v762
        %v1699 = vunpack.c.h.s8.bf16 %v763
        %v1700 = vunpack.c.h.s8.bf16 %v764
        %v1701 = vunpack.c.h.s8.bf16 %v765
        %v1702 = vunpack.c.h.s8.bf16 %v766
        %v1703 = vunpack.c.h.s8.bf16 %v767
        %v1704 = vunpack.c.l.s8.bf16 %v768
        %v1705 = vunpack.c.l.s8.bf16 %v769
        %v1706 = vunpack.c.l.s8.bf16 %v770
        %v1707 = vunpack.c.l.s8.bf16 %v771
        %v1708 = vunpack.c.l.s8.bf16 %v772
        %v1709 = vunpack.c.l.s8.bf16 %v773
        %v1710 = vunpack.c.l.s8.bf16 %v774
        %v1711 = vunpack.c.l.s8.bf16 %v775
        %v1712 = vunpack.c.h.s8.bf16 %v768
        %v1713 = vunpack.c.h.s8.bf16 %v769
        %v1714 = vunpack.c.h.s8.bf16 %v770
        %v1715 = vunpack.c.h.s8.bf16 %v771
        %v1716 = vunpack.c.h.s8.bf16 %v772
        %v1717 = vunpack.c.h.s8.bf16 %v773
        %v1718 = vunpack.c.h.s8.bf16 %v774
        %v1719 = vunpack.c.h.s8.bf16 %v775
        %v1720 = vunpack.c.l.s8.bf16 %v776
        %v1721 = vunpack.c.l.s8.bf16 %v777
        %v1722 = vunpack.c.l.s8.bf16 %v778
        %v1723 = vunpack.c.l.s8.bf16 %v779
        %v1724 = vunpack.c.l.s8.bf16 %v780
        %v1725 = vunpack.c.l.s8.bf16 %v781
        %v1726 = vunpack.c.l.s8.bf16 %v782
        %v1727 = vunpack.c.l.s8.bf16 %v783
        %v1728 = vunpack.c.h.s8.bf16 %v776
        %v1729 = vunpack.c.h.s8.bf16 %v777
        %v1730 = vunpack.c.h.s8.bf16 %v778
        %v1731 = vunpack.c.h.s8.bf16 %v779
        %v1732 = vunpack.c.h.s8.bf16 %v780
        %v1733 = vunpack.c.h.s8.bf16 %v781
        %v1734 = vunpack.c.h.s8.bf16 %v782
        %v1735 = vunpack.c.h.s8.bf16 %v783
        %v1736 = vunpack.c.l.s8.bf16 %v784
        %v1737 = vunpack.c.l.s8.bf16 %v785
        %v1738 = vunpack.c.l.s8.bf16 %v786
        %v1739 = vunpack.c.l.s8.bf16 %v787
        %v1740 = vunpack.c.l.s8.bf16 %v788
        %v1741 = vunpack.c.l.s8.bf16 %v789
        %v1742 = vunpack.c.l.s8.bf16 %v790
        %v1743 = vunpack.c.l.s8.bf16 %v791
        %v1744 = vunpack.c.h.s8.bf16 %v784
        %v1745 = vunpack.c.h.s8.bf16 %v785
        %v1746 = vunpack.c.h.s8.bf16 %v786
        %v1747 = vunpack.c.h.s8.bf16 %v787
        %v1748 = vunpack.c.h.s8.bf16 %v788
        %v1749 = vunpack.c.h.s8.bf16 %v789
        %v1750 = vunpack.c.h.s8.bf16 %v790
        %v1751 = vunpack.c.h.s8.bf16 %v791
        %v1752 = vunpack.c.l.s8.bf16 %v792
        %v1753 = vunpack.c.l.s8.bf16 %v793
        %v1754 = vunpack.c.l.s8.bf16 %v794
        %v1755 = vunpack.c.l.s8.bf16 %v795
        %v1756 = vunpack.c.l.s8.bf16 %v796
        %v1757 = vunpack.c.l.s8.bf16 %v797
        %v1758 = vunpack.c.l.s8.bf16 %v798
        %v1759 = vunpack.c.l.s8.bf16 %v799
        %v1760 = vunpack.c.h.s8.bf16 %v792
        %v1761 = vunpack.c.h.s8.bf16 %v793
        %v1762 = vunpack.c.h.s8.bf16 %v794
        %v1763 = vunpack.c.h.s8.bf16 %v795
        %v1764 = vunpack.c.h.s8.bf16 %v796
        %v1765 = vunpack.c.h.s8.bf16 %v797
        %v1766 = vunpack.c.h.s8.bf16 %v798
        %v1767 = vunpack.c.h.s8.bf16 %v799
        %v1768 = vunpack.c.l.s8.bf16 %v800
        %v1769 = vunpack.c.l.s8.bf16 %v801
        %v1770 = vunpack.c.l.s8.bf16 %v802
        %v1771 = vunpack.c.l.s8.bf16 %v803
        %v1772 = vunpack.c.l.s8.bf16 %v804
        %v1773 = vunpack.c.l.s8.bf16 %v805
        %v1774 = vunpack.c.l.s8.bf16 %v806
        %v1775 = vunpack.c.l.s8.bf16 %v807
        %v1776 = vunpack.c.h.s8.bf16 %v800
        %v1777 = vunpack.c.h.s8.bf16 %v801
        %v1778 = vunpack.c.h.s8.bf16 %v802
        %v1779 = vunpack.c.h.s8.bf16 %v803
        %v1780 = vunpack.c.h.s8.bf16 %v804
        %v1781 = vunpack.c.h.s8.bf16 %v805
        %v1782 = vunpack.c.h.s8.bf16 %v806
        %v1783 = vunpack.c.h.s8.bf16 %v807
        %v1784 = vunpack.c.l.s8.bf16 %v808
        %v1785 = vunpack.c.l.s8.bf16 %v809
        %v1786 = vunpack.c.l.s8.bf16 %v810
        %v1787 = vunpack.c.l.s8.bf16 %v811
        %v1788 = vunpack.c.l.s8.bf16 %v812
        %v1789 = vunpack.c.l.s8.bf16 %v813
        %v1790 = vunpack.c.l.s8.bf16 %v814
        %v1791 = vunpack.c.l.s8.bf16 %v815
        %v1792 = vunpack.c.h.s8.bf16 %v808
        %v1793 = vunpack.c.h.s8.bf16 %v809
        %v1794 = vunpack.c.h.s8.bf16 %v810
        %v1795 = vunpack.c.h.s8.bf16 %v811
        %v1796 = vunpack.c.h.s8.bf16 %v812
        %v1797 = vunpack.c.h.s8.bf16 %v813
        %v1798 = vunpack.c.h.s8.bf16 %v814
        %v1799 = vunpack.c.h.s8.bf16 %v815
        %v1800 = vunpack.c.l.s8.bf16 %v816
        %v1801 = vunpack.c.l.s8.bf16 %v817
        %v1802 = vunpack.c.l.s8.bf16 %v818
        %v1803 = vunpack.c.l.s8.bf16 %v819
        %v1804 = vunpack.c.l.s8.bf16 %v820
        %v1805 = vunpack.c.l.s8.bf16 %v821
        %v1806 = vunpack.c.l.s8.bf16 %v822
        %v1807 = vunpack.c.l.s8.bf16 %v823
        %v1808 = vunpack.c.h.s8.bf16 %v816
        %v1809 = vunpack.c.h.s8.bf16 %v817
        %v1810 = vunpack.c.h.s8.bf16 %v818
        %v1811 = vunpack.c.h.s8.bf16 %v819
        %v1812 = vunpack.c.h.s8.bf16 %v820
        %v1813 = vunpack.c.h.s8.bf16 %v821
        %v1814 = vunpack.c.h.s8.bf16 %v822
        %v1815 = vunpack.c.h.s8.bf16 %v823
        %v1816 = vunpack.c.l.s8.bf16 %v824
        %v1817 = vunpack.c.l.s8.bf16 %v825
        %v1818 = vunpack.c.l.s8.bf16 %v826
        %v1819 = vunpack.c.l.s8.bf16 %v827
        %v1820 = vunpack.c.l.s8.bf16 %v828
        %v1821 = vunpack.c.l.s8.bf16 %v829
        %v1822 = vunpack.c.l.s8.bf16 %v830
        %v1823 = vunpack.c.l.s8.bf16 %v831
        %v1824 = vunpack.c.h.s8.bf16 %v824
        %v1825 = vunpack.c.h.s8.bf16 %v825
        %v1826 = vunpack.c.h.s8.bf16 %v826
        %v1827 = vunpack.c.h.s8.bf16 %v827
        %v1828 = vunpack.c.h.s8.bf16 %v828
        %v1829 = vunpack.c.h.s8.bf16 %v829
        %v1830 = vunpack.c.h.s8.bf16 %v830
        %v1831 = vunpack.c.h.s8.bf16 %v831
        %v1832 = vunpack.c.l.s8.bf16 %v832
        %v1833 = vunpack.c.l.s8.bf16 %v833
        %v1834 = vunpack.c.l.s8.bf16 %v834
        %v1835 = vunpack.c.l.s8.bf16 %v835
        %v1836 = vunpack.c.l.s8.bf16 %v836
        %v1837 = vunpack.c.l.s8.bf16 %v837
        %v1838 = vunpack.c.l.s8.bf16 %v838
        %v1839 = vunpack.c.l.s8.bf16 %v839
        %v1840 = vunpack.c.h.s8.bf16 %v832
        %v1841 = vunpack.c.h.s8.bf16 %v833
        %v1842 = vunpack.c.h.s8.bf16 %v834
        %v1843 = vunpack.c.h.s8.bf16 %v835
        %v1844 = vunpack.c.h.s8.bf16 %v836
        %v1845 = vunpack.c.h.s8.bf16 %v837
        %v1846 = vunpack.c.h.s8.bf16 %v838
        %v1847 = vunpack.c.h.s8.bf16 %v839
        %v1848 = vunpack.c.l.s8.bf16 %v840
        %v1849 = vunpack.c.l.s8.bf16 %v841
        %v1850 = vunpack.c.l.s8.bf16 %v842
        %v1851 = vunpack.c.l.s8.bf16 %v843
        %v1852 = vunpack.c.l.s8.bf16 %v844
        %v1853 = vunpack.c.l.s8.bf16 %v845
        %v1854 = vunpack.c.l.s8.bf16 %v846
        %v1855 = vunpack.c.l.s8.bf16 %v847
        %v1856 = vunpack.c.h.s8.bf16 %v840
        %v1857 = vunpack.c.h.s8.bf16 %v841
        %v1858 = vunpack.c.h.s8.bf16 %v842
        %v1859 = vunpack.c.h.s8.bf16 %v843
        %v1860 = vunpack.c.h.s8.bf16 %v844
        %v1861 = vunpack.c.h.s8.bf16 %v845
        %v1862 = vunpack.c.h.s8.bf16 %v846
        %v1863 = vunpack.c.h.s8.bf16 %v847
        %v1864 = vunpack.c.l.s8.bf16 %v848
        %v1865 = vunpack.c.l.s8.bf16 %v849
        %v1866 = vunpack.c.l.s8.bf16 %v850
        %v1867 = vunpack.c.l.s8.bf16 %v851
        %v1868 = vunpack.c.l.s8.bf16 %v852
        %v1869 = vunpack.c.l.s8.bf16 %v853
        %v1870 = vunpack.c.l.s8.bf16 %v854
        %v1871 = vunpack.c.l.s8.bf16 %v855
        %v1872 = vunpack.c.h.s8.bf16 %v848
        %v1873 = vunpack.c.h.s8.bf16 %v849
        %v1874 = vunpack.c.h.s8.bf16 %v850
        %v1875 = vunpack.c.h.s8.bf16 %v851
        %v1876 = vunpack.c.h.s8.bf16 %v852
        %v1877 = vunpack.c.h.s8.bf16 %v853
        %v1878 = vunpack.c.h.s8.bf16 %v854
        %v1879 = vunpack.c.h.s8.bf16 %v855
        %v1880 = vunpack.c.l.s8.bf16 %v856
        %v1881 = vunpack.c.l.s8.bf16 %v857
        %v1882 = vunpack.c.l.s8.bf16 %v858
        %v1883 = vunpack.c.l.s8.bf16 %v859
        %v1884 = vunpack.c.l.s8.bf16 %v860
        %v1885 = vunpack.c.l.s8.bf16 %v861
        %v1886 = vunpack.c.l.s8.bf16 %v862
        %v1887 = vunpack.c.l.s8.bf16 %v863
        %v1888 = vunpack.c.h.s8.bf16 %v856
        %v1889 = vunpack.c.h.s8.bf16 %v857
        %v1890 = vunpack.c.h.s8.bf16 %v858
        %v1891 = vunpack.c.h.s8.bf16 %v859
        %v1892 = vunpack.c.h.s8.bf16 %v860
        %v1893 = vunpack.c.h.s8.bf16 %v861
        %v1894 = vunpack.c.h.s8.bf16 %v862
        %v1895 = vunpack.c.h.s8.bf16 %v863
        %v1896 = vunpack.c.l.s8.bf16 %v864
        %v1897 = vunpack.c.l.s8.bf16 %v865
        %v1898 = vunpack.c.l.s8.bf16 %v866
        %v1899 = vunpack.c.l.s8.bf16 %v867
        %v1900 = vunpack.c.l.s8.bf16 %v868
        %v1901 = vunpack.c.l.s8.bf16 %v869
        %v1902 = vunpack.c.l.s8.bf16 %v870
        %v1903 = vunpack.c.l.s8.bf16 %v871
        %v1904 = vunpack.c.h.s8.bf16 %v864
        %v1905 = vunpack.c.h.s8.bf16 %v865
        %v1906 = vunpack.c.h.s8.bf16 %v866
        %v1907 = vunpack.c.h.s8.bf16 %v867
        %v1908 = vunpack.c.h.s8.bf16 %v868
        %v1909 = vunpack.c.h.s8.bf16 %v869
        %v1910 = vunpack.c.h.s8.bf16 %v870
        %v1911 = vunpack.c.h.s8.bf16 %v871
        %v1912 = vunpack.c.l.s8.bf16 %v872
        %v1913 = vunpack.c.l.s8.bf16 %v873
        %v1914 = vunpack.c.l.s8.bf16 %v874
        %v1915 = vunpack.c.l.s8.bf16 %v875
        %v1916 = vunpack.c.l.s8.bf16 %v876
        %v1917 = vunpack.c.l.s8.bf16 %v877
        %v1918 = vunpack.c.l.s8.bf16 %v878
        %v1919 = vunpack.c.l.s8.bf16 %v879
        %v1920 = vunpack.c.h.s8.bf16 %v872
        %v1921 = vunpack.c.h.s8.bf16 %v873
        %v1922 = vunpack.c.h.s8.bf16 %v874
        %v1923 = vunpack.c.h.s8.bf16 %v875
        %v1924 = vunpack.c.h.s8.bf16 %v876
        %v1925 = vunpack.c.h.s8.bf16 %v877
        %v1926 = vunpack.c.h.s8.bf16 %v878
        %v1927 = vunpack.c.h.s8.bf16 %v879
        %v1928 = vunpack.c.l.s8.bf16 %v880
        %v1929 = vunpack.c.l.s8.bf16 %v881
        %v1930 = vunpack.c.l.s8.bf16 %v882
        %v1931 = vunpack.c.l.s8.bf16 %v883
        %v1932 = vunpack.c.l.s8.bf16 %v884
        %v1933 = vunpack.c.l.s8.bf16 %v885
        %v1934 = vunpack.c.l.s8.bf16 %v886
        %v1935 = vunpack.c.l.s8.bf16 %v887
        %v1936 = vunpack.c.h.s8.bf16 %v880
        %v1937 = vunpack.c.h.s8.bf16 %v881
        %v1938 = vunpack.c.h.s8.bf16 %v882
        %v1939 = vunpack.c.h.s8.bf16 %v883
        %v1940 = vunpack.c.h.s8.bf16 %v884
        %v1941 = vunpack.c.h.s8.bf16 %v885
        %v1942 = vunpack.c.h.s8.bf16 %v886
        %v1943 = vunpack.c.h.s8.bf16 %v887
        %v1944 = vunpack.c.l.s8.bf16 %v888
        %v1945 = vunpack.c.l.s8.bf16 %v889
        %v1946 = vunpack.c.l.s8.bf16 %v890
        %v1947 = vunpack.c.l.s8.bf16 %v891
        %v1948 = vunpack.c.l.s8.bf16 %v892
        %v1949 = vunpack.c.l.s8.bf16 %v893
        %v1950 = vunpack.c.l.s8.bf16 %v894
        %v1951 = vunpack.c.l.s8.bf16 %v895
        %v1952 = vunpack.c.h.s8.bf16 %v888
        %v1953 = vunpack.c.h.s8.bf16 %v889
        %v1954 = vunpack.c.h.s8.bf16 %v890
        %v1955 = vunpack.c.h.s8.bf16 %v891
        %v1956 = vunpack.c.h.s8.bf16 %v892
        %v1957 = vunpack.c.h.s8.bf16 %v893
        %v1958 = vunpack.c.h.s8.bf16 %v894
        %v1959 = vunpack.c.h.s8.bf16 %v895
        %v1960 = vunpack.c.l.s8.bf16 %v896
        %v1961 = vunpack.c.l.s8.bf16 %v897
        %v1962 = vunpack.c.l.s8.bf16 %v898
        %v1963 = vunpack.c.l.s8.bf16 %v899
        %v1964 = vunpack.c.l.s8.bf16 %v900
        %v1965 = vunpack.c.l.s8.bf16 %v901
        %v1966 = vunpack.c.l.s8.bf16 %v902
        %v1967 = vunpack.c.l.s8.bf16 %v903
        %v1968 = vunpack.c.h.s8.bf16 %v896
        %v1969 = vunpack.c.h.s8.bf16 %v897
        %v1970 = vunpack.c.h.s8.bf16 %v898
        %v1971 = vunpack.c.h.s8.bf16 %v899
        %v1972 = vunpack.c.h.s8.bf16 %v900
        %v1973 = vunpack.c.h.s8.bf16 %v901
        %v1974 = vunpack.c.h.s8.bf16 %v902
        %v1975 = vunpack.c.h.s8.bf16 %v903
        %v1976 = vunpack.c.l.s8.bf16 %v904
        %v1977 = vunpack.c.l.s8.bf16 %v905
        %v1978 = vunpack.c.l.s8.bf16 %v906
        %v1979 = vunpack.c.l.s8.bf16 %v907
        %v1980 = vunpack.c.l.s8.bf16 %v908
        %v1981 = vunpack.c.l.s8.bf16 %v909
        %v1982 = vunpack.c.l.s8.bf16 %v910
        %v1983 = vunpack.c.l.s8.bf16 %v911
        %v1984 = vunpack.c.h.s8.bf16 %v904
        %v1985 = vunpack.c.h.s8.bf16 %v905
        %v1986 = vunpack.c.h.s8.bf16 %v906
        %v1987 = vunpack.c.h.s8.bf16 %v907
        %v1988 = vunpack.c.h.s8.bf16 %v908
        %v1989 = vunpack.c.h.s8.bf16 %v909
        %v1990 = vunpack.c.h.s8.bf16 %v910
        %v1991 = vunpack.c.h.s8.bf16 %v911
        %v1992 = vunpack.c.l.s8.bf16 %v912
        %v1993 = vunpack.c.l.s8.bf16 %v913
        %v1994 = vunpack.c.l.s8.bf16 %v914
        %v1995 = vunpack.c.l.s8.bf16 %v915
        %v1996 = vunpack.c.l.s8.bf16 %v916
        %v1997 = vunpack.c.l.s8.bf16 %v917
        %v1998 = vunpack.c.l.s8.bf16 %v918
        %v1999 = vunpack.c.l.s8.bf16 %v919
        %v2000 = vunpack.c.h.s8.bf16 %v912
        %v2001 = vunpack.c.h.s8.bf16 %v913
        %v2002 = vunpack.c.h.s8.bf16 %v914
        %v2003 = vunpack.c.h.s8.bf16 %v915
        %v2004 = vunpack.c.h.s8.bf16 %v916
        %v2005 = vunpack.c.h.s8.bf16 %v917
        %v2006 = vunpack.c.h.s8.bf16 %v918
        %v2007 = vunpack.c.h.s8.bf16 %v919
        %v2008 = vunpack.c.l.s8.bf16 %v920
        %v2009 = vunpack.c.l.s8.bf16 %v921
        %v2010 = vunpack.c.l.s8.bf16 %v922
        %v2011 = vunpack.c.l.s8.bf16 %v923
        %v2012 = vunpack.c.l.s8.bf16 %v924
        %v2013 = vunpack.c.l.s8.bf16 %v925
        %v2014 = vunpack.c.l.s8.bf16 %v926
        %v2015 = vunpack.c.l.s8.bf16 %v927
        %v2016 = vunpack.c.h.s8.bf16 %v920
        %v2017 = vunpack.c.h.s8.bf16 %v921
        %v2018 = vunpack.c.h.s8.bf16 %v922
        %v2019 = vunpack.c.h.s8.bf16 %v923
        %v2020 = vunpack.c.h.s8.bf16 %v924
        %v2021 = vunpack.c.h.s8.bf16 %v925
        %v2022 = vunpack.c.h.s8.bf16 %v926
        %v2023 = vunpack.c.h.s8.bf16 %v927
        %v2024 = vunpack.c.l.s8.bf16 %v928
        %v2025 = vunpack.c.l.s8.bf16 %v929
        %v2026 = vunpack.c.l.s8.bf16 %v930
        %v2027 = vunpack.c.l.s8.bf16 %v931
        %v2028 = vunpack.c.l.s8.bf16 %v932
        %v2029 = vunpack.c.l.s8.bf16 %v933
        %v2030 = vunpack.c.l.s8.bf16 %v934
        %v2031 = vunpack.c.l.s8.bf16 %v935
        %v2032 = vunpack.c.h.s8.bf16 %v928
        %v2033 = vunpack.c.h.s8.bf16 %v929
        %v2034 = vunpack.c.h.s8.bf16 %v930
        %v2035 = vunpack.c.h.s8.bf16 %v931
        %v2036 = vunpack.c.h.s8.bf16 %v932
        %v2037 = vunpack.c.h.s8.bf16 %v933
        %v2038 = vunpack.c.h.s8.bf16 %v934
        %v2039 = vunpack.c.h.s8.bf16 %v935
        %v2040 = vunpack.c.l.s8.bf16 %v936
        %v2041 = vunpack.c.l.s8.bf16 %v937
        %v2042 = vunpack.c.l.s8.bf16 %v938
        %v2043 = vunpack.c.l.s8.bf16 %v939
        %v2044 = vunpack.c.l.s8.bf16 %v940
        %v2045 = vunpack.c.l.s8.bf16 %v941
        %v2046 = vunpack.c.l.s8.bf16 %v942
        %v2047 = vunpack.c.l.s8.bf16 %v943
        %v2048 = vunpack.c.h.s8.bf16 %v936
        %v2049 = vunpack.c.h.s8.bf16 %v937
        %v2050 = vunpack.c.h.s8.bf16 %v938
        %v2051 = vunpack.c.h.s8.bf16 %v939
        %v2052 = vunpack.c.h.s8.bf16 %v940
        %v2053 = vunpack.c.h.s8.bf16 %v941
        %v2054 = vunpack.c.h.s8.bf16 %v942
        %v2055 = vunpack.c.h.s8.bf16 %v943
        %v2056 = vunpack.c.l.s8.bf16 %v944
        %v2057 = vunpack.c.l.s8.bf16 %v945
        %v2058 = vunpack.c.l.s8.bf16 %v946
        %v2059 = vunpack.c.l.s8.bf16 %v947
        %v2060 = vunpack.c.l.s8.bf16 %v948
        %v2061 = vunpack.c.l.s8.bf16 %v949
        %v2062 = vunpack.c.l.s8.bf16 %v950
        %v2063 = vunpack.c.l.s8.bf16 %v951
        %v2064 = vunpack.c.h.s8.bf16 %v944
        %v2065 = vunpack.c.h.s8.bf16 %v945
        %v2066 = vunpack.c.h.s8.bf16 %v946
        %v2067 = vunpack.c.h.s8.bf16 %v947
        %v2068 = vunpack.c.h.s8.bf16 %v948
        %v2069 = vunpack.c.h.s8.bf16 %v949
        %v2070 = vunpack.c.h.s8.bf16 %v950
        %v2071 = vunpack.c.h.s8.bf16 %v951
        %v2072 = vunpack.c.l.s8.bf16 %v952
        %v2073 = vunpack.c.l.s8.bf16 %v953
        %v2074 = vunpack.c.l.s8.bf16 %v954
        %v2075 = vunpack.c.l.s8.bf16 %v955
        %v2076 = vunpack.c.l.s8.bf16 %v956
        %v2077 = vunpack.c.l.s8.bf16 %v957
        %v2078 = vunpack.c.l.s8.bf16 %v958
        %v2079 = vunpack.c.l.s8.bf16 %v959
        %v2080 = vunpack.c.h.s8.bf16 %v952
        %v2081 = vunpack.c.h.s8.bf16 %v953
        %v2082 = vunpack.c.h.s8.bf16 %v954
        %v2083 = vunpack.c.h.s8.bf16 %v955
        %v2084 = vunpack.c.h.s8.bf16 %v956
        %v2085 = vunpack.c.h.s8.bf16 %v957
        %v2086 = vunpack.c.h.s8.bf16 %v958
        %v2087 = vunpack.c.h.s8.bf16 %v959
        %v2088 = vunpack.c.l.s8.bf16 %v960
        %v2089 = vunpack.c.l.s8.bf16 %v961
        %v2090 = vunpack.c.l.s8.bf16 %v962
        %v2091 = vunpack.c.l.s8.bf16 %v963
        %v2092 = vunpack.c.l.s8.bf16 %v964
        %v2093 = vunpack.c.l.s8.bf16 %v965
        %v2094 = vunpack.c.l.s8.bf16 %v966
        %v2095 = vunpack.c.l.s8.bf16 %v967
        %v2096 = vunpack.c.h.s8.bf16 %v960
        %v2097 = vunpack.c.h.s8.bf16 %v961
        %v2098 = vunpack.c.h.s8.bf16 %v962
        %v2099 = vunpack.c.h.s8.bf16 %v963
        %v2100 = vunpack.c.h.s8.bf16 %v964
        %v2101 = vunpack.c.h.s8.bf16 %v965
        %v2102 = vunpack.c.h.s8.bf16 %v966
        %v2103 = vunpack.c.h.s8.bf16 %v967
        %v2104 = vunpack.c.l.s8.bf16 %v968
        %v2105 = vunpack.c.l.s8.bf16 %v969
        %v2106 = vunpack.c.l.s8.bf16 %v970
        %v2107 = vunpack.c.l.s8.bf16 %v971
        %v2108 = vunpack.c.l.s8.bf16 %v972
        %v2109 = vunpack.c.l.s8.bf16 %v973
        %v2110 = vunpack.c.l.s8.bf16 %v974
        %v2111 = vunpack.c.l.s8.bf16 %v975
        %v2112 = vunpack.c.h.s8.bf16 %v968
        %v2113 = vunpack.c.h.s8.bf16 %v969
        %v2114 = vunpack.c.h.s8.bf16 %v970
        %v2115 = vunpack.c.h.s8.bf16 %v971
        %v2116 = vunpack.c.h.s8.bf16 %v972
        %v2117 = vunpack.c.h.s8.bf16 %v973
        %v2118 = vunpack.c.h.s8.bf16 %v974
        %v2119 = vunpack.c.h.s8.bf16 %v975
        %v2120 = vunpack.c.l.s8.bf16 %v976
        %v2121 = vunpack.c.l.s8.bf16 %v977
        %v2122 = vunpack.c.l.s8.bf16 %v978
        %v2123 = vunpack.c.l.s8.bf16 %v979
        %v2124 = vunpack.c.l.s8.bf16 %v980
        %v2125 = vunpack.c.l.s8.bf16 %v981
        %v2126 = vunpack.c.l.s8.bf16 %v982
        %v2127 = vunpack.c.l.s8.bf16 %v983
        %v2128 = vunpack.c.h.s8.bf16 %v976
        %v2129 = vunpack.c.h.s8.bf16 %v977
        %v2130 = vunpack.c.h.s8.bf16 %v978
        %v2131 = vunpack.c.h.s8.bf16 %v979
        %v2132 = vunpack.c.h.s8.bf16 %v980
        %v2133 = vunpack.c.h.s8.bf16 %v981
        %v2134 = vunpack.c.h.s8.bf16 %v982
        %v2135 = vunpack.c.h.s8.bf16 %v983
        %v2136 = vunpack.c.l.s8.bf16 %v984
        %v2137 = vunpack.c.l.s8.bf16 %v985
        %v2138 = vunpack.c.l.s8.bf16 %v986
        %v2139 = vunpack.c.l.s8.bf16 %v987
        %v2140 = vunpack.c.l.s8.bf16 %v988
        %v2141 = vunpack.c.l.s8.bf16 %v989
        %v2142 = vunpack.c.l.s8.bf16 %v990
        %v2143 = vunpack.c.l.s8.bf16 %v991
        %v2144 = vunpack.c.h.s8.bf16 %v984
        %v2145 = vunpack.c.h.s8.bf16 %v985
        %v2146 = vunpack.c.h.s8.bf16 %v986
        %v2147 = vunpack.c.h.s8.bf16 %v987
        %v2148 = vunpack.c.h.s8.bf16 %v988
        %v2149 = vunpack.c.h.s8.bf16 %v989
        %v2150 = vunpack.c.h.s8.bf16 %v990
        %v2151 = vunpack.c.h.s8.bf16 %v991
        %v2152 = vunpack.c.l.s8.bf16 %v992
        %v2153 = vunpack.c.l.s8.bf16 %v993
        %v2154 = vunpack.c.l.s8.bf16 %v994
        %v2155 = vunpack.c.l.s8.bf16 %v995
        %v2156 = vunpack.c.l.s8.bf16 %v996
        %v2157 = vunpack.c.l.s8.bf16 %v997
        %v2158 = vunpack.c.l.s8.bf16 %v998
        %v2159 = vunpack.c.l.s8.bf16 %v999
        %v2160 = vunpack.c.h.s8.bf16 %v992
        %v2161 = vunpack.c.h.s8.bf16 %v993
        %v2162 = vunpack.c.h.s8.bf16 %v994
        %v2163 = vunpack.c.h.s8.bf16 %v995
        %v2164 = vunpack.c.h.s8.bf16 %v996
        %v2165 = vunpack.c.h.s8.bf16 %v997
        %v2166 = vunpack.c.h.s8.bf16 %v998
        %v2167 = vunpack.c.h.s8.bf16 %v999
        %v2168 = vunpack.c.l.s8.bf16 %v1000
        %v2169 = vunpack.c.l.s8.bf16 %v1001
        %v2170 = vunpack.c.l.s8.bf16 %v1002
        %v2171 = vunpack.c.l.s8.bf16 %v1003
        %v2172 = vunpack.c.l.s8.bf16 %v1004
        %v2173 = vunpack.c.l.s8.bf16 %v1005
        %v2174 = vunpack.c.l.s8.bf16 %v1006
        %v2175 = vunpack.c.l.s8.bf16 %v1007
        %v2176 = vunpack.c.h.s8.bf16 %v1000
        %v2177 = vunpack.c.h.s8.bf16 %v1001
        %v2178 = vunpack.c.h.s8.bf16 %v1002
        %v2179 = vunpack.c.h.s8.bf16 %v1003
        %v2180 = vunpack.c.h.s8.bf16 %v1004
        %v2181 = vunpack.c.h.s8.bf16 %v1005
        %v2182 = vunpack.c.h.s8.bf16 %v1006
        %v2183 = vunpack.c.h.s8.bf16 %v1007
        %v2184 = vunpack.c.l.s8.bf16 %v1008
        %v2185 = vunpack.c.l.s8.bf16 %v1009
        %v2186 = vunpack.c.l.s8.bf16 %v1010
        %v2187 = vunpack.c.l.s8.bf16 %v1011
        %v2188 = vunpack.c.l.s8.bf16 %v1012
        %v2189 = vunpack.c.l.s8.bf16 %v1013
        %v2190 = vunpack.c.l.s8.bf16 %v1014
        %v2191 = vunpack.c.l.s8.bf16 %v1015
        %v2192 = vunpack.c.h.s8.bf16 %v1008
        %v2193 = vunpack.c.h.s8.bf16 %v1009
        %v2194 = vunpack.c.h.s8.bf16 %v1010
        %v2195 = vunpack.c.h.s8.bf16 %v1011
        %v2196 = vunpack.c.h.s8.bf16 %v1012
        %v2197 = vunpack.c.h.s8.bf16 %v1013
        %v2198 = vunpack.c.h.s8.bf16 %v1014
        %v2199 = vunpack.c.h.s8.bf16 %v1015
        %v2200 = vunpack.c.l.s8.bf16 %v1016
        %v2201 = vunpack.c.l.s8.bf16 %v1017
        %v2202 = vunpack.c.l.s8.bf16 %v1018
        %v2203 = vunpack.c.l.s8.bf16 %v1019
        %v2204 = vunpack.c.l.s8.bf16 %v1020
        %v2205 = vunpack.c.l.s8.bf16 %v1021
        %v2206 = vunpack.c.l.s8.bf16 %v1022
        %v2207 = vunpack.c.l.s8.bf16 %v1023
        %v2208 = vunpack.c.h.s8.bf16 %v1016
        %v2209 = vunpack.c.h.s8.bf16 %v1017
        %v2210 = vunpack.c.h.s8.bf16 %v1018
        %v2211 = vunpack.c.h.s8.bf16 %v1019
        %v2212 = vunpack.c.h.s8.bf16 %v1020
        %v2213 = vunpack.c.h.s8.bf16 %v1021
        %v2214 = vunpack.c.h.s8.bf16 %v1022
        %v2215 = vunpack.c.h.s8.bf16 %v1023
        %v2216 = vunpack.c.l.s8.bf16 %v1024
        %v2217 = vunpack.c.l.s8.bf16 %v1025
        %v2218 = vunpack.c.l.s8.bf16 %v1026
        %v2219 = vunpack.c.l.s8.bf16 %v1027
        %v2220 = vunpack.c.l.s8.bf16 %v1028
        %v2221 = vunpack.c.l.s8.bf16 %v1029
        %v2222 = vunpack.c.l.s8.bf16 %v1030
        %v2223 = vunpack.c.l.s8.bf16 %v1031
        %v2224 = vunpack.c.h.s8.bf16 %v1024
        %v2225 = vunpack.c.h.s8.bf16 %v1025
        %v2226 = vunpack.c.h.s8.bf16 %v1026
        %v2227 = vunpack.c.h.s8.bf16 %v1027
        %v2228 = vunpack.c.h.s8.bf16 %v1028
        %v2229 = vunpack.c.h.s8.bf16 %v1029
        %v2230 = vunpack.c.h.s8.bf16 %v1030
        %v2231 = vunpack.c.h.s8.bf16 %v1031
        %v2232 = vunpack.c.l.s8.bf16 %v1032
        %v2233 = vunpack.c.l.s8.bf16 %v1033
        %v2234 = vunpack.c.l.s8.bf16 %v1034
        %v2235 = vunpack.c.l.s8.bf16 %v1035
        %v2236 = vunpack.c.l.s8.bf16 %v1036
        %v2237 = vunpack.c.l.s8.bf16 %v1037
        %v2238 = vunpack.c.l.s8.bf16 %v1038
        %v2239 = vunpack.c.l.s8.bf16 %v1039
        %v2240 = vunpack.c.h.s8.bf16 %v1032
        %v2241 = vunpack.c.h.s8.bf16 %v1033
        %v2242 = vunpack.c.h.s8.bf16 %v1034
        %v2243 = vunpack.c.h.s8.bf16 %v1035
        %v2244 = vunpack.c.h.s8.bf16 %v1036
        %v2245 = vunpack.c.h.s8.bf16 %v1037
        %v2246 = vunpack.c.h.s8.bf16 %v1038
        %v2247 = vunpack.c.h.s8.bf16 %v1039
        %v2248 = vunpack.c.l.s8.bf16 %v1040
        %v2249 = vunpack.c.l.s8.bf16 %v1041
        %v2250 = vunpack.c.l.s8.bf16 %v1042
        %v2251 = vunpack.c.l.s8.bf16 %v1043
        %v2252 = vunpack.c.l.s8.bf16 %v1044
        %v2253 = vunpack.c.l.s8.bf16 %v1045
        %v2254 = vunpack.c.l.s8.bf16 %v1046
        %v2255 = vunpack.c.l.s8.bf16 %v1047
        %v2256 = vunpack.c.h.s8.bf16 %v1040
        %v2257 = vunpack.c.h.s8.bf16 %v1041
        %v2258 = vunpack.c.h.s8.bf16 %v1042
        %v2259 = vunpack.c.h.s8.bf16 %v1043
        %v2260 = vunpack.c.h.s8.bf16 %v1044
        %v2261 = vunpack.c.h.s8.bf16 %v1045
        %v2262 = vunpack.c.h.s8.bf16 %v1046
        %v2263 = vunpack.c.h.s8.bf16 %v1047
        %v2264 = vunpack.c.l.s8.bf16 %v1048
        %v2265 = vunpack.c.l.s8.bf16 %v1049
        %v2266 = vunpack.c.l.s8.bf16 %v1050
        %v2267 = vunpack.c.l.s8.bf16 %v1051
        %v2268 = vunpack.c.l.s8.bf16 %v1052
        %v2269 = vunpack.c.l.s8.bf16 %v1053
        %v2270 = vunpack.c.l.s8.bf16 %v1054
        %v2271 = vunpack.c.l.s8.bf16 %v1055
        %v2272 = vunpack.c.h.s8.bf16 %v1048
        %v2273 = vunpack.c.h.s8.bf16 %v1049
        %v2274 = vunpack.c.h.s8.bf16 %v1050
        %v2275 = vunpack.c.h.s8.bf16 %v1051
        %v2276 = vunpack.c.h.s8.bf16 %v1052
        %v2277 = vunpack.c.h.s8.bf16 %v1053
        %v2278 = vunpack.c.h.s8.bf16 %v1054
        %v2279 = vunpack.c.h.s8.bf16 %v1055
        %v2280 = vunpack.c.l.s8.bf16 %v1056
        %v2281 = vunpack.c.l.s8.bf16 %v1057
        %v2282 = vunpack.c.l.s8.bf16 %v1058
        %v2283 = vunpack.c.l.s8.bf16 %v1059
        %v2284 = vunpack.c.l.s8.bf16 %v1060
        %v2285 = vunpack.c.l.s8.bf16 %v1061
        %v2286 = vunpack.c.l.s8.bf16 %v1062
        %v2287 = vunpack.c.l.s8.bf16 %v1063
        %v2288 = vunpack.c.h.s8.bf16 %v1056
        %v2289 = vunpack.c.h.s8.bf16 %v1057
        %v2290 = vunpack.c.h.s8.bf16 %v1058
        %v2291 = vunpack.c.h.s8.bf16 %v1059
        %v2292 = vunpack.c.h.s8.bf16 %v1060
        %v2293 = vunpack.c.h.s8.bf16 %v1061
        %v2294 = vunpack.c.h.s8.bf16 %v1062
        %v2295 = vunpack.c.h.s8.bf16 %v1063
        %v2296 = vunpack.c.l.s8.bf16 %v1064
        %v2297 = vunpack.c.l.s8.bf16 %v1065
        %v2298 = vunpack.c.l.s8.bf16 %v1066
        %v2299 = vunpack.c.l.s8.bf16 %v1067
        %v2300 = vunpack.c.l.s8.bf16 %v1068
        %v2301 = vunpack.c.l.s8.bf16 %v1069
        %v2302 = vunpack.c.l.s8.bf16 %v1070
        %v2303 = vunpack.c.l.s8.bf16 %v1071
        %v2304 = vunpack.c.h.s8.bf16 %v1064
        %v2305 = vunpack.c.h.s8.bf16 %v1065
        %v2306 = vunpack.c.h.s8.bf16 %v1066
        %v2307 = vunpack.c.h.s8.bf16 %v1067
        %v2308 = vunpack.c.h.s8.bf16 %v1068
        %v2309 = vunpack.c.h.s8.bf16 %v1069
        %v2310 = vunpack.c.h.s8.bf16 %v1070
        %v2311 = vunpack.c.h.s8.bf16 %v1071
        %v2312 = vunpack.c.l.s8.bf16 %v1072
        %v2313 = vunpack.c.l.s8.bf16 %v1073
        %v2314 = vunpack.c.l.s8.bf16 %v1074
        %v2315 = vunpack.c.l.s8.bf16 %v1075
        %v2316 = vunpack.c.l.s8.bf16 %v1076
        %v2317 = vunpack.c.l.s8.bf16 %v1077
        %v2318 = vunpack.c.l.s8.bf16 %v1078
        %v2319 = vunpack.c.l.s8.bf16 %v1079
        %v2320 = vunpack.c.h.s8.bf16 %v1072
        %v2321 = vunpack.c.h.s8.bf16 %v1073
        %v2322 = vunpack.c.h.s8.bf16 %v1074
        %v2323 = vunpack.c.h.s8.bf16 %v1075
        %v2324 = vunpack.c.h.s8.bf16 %v1076
        %v2325 = vunpack.c.h.s8.bf16 %v1077
        %v2326 = vunpack.c.h.s8.bf16 %v1078
        %v2327 = vunpack.c.h.s8.bf16 %v1079
        %v2328 = vunpack.c.l.s8.bf16 %v1080
        %v2329 = vunpack.c.l.s8.bf16 %v1081
        %v2330 = vunpack.c.l.s8.bf16 %v1082
        %v2331 = vunpack.c.l.s8.bf16 %v1083
        %v2332 = vunpack.c.l.s8.bf16 %v1084
        %v2333 = vunpack.c.l.s8.bf16 %v1085
        %v2334 = vunpack.c.l.s8.bf16 %v1086
        %v2335 = vunpack.c.l.s8.bf16 %v1087
        %v2336 = vunpack.c.h.s8.bf16 %v1080
        %v2337 = vunpack.c.h.s8.bf16 %v1081
        %v2338 = vunpack.c.h.s8.bf16 %v1082
        %v2339 = vunpack.c.h.s8.bf16 %v1083
        %v2340 = vunpack.c.h.s8.bf16 %v1084
        %v2341 = vunpack.c.h.s8.bf16 %v1085
        %v2342 = vunpack.c.h.s8.bf16 %v1086
        %v2343 = vunpack.c.h.s8.bf16 %v1087
        %v2344 = vunpack.c.l.s8.bf16 %v1088
        %v2345 = vunpack.c.l.s8.bf16 %v1089
        %v2346 = vunpack.c.l.s8.bf16 %v1090
        %v2347 = vunpack.c.l.s8.bf16 %v1091
        %v2348 = vunpack.c.l.s8.bf16 %v1092
        %v2349 = vunpack.c.l.s8.bf16 %v1093
        %v2350 = vunpack.c.l.s8.bf16 %v1094
        %v2351 = vunpack.c.l.s8.bf16 %v1095
        %v2352 = vunpack.c.h.s8.bf16 %v1088
        %v2353 = vunpack.c.h.s8.bf16 %v1089
        %v2354 = vunpack.c.h.s8.bf16 %v1090
        %v2355 = vunpack.c.h.s8.bf16 %v1091
        %v2356 = vunpack.c.h.s8.bf16 %v1092
        %v2357 = vunpack.c.h.s8.bf16 %v1093
        %v2358 = vunpack.c.h.s8.bf16 %v1094
        %v2359 = vunpack.c.h.s8.bf16 %v1095
        %v2360 = vunpack.c.l.s8.bf16 %v1096
        %v2361 = vunpack.c.l.s8.bf16 %v1097
        %v2362 = vunpack.c.l.s8.bf16 %v1098
        %v2363 = vunpack.c.l.s8.bf16 %v1099
        %v2364 = vunpack.c.l.s8.bf16 %v1100
        %v2365 = vunpack.c.l.s8.bf16 %v1101
        %v2366 = vunpack.c.l.s8.bf16 %v1102
        %v2367 = vunpack.c.l.s8.bf16 %v1103
        %v2368 = vunpack.c.h.s8.bf16 %v1096
        %v2369 = vunpack.c.h.s8.bf16 %v1097
        %v2370 = vunpack.c.h.s8.bf16 %v1098
        %v2371 = vunpack.c.h.s8.bf16 %v1099
        %v2372 = vunpack.c.h.s8.bf16 %v1100
        %v2373 = vunpack.c.h.s8.bf16 %v1101
        %v2374 = vunpack.c.h.s8.bf16 %v1102
        %v2375 = vunpack.c.h.s8.bf16 %v1103
        %v2376 = vunpack.c.l.s8.bf16 %v1104
        %v2377 = vunpack.c.l.s8.bf16 %v1105
        %v2378 = vunpack.c.l.s8.bf16 %v1106
        %v2379 = vunpack.c.l.s8.bf16 %v1107
        %v2380 = vunpack.c.l.s8.bf16 %v1108
        %v2381 = vunpack.c.l.s8.bf16 %v1109
        %v2382 = vunpack.c.l.s8.bf16 %v1110
        %v2383 = vunpack.c.l.s8.bf16 %v1111
        %v2384 = vunpack.c.h.s8.bf16 %v1104
        %v2385 = vunpack.c.h.s8.bf16 %v1105
        %v2386 = vunpack.c.h.s8.bf16 %v1106
        %v2387 = vunpack.c.h.s8.bf16 %v1107
        %v2388 = vunpack.c.h.s8.bf16 %v1108
        %v2389 = vunpack.c.h.s8.bf16 %v1109
        %v2390 = vunpack.c.h.s8.bf16 %v1110
        %v2391 = vunpack.c.h.s8.bf16 %v1111
        %2392 = vmatprep.subr.bf16.mxu0 %v1113
        %2393 = vmatpush1.bf16.xpose.msra.mxu0 %v1112
        %2394 = vmatprep.subr.bf16.mxu0 %v1121
        %2395 = vmatpush1.bf16.xpose.msra.mxu0 %v1120
        %2396 = vmatprep.subr.bf16.mxu0 %v1129
        %2397 = vmatpush1.bf16.xpose.msra.mxu0 %v1128
        %2398 = vmatprep.subr.bf16.mxu0 %v1137
        %2399 = vmatpush1.bf16.xpose.msra.mxu0 %v1136
        %2400 = vmatprep.subr.bf16.mxu0 %v1145
        %2401 = vmatpush1.bf16.xpose.msra.mxu0 %v1144
        %2402 = vmatprep.subr.bf16.mxu0 %v1153
        %2403 = vmatpush1.bf16.xpose.msra.mxu0 %v1152
        %2404 = vmatprep.subr.bf16.mxu0 %v1161
        %2405 = vmatpush1.bf16.xpose.msra.mxu0 %v1160
        %2406 = vmatprep.subr.bf16.mxu0 %v1169
        %2407 = vmatpush1.bf16.xpose.msra.mxu0 %v1168
        %2408 = vmatprep.subr.bf16.mxu0 %v1177
        %2409 = vmatpush1.bf16.xpose.msra.mxu0 %v1176
        %2410 = vmatprep.subr.bf16.mxu0 %v1185
        %2411 = vmatpush1.bf16.xpose.msra.mxu0 %v1184
        %2412 = vmatprep.subr.bf16.mxu0 %v1193
        %2413 = vmatpush1.bf16.xpose.msra.mxu0 %v1192
        %2414 = vmatprep.subr.bf16.mxu0 %v1201
        %2415 = vmatpush1.bf16.xpose.msra.mxu0 %v1200
        %2416 = vmatprep.subr.bf16.mxu0 %v1209
        %2417 = vmatpush1.bf16.xpose.msra.mxu0 %v1208
        %2418 = vmatprep.subr.bf16.mxu0 %v1217
        %2419 = vmatpush1.bf16.xpose.msra.mxu0 %v1216
        %2420 = vmatprep.subr.bf16.mxu0 %v1225
        %2421 = vmatpush1.bf16.xpose.msra.mxu0 %v1224
        %2422 = vmatprep.subr.bf16.mxu0 %v1233
        %2423 = vmatpush1.bf16.xpose.msra.mxu0 %v1232
        %2424 = vmatprep.mubr.bf16.mxu0 %v465
        %2425 = vmatmul.mubr.bf16.gmra.mrb[0].mxu0 %v464
        %v2426 = vpop.f32.mrb[0].mxu0
        %v2427 = vadd.f32 0.0, %v2426
        %v2428 = vpop.f32.mrb[0].mxu0
        %v2429 = vadd.f32 0.0, %v2428
        %v2430 = vpop.f32.mrb[0].mxu0
        %v2431 = vpop.f32.mrb[0].mxu0
        %2432 = vdwg.mxu0
        %2433 = vmatprep.subr.bf16.mxu0 %v1115
        %2434 = vmatpush1.bf16.xpose.msra.mxu0 %v1114
        %2435 = vmatprep.subr.bf16.mxu0 %v1123
        %2436 = vmatpush1.bf16.xpose.msra.mxu0 %v1122
        %2437 = vmatprep.subr.bf16.mxu0 %v1131
        %2438 = vmatpush1.bf16.xpose.msra.mxu0 %v1130
        %2439 = vmatprep.subr.bf16.mxu0 %v1139
        %2440 = vmatpush1.bf16.xpose.msra.mxu0 %v1138
        %2441 = vmatprep.subr.bf16.mxu0 %v1147
        %2442 = vmatpush1.bf16.xpose.msra.mxu0 %v1146
        %2443 = vmatprep.subr.bf16.mxu0 %v1155
        %2444 = vmatpush1.bf16.xpose.msra.mxu0 %v1154
        %2445 = vmatprep.subr.bf16.mxu0 %v1163
        %2446 = vmatpush1.bf16.xpose.msra.mxu0 %v1162
        %2447 = vmatprep.subr.bf16.mxu0 %v1171
        %2448 = vmatpush1.bf16.xpose.msra.mxu0 %v1170
        %2449 = vmatprep.subr.bf16.mxu0 %v1179
        %2450 = vmatpush1.bf16.xpose.msra.mxu0 %v1178
        %2451 = vmatprep.subr.bf16.mxu0 %v1187
        %2452 = vmatpush1.bf16.xpose.msra.mxu0 %v1186
        %2453 = vmatprep.subr.bf16.mxu0 %v1195
        %2454 = vmatpush1.bf16.xpose.msra.mxu0 %v1194
        %2455 = vmatprep.subr.bf16.mxu0 %v1203
        %2456 = vmatpush1.bf16.xpose.msra.mxu0 %v1202
        %2457 = vmatprep.subr.bf16.mxu0 %v1211
        %2458 = vmatpush1.bf16.xpose.msra.mxu0 %v1210
        %2459 = vmatprep.subr.bf16.mxu0 %v1219
        %2460 = vmatpush1.bf16.xpose.msra.mxu0 %v1218
        %2461 = vmatprep.subr.bf16.mxu0 %v1227
        %2462 = vmatpush1.bf16.xpose.msra.mxu0 %v1226
        %2463 = vmatprep.subr.bf16.mxu0 %v1235
        %2464 = vmatpush1.bf16.xpose.msra.mxu0 %v1234
        %2465 = vmatprep.mubr.bf16.mxu0 %v467
        %2466 = vmatmul.mubr.bf16.gmra.mrb[0].mxu0 %v466
        %v2467 = vpop.f32.mrb[0].mxu0
        %v2468 = vadd.f32 %v2427, %v2467
        %v2469 = vpop.f32.mrb[0].mxu0
        %v2470 = vadd.f32 %v2429, %v2469
        %v2471 = vpop.f32.mrb[0].mxu0
        %v2472 = vpop.f32.mrb[0].mxu0
        %2473 = vdwg.mxu0
        %2474 = vmatprep.subr.bf16.mxu0 %v1117
        %2475 = vmatpush1.bf16.xpose.msra.mxu0 %v1116
        %2476 = vmatprep.subr.bf16.mxu0 %v1125
        %2477 = vmatpush1.bf16.xpose.msra.mxu0 %v1124
        %2478 = vmatprep.subr.bf16.mxu0 %v1133
        %2479 = vmatpush1.bf16.xpose.msra.mxu0 %v1132
        %2480 = vmatprep.subr.bf16.mxu0 %v1141
        %2481 = vmatpush1.bf16.xpose.msra.mxu0 %v1140
        %2482 = vmatprep.subr.bf16.mxu0 %v1149
        %2483 = vmatpush1.bf16.xpose.msra.mxu0 %v1148
        %2484 = vmatprep.subr.bf16.mxu0 %v1157
        %2485 = vmatpush1.bf16.xpose.msra.mxu0 %v1156
        %2486 = vmatprep.subr.bf16.mxu0 %v1165
        %2487 = vmatpush1.bf16.xpose.msra.mxu0 %v1164
        %2488 = vmatprep.subr.bf16.mxu0 %v1173
        %2489 = vmatpush1.bf16.xpose.msra.mxu0 %v1172
        %2490 = vmatprep.subr.bf16.mxu0 %v1181
        %2491 = vmatpush1.bf16.xpose.msra.mxu0 %v1180
        %2492 = vmatprep.subr.bf16.mxu0 %v1189
        %2493 = vmatpush1.bf16.xpose.msra.mxu0 %v1188
        %2494 = vmatprep.subr.bf16.mxu0 %v1197
        %2495 = vmatpush1.bf16.xpose.msra.mxu0 %v1196
        %2496 = vmatprep.subr.bf16.mxu0 %v1205
        %2497 = vmatpush1.bf16.xpose.msra.mxu0 %v1204
        %2498 = vmatprep.subr.bf16.mxu0 %v1213
        %2499 = vmatpush1.bf16.xpose.msra.mxu0 %v1212
        %2500 = vmatprep.subr.bf16.mxu0 %v1221
        %2501 = vmatpush1.bf16.xpose.msra.mxu0 %v1220
        %2502 = vmatprep.subr.bf16.mxu0 %v1229
        %2503 = vmatpush1.bf16.xpose.msra.mxu0 %v1228
        %2504 = vmatprep.subr.bf16.mxu0 %v1237
        %2505 = vmatpush1.bf16.xpose.msra.mxu0 %v1236
        %2506 = vmatprep.mubr.bf16.mxu0 %v469
        %2507 = vmatmul.mubr.bf16.gmra.mrb[0].mxu0 %v468
        %v2508 = vpop.f32.mrb[0].mxu0
        %v2509 = vadd.f32 %v2468, %v2508
        %v2510 = vpop.f32.mrb[0].mxu0
        %v2511 = vadd.f32 %v2470, %v2510
        %v2512 = vpop.f32.mrb[0].mxu0
        %v2513 = vpop.f32.mrb[0].mxu0
        %2514 = vdwg.mxu0
        %2515 = vmatprep.subr.bf16.mxu0 %v1119
        %2516 = vmatpush1.bf16.xpose.msra.mxu0 %v1118
        %2517 = vmatprep.subr.bf16.mxu0 %v1127
        %2518 = vmatpush1.bf16.xpose.msra.mxu0 %v1126
        %2519 = vmatprep.subr.bf16.mxu0 %v1135
        %2520 = vmatpush1.bf16.xpose.msra.mxu0 %v1134
        %2521 = vmatprep.subr.bf16.mxu0 %v1143
        %2522 = vmatpush1.bf16.xpose.msra.mxu0 %v1142
        %2523 = vmatprep.subr.bf16.mxu0 %v1151
        %2524 = vmatpush1.bf16.xpose.msra.mxu0 %v1150
        %2525 = vmatprep.subr.bf16.mxu0 %v1159
        %2526 = vmatpush1.bf16.xpose.msra.mxu0 %v1158
        %2527 = vmatprep.subr.bf16.mxu0 %v1167
        %2528 = vmatpush1.bf16.xpose.msra.mxu0 %v1166
        %2529 = vmatprep.subr.bf16.mxu0 %v1175
        %2530 = vmatpush1.bf16.xpose.msra.mxu0 %v1174
        %2531 = vmatprep.subr.bf16.mxu0 %v1183
        %2532 = vmatpush1.bf16.xpose.msra.mxu0 %v1182
        %2533 = vmatprep.subr.bf16.mxu0 %v1191
        %2534 = vmatpush1.bf16.xpose.msra.mxu0 %v1190
        %2535 = vmatprep.subr.bf16.mxu0 %v1199
        %2536 = vmatpush1.bf16.xpose.msra.mxu0 %v1198
        %2537 = vmatprep.subr.bf16.mxu0 %v1207
        %2538 = vmatpush1.bf16.xpose.msra.mxu0 %v1206
        %2539 = vmatprep.subr.bf16.mxu0 %v1215
        %2540 = vmatpush1.bf16.xpose.msra.mxu0 %v1214
        %2541 = vmatprep.subr.bf16.mxu0 %v1223
        %2542 = vmatpush1.bf16.xpose.msra.mxu0 %v1222
        %2543 = vmatprep.subr.bf16.mxu0 %v1231
        %2544 = vmatpush1.bf16.xpose.msra.mxu0 %v1230
        %2545 = vmatprep.subr.bf16.mxu0 %v1239
        %2546 = vmatpush1.bf16.xpose.msra.mxu0 %v1238
        %2547 = vmatprep.mubr.bf16.mxu0 %v471
        %2548 = vmatmul.mubr.bf16.gmra.mrb[0].mxu0 %v470
        %v2549 = vpop.f32.mrb[0].mxu0
        %v2550 = vadd.f32 %v2509, %v2549
        %v2551 = vpop.f32.mrb[0].mxu0
        %v2552 = vadd.f32 %v2511, %v2551
        %v2553 = vpop.f32.mrb[0].mxu0
        %v2554 = vpop.f32.mrb[0].mxu0
        %2555 = vdwg.mxu0
        %2556 = vmatprep.subr.bf16.mxu0 %v1241
        %2557 = vmatpush1.bf16.xpose.msra.mxu0 %v1240
        %2558 = vmatprep.subr.bf16.mxu0 %v1249
        %2559 = vmatpush1.bf16.xpose.msra.mxu0 %v1248
        %2560 = vmatprep.subr.bf16.mxu0 %v1257
        %2561 = vmatpush1.bf16.xpose.msra.mxu0 %v1256
        %2562 = vmatprep.subr.bf16.mxu0 %v1265
        %2563 = vmatpush1.bf16.xpose.msra.mxu0 %v1264
        %2564 = vmatprep.subr.bf16.mxu0 %v1273
        %2565 = vmatpush1.bf16.xpose.msra.mxu0 %v1272
        %2566 = vmatprep.subr.bf16.mxu0 %v1281
        %2567 = vmatpush1.bf16.xpose.msra.mxu0 %v1280
        %2568 = vmatprep.subr.bf16.mxu0 %v1289
        %2569 = vmatpush1.bf16.xpose.msra.mxu0 %v1288
        %2570 = vmatprep.subr.bf16.mxu0 %v1297
        %2571 = vmatpush1.bf16.xpose.msra.mxu0 %v1296
        %2572 = vmatprep.subr.bf16.mxu0 %v1305
        %2573 = vmatpush1.bf16.xpose.msra.mxu0 %v1304
        %2574 = vmatprep.subr.bf16.mxu0 %v1313
        %2575 = vmatpush1.bf16.xpose.msra.mxu0 %v1312
        %2576 = vmatprep.subr.bf16.mxu0 %v1321
        %2577 = vmatpush1.bf16.xpose.msra.mxu0 %v1320
        %2578 = vmatprep.subr.bf16.mxu0 %v1329
        %2579 = vmatpush1.bf16.xpose.msra.mxu0 %v1328
        %2580 = vmatprep.subr.bf16.mxu0 %v1337
        %2581 = vmatpush1.bf16.xpose.msra.mxu0 %v1336
        %2582 = vmatprep.subr.bf16.mxu0 %v1345
        %2583 = vmatpush1.bf16.xpose.msra.mxu0 %v1344
        %2584 = vmatprep.subr.bf16.mxu0 %v1353
        %2585 = vmatpush1.bf16.xpose.msra.mxu0 %v1352
        %2586 = vmatprep.subr.bf16.mxu0 %v1361
        %2587 = vmatpush1.bf16.xpose.msra.mxu0 %v1360
        %2588 = vmatprep.mubr.bf16.mxu0 %v465
        %2589 = vmatmul.mubr.bf16.gmra.mrb[0].mxu0 %v464
        %v2590 = vpop.f32.mrb[0].mxu0
        %v2591 = vadd.f32 0.0, %v2590
        %v2592 = vpop.f32.mrb[0].mxu0
        %v2593 = vadd.f32 0.0, %v2592
        %v2594 = vpop.f32.mrb[0].mxu0
        %v2595 = vpop.f32.mrb[0].mxu0
        %2596 = vdwg.mxu0
        %2597 = vmatprep.subr.bf16.mxu0 %v1243
        %2598 = vmatpush1.bf16.xpose.msra.mxu0 %v1242
        %2599 = vmatprep.subr.bf16.mxu0 %v1251
        %2600 = vmatpush1.bf16.xpose.msra.mxu0 %v1250
        %2601 = vmatprep.subr.bf16.mxu0 %v1259
        %2602 = vmatpush1.bf16.xpose.msra.mxu0 %v1258
        %2603 = vmatprep.subr.bf16.mxu0 %v1267
        %2604 = vmatpush1.bf16.xpose.msra.mxu0 %v1266
        %2605 = vmatprep.subr.bf16.mxu0 %v1275
        %2606 = vmatpush1.bf16.xpose.msra.mxu0 %v1274
        %2607 = vmatprep.subr.bf16.mxu0 %v1283
        %2608 = vmatpush1.bf16.xpose.msra.mxu0 %v1282
        %2609 = vmatprep.subr.bf16.mxu0 %v1291
        %2610 = vmatpush1.bf16.xpose.msra.mxu0 %v1290
        %2611 = vmatprep.subr.bf16.mxu0 %v1299
        %2612 = vmatpush1.bf16.xpose.msra.mxu0 %v1298
        %2613 = vmatprep.subr.bf16.mxu0 %v1307
        %2614 = vmatpush1.bf16.xpose.msra.mxu0 %v1306
        %2615 = vmatprep.subr.bf16.mxu0 %v1315
        %2616 = vmatpush1.bf16.xpose.msra.mxu0 %v1314
        %2617 = vmatprep.subr.bf16.mxu0 %v1323
        %2618 = vmatpush1.bf16.xpose.msra.mxu0 %v1322
        %2619 = vmatprep.subr.bf16.mxu0 %v1331
        %2620 = vmatpush1.bf16.xpose.msra.mxu0 %v1330
        %2621 = vmatprep.subr.bf16.mxu0 %v1339
        %2622 = vmatpush1.bf16.xpose.msra.mxu0 %v1338
        %2623 = vmatprep.subr.bf16.mxu0 %v1347
        %2624 = vmatpush1.bf16.xpose.msra.mxu0 %v1346
        %2625 = vmatprep.subr.bf16.mxu0 %v1355
        %2626 = vmatpush1.bf16.xpose.msra.mxu0 %v1354
        %2627 = vmatprep.subr.bf16.mxu0 %v1363
        %2628 = vmatpush1.bf16.xpose.msra.mxu0 %v1362
        %2629 = vmatprep.mubr.bf16.mxu0 %v467
        %2630 = vmatmul.mubr.bf16.gmra.mrb[0].mxu0 %v466
        %v2631 = vpop.f32.mrb[0].mxu0
        %v2632 = vadd.f32 %v2591, %v2631
        %v2633 = vpop.f32.mrb[0].mxu0
        %v2634 = vadd.f32 %v2593, %v2633
        %v2635 = vpop.f32.mrb[0].mxu0
        %v2636 = vpop.f32.mrb[0].mxu0
        %2637 = vdwg.mxu0
        %2638 = vmatprep.subr.bf16.mxu0 %v1245
        %2639 = vmatpush1.bf16.xpose.msra.mxu0 %v1244
        %2640 = vmatprep.subr.bf16.mxu0 %v1253
        %2641 = vmatpush1.bf16.xpose.msra.mxu0 %v1252
        %2642 = vmatprep.subr.bf16.mxu0 %v1261
        %2643 = vmatpush1.bf16.xpose.msra.mxu0 %v1260
        %2644 = vmatprep.subr.bf16.mxu0 %v1269
        %2645 = vmatpush1.bf16.xpose.msra.mxu0 %v1268
        %2646 = vmatprep.subr.bf16.mxu0 %v1277
        %2647 = vmatpush1.bf16.xpose.msra.mxu0 %v1276
        %2648 = vmatprep.subr.bf16.mxu0 %v1285
        %2649 = vmatpush1.bf16.xpose.msra.mxu0 %v1284
        %2650 = vmatprep.subr.bf16.mxu0 %v1293
        %2651 = vmatpush1.bf16.xpose.msra.mxu0 %v1292
        %2652 = vmatprep.subr.bf16.mxu0 %v1301
        %2653 = vmatpush1.bf16.xpose.msra.mxu0 %v1300
        %2654 = vmatprep.subr.bf16.mxu0 %v1309
        %2655 = vmatpush1.bf16.xpose.msra.mxu0 %v1308
        %2656 = vmatprep.subr.bf16.mxu0 %v1317
        %2657 = vmatpush1.bf16.xpose.msra.mxu0 %v1316
        %2658 = vmatprep.subr.bf16.mxu0 %v1325
        %2659 = vmatpush1.bf16.xpose.msra.mxu0 %v1324
        %2660 = vmatprep.subr.bf16.mxu0 %v1333
        %2661 = vmatpush1.bf16.xpose.msra.mxu0 %v1332
        %2662 = vmatprep.subr.bf16.mxu0 %v1341
        %2663 = vmatpush1.bf16.xpose.msra.mxu0 %v1340
        %2664 = vmatprep.subr.bf16.mxu0 %v1349
        %2665 = vmatpush1.bf16.xpose.msra.mxu0 %v1348
        %2666 = vmatprep.subr.bf16.mxu0 %v1357
        %2667 = vmatpush1.bf16.xpose.msra.mxu0 %v1356
        %2668 = vmatprep.subr.bf16.mxu0 %v1365
        %2669 = vmatpush1.bf16.xpose.msra.mxu0 %v1364
        %2670 = vmatprep.mubr.bf16.mxu0 %v469
        %2671 = vmatmul.mubr.bf16.gmra.mrb[0].mxu0 %v468
        %v2672 = vpop.f32.mrb[0].mxu0
        %v2673 = vadd.f32 %v2632, %v2672
        %v2674 = vpop.f32.mrb[0].mxu0
        %v2675 = vadd.f32 %v2634, %v2674
        %v2676 = vpop.f32.mrb[0].mxu0
        %v2677 = vpop.f32.mrb[0].mxu0
        %2678 = vdwg.mxu0
        %2679 = vmatprep.subr.bf16.mxu0 %v1247
        %2680 = vmatpush1.bf16.xpose.msra.mxu0 %v1246
        %2681 = vmatprep.subr.bf16.mxu0 %v1255
        %2682 = vmatpush1.bf16.xpose.msra.mxu0 %v1254
        %2683 = vmatprep.subr.bf16.mxu0 %v1263
        %2684 = vmatpush1.bf16.xpose.msra.mxu0 %v1262
        %2685 = vmatprep.subr.bf16.mxu0 %v1271
        %2686 = vmatpush1.bf16.xpose.msra.mxu0 %v1270
        %2687 = vmatprep.subr.bf16.mxu0 %v1279
        %2688 = vmatpush1.bf16.xpose.msra.mxu0 %v1278
        %2689 = vmatprep.subr.bf16.mxu0 %v1287
        %2690 = vmatpush1.bf16.xpose.msra.mxu0 %v1286
        %2691 = vmatprep.subr.bf16.mxu0 %v1295
        %2692 = vmatpush1.bf16.xpose.msra.mxu0 %v1294
        %2693 = vmatprep.subr.bf16.mxu0 %v1303
        %2694 = vmatpush1.bf16.xpose.msra.mxu0 %v1302
        %2695 = vmatprep.subr.bf16.mxu0 %v1311
        %2696 = vmatpush1.bf16.xpose.msra.mxu0 %v1310
        %2697 = vmatprep.subr.bf16.mxu0 %v1319
        %2698 = vmatpush1.bf16.xpose.msra.mxu0 %v1318
        %2699 = vmatprep.subr.bf16.mxu0 %v1327
        %2700 = vmatpush1.bf16.xpose.msra.mxu0 %v1326
        %2701 = vmatprep.subr.bf16.mxu0 %v1335
        %2702 = vmatpush1.bf16.xpose.msra.mxu0 %v1334
        %2703 = vmatprep.subr.bf16.mxu0 %v1343
        %2704 = vmatpush1.bf16.xpose.msra.mxu0 %v1342
        %2705 = vmatprep.subr.bf16.mxu0 %v1351
        %2706 = vmatpush1.bf16.xpose.msra.mxu0 %v1350
        %2707 = vmatprep.subr.bf16.mxu0 %v1359
        %2708 = vmatpush1.bf16.xpose.msra.mxu0 %v1358
        %2709 = vmatprep.subr.bf16.mxu0 %v1367
        %2710 = vmatpush1.bf16.xpose.msra.mxu0 %v1366
        %2711 = vmatprep.mubr.bf16.mxu0 %v471
        %2712 = vmatmul.mubr.bf16.gmra.mrb[0].mxu0 %v470
        %v2713 = vpop.f32.mrb[0].mxu0
        %v2714 = vadd.f32 %v2673, %v2713
        %v2715 = vpop.f32.mrb[0].mxu0
        %v2716 = vadd.f32 %v2675, %v2715
        %v2717 = vpop.f32.mrb[0].mxu0
        %v2718 = vpop.f32.mrb[0].mxu0
        %2719 = vdwg.mxu0
        %2720 = vmatprep.subr.bf16.mxu0 %v1369
        %2721 = vmatpush1.bf16.xpose.msra.mxu0 %v1368
        %2722 = vmatprep.subr.bf16.mxu0 %v1377
        %2723 = vmatpush1.bf16.xpose.msra.mxu0 %v1376
        %2724 = vmatprep.subr.bf16.mxu0 %v1385
        %2725 = vmatpush1.bf16.xpose.msra.mxu0 %v1384
        %2726 = vmatprep.subr.bf16.mxu0 %v1393
        %2727 = vmatpush1.bf16.xpose.msra.mxu0 %v1392
        %2728 = vmatprep.subr.bf16.mxu0 %v1401
        %2729 = vmatpush1.bf16.xpose.msra.mxu0 %v1400
        %2730 = vmatprep.subr.bf16.mxu0 %v1409
        %2731 = vmatpush1.bf16.xpose.msra.mxu0 %v1408
        %2732 = vmatprep.subr.bf16.mxu0 %v1417
        %2733 = vmatpush1.bf16.xpose.msra.mxu0 %v1416
        %2734 = vmatprep.subr.bf16.mxu0 %v1425
        %2735 = vmatpush1.bf16.xpose.msra.mxu0 %v1424
        %2736 = vmatprep.subr.bf16.mxu0 %v1433
        %2737 = vmatpush1.bf16.xpose.msra.mxu0 %v1432
        %2738 = vmatprep.subr.bf16.mxu0 %v1441
        %2739 = vmatpush1.bf16.xpose.msra.mxu0 %v1440
        %2740 = vmatprep.subr.bf16.mxu0 %v1449
        %2741 = vmatpush1.bf16.xpose.msra.mxu0 %v1448
        %2742 = vmatprep.subr.bf16.mxu0 %v1457
        %2743 = vmatpush1.bf16.xpose.msra.mxu0 %v1456
        %2744 = vmatprep.subr.bf16.mxu0 %v1465
        %2745 = vmatpush1.bf16.xpose.msra.mxu0 %v1464
        %2746 = vmatprep.subr.bf16.mxu0 %v1473
        %2747 = vmatpush1.bf16.xpose.msra.mxu0 %v1472
        %2748 = vmatprep.subr.bf16.mxu0 %v1481
        %2749 = vmatpush1.bf16.xpose.msra.mxu0 %v1480
        %2750 = vmatprep.subr.bf16.mxu0 %v1489
        %2751 = vmatpush1.bf16.xpose.msra.mxu0 %v1488
        %2752 = vmatprep.mubr.bf16.mxu0 %v465
        %2753 = vmatmul.mubr.bf16.gmra.mrb[0].mxu0 %v464
        %v2754 = vpop.f32.mrb[0].mxu0
        %v2755 = vadd.f32 0.0, %v2754
        %v2756 = vpop.f32.mrb[0].mxu0
        %v2757 = vadd.f32 0.0, %v2756
        %v2758 = vpop.f32.mrb[0].mxu0
        %v2759 = vpop.f32.mrb[0].mxu0
        %2760 = vdwg.mxu0
        %2761 = vmatprep.subr.bf16.mxu0 %v1371
        %2762 = vmatpush1.bf16.xpose.msra.mxu0 %v1370
        %2763 = vmatprep.subr.bf16.mxu0 %v1379
        %2764 = vmatpush1.bf16.xpose.msra.mxu0 %v1378
        %2765 = vmatprep.subr.bf16.mxu0 %v1387
        %2766 = vmatpush1.bf16.xpose.msra.mxu0 %v1386
        %2767 = vmatprep.subr.bf16.mxu0 %v1395
        %2768 = vmatpush1.bf16.xpose.msra.mxu0 %v1394
        %2769 = vmatprep.subr.bf16.mxu0 %v1403
        %2770 = vmatpush1.bf16.xpose.msra.mxu0 %v1402
        %2771 = vmatprep.subr.bf16.mxu0 %v1411
        %2772 = vmatpush1.bf16.xpose.msra.mxu0 %v1410
        %2773 = vmatprep.subr.bf16.mxu0 %v1419
        %2774 = vmatpush1.bf16.xpose.msra.mxu0 %v1418
        %2775 = vmatprep.subr.bf16.mxu0 %v1427
        %2776 = vmatpush1.bf16.xpose.msra.mxu0 %v1426
        %2777 = vmatprep.subr.bf16.mxu0 %v1435
        %2778 = vmatpush1.bf16.xpose.msra.mxu0 %v1434
        %2779 = vmatprep.subr.bf16.mxu0 %v1443
        %2780 = vmatpush1.bf16.xpose.msra.mxu0 %v1442
        %2781 = vmatprep.subr.bf16.mxu0 %v1451
        %2782 = vmatpush1.bf16.xpose.msra.mxu0 %v1450
        %2783 = vmatprep.subr.bf16.mxu0 %v1459
        %2784 = vmatpush1.bf16.xpose.msra.mxu0 %v1458
        %2785 = vmatprep.subr.bf16.mxu0 %v1467
        %2786 = vmatpush1.bf16.xpose.msra.mxu0 %v1466
        %2787 = vmatprep.subr.bf16.mxu0 %v1475
        %2788 = vmatpush1.bf16.xpose.msra.mxu0 %v1474
        %2789 = vmatprep.subr.bf16.mxu0 %v1483
        %2790 = vmatpush1.bf16.xpose.msra.mxu0 %v1482
        %2791 = vmatprep.subr.bf16.mxu0 %v1491
        %2792 = vmatpush1.bf16.xpose.msra.mxu0 %v1490
        %2793 = vmatprep.mubr.bf16.mxu0 %v467
        %2794 = vmatmul.mubr.bf16.gmra.mrb[0].mxu0 %v466
        %v2795 = vpop.f32.mrb[0].mxu0
        %v2796 = vadd.f32 %v2755, %v2795
        %v2797 = vpop.f32.mrb[0].mxu0
        %v2798 = vadd.f32 %v2757, %v2797
        %v2799 = vpop.f32.mrb[0].mxu0
        %v2800 = vpop.f32.mrb[0].mxu0
        %2801 = vdwg.mxu0
        %2802 = vmatprep.subr.bf16.mxu0 %v1373
        %2803 = vmatpush1.bf16.xpose.msra.mxu0 %v1372
        %2804 = vmatprep.subr.bf16.mxu0 %v1381
        %2805 = vmatpush1.bf16.xpose.msra.mxu0 %v1380
        %2806 = vmatprep.subr.bf16.mxu0 %v1389
        %2807 = vmatpush1.bf16.xpose.msra.mxu0 %v1388
        %2808 = vmatprep.subr.bf16.mxu0 %v1397
        %2809 = vmatpush1.bf16.xpose.msra.mxu0 %v1396
        %2810 = vmatprep.subr.bf16.mxu0 %v1405
        %2811 = vmatpush1.bf16.xpose.msra.mxu0 %v1404
        %2812 = vmatprep.subr.bf16.mxu0 %v1413
        %2813 = vmatpush1.bf16.xpose.msra.mxu0 %v1412
        %2814 = vmatprep.subr.bf16.mxu0 %v1421
        %2815 = vmatpush1.bf16.xpose.msra.mxu0 %v1420
        %2816 = vmatprep.subr.bf16.mxu0 %v1429
        %2817 = vmatpush1.bf16.xpose.msra.mxu0 %v1428
        %2818 = vmatprep.subr.bf16.mxu0 %v1437
        %2819 = vmatpush1.bf16.xpose.msra.mxu0 %v1436
        %2820 = vmatprep.subr.bf16.mxu0 %v1445
        %2821 = vmatpush1.bf16.xpose.msra.mxu0 %v1444
        %2822 = vmatprep.subr.bf16.mxu0 %v1453
        %2823 = vmatpush1.bf16.xpose.msra.mxu0 %v1452
        %2824 = vmatprep.subr.bf16.mxu0 %v1461
        %2825 = vmatpush1.bf16.xpose.msra.mxu0 %v1460
        %2826 = vmatprep.subr.bf16.mxu0 %v1469
        %2827 = vmatpush1.bf16.xpose.msra.mxu0 %v1468
        %2828 = vmatprep.subr.bf16.mxu0 %v1477
        %2829 = vmatpush1.bf16.xpose.msra.mxu0 %v1476
        %2830 = vmatprep.subr.bf16.mxu0 %v1485
        %2831 = vmatpush1.bf16.xpose.msra.mxu0 %v1484
        %2832 = vmatprep.subr.bf16.mxu0 %v1493
        %2833 = vmatpush1.bf16.xpose.msra.mxu0 %v1492
        %2834 = vmatprep.mubr.bf16.mxu0 %v469
        %2835 = vmatmul.mubr.bf16.gmra.mrb[0].mxu0 %v468
        %v2836 = vpop.f32.mrb[0].mxu0
        %v2837 = vadd.f32 %v2796, %v2836
        %v2838 = vpop.f32.mrb[0].mxu0
        %v2839 = vadd.f32 %v2798, %v2838
        %v2840 = vpop.f32.mrb[0].mxu0
        %v2841 = vpop.f32.mrb[0].mxu0
        %2842 = vdwg.mxu0
        %2843 = vmatprep.subr.bf16.mxu0 %v1375
        %2844 = vmatpush1.bf16.xpose.msra.mxu0 %v1374
        %2845 = vmatprep.subr.bf16.mxu0 %v1383
        %2846 = vmatpush1.bf16.xpose.msra.mxu0 %v1382
        %2847 = vmatprep.subr.bf16.mxu0 %v1391
        %2848 = vmatpush1.bf16.xpose.msra.mxu0 %v1390
        %2849 = vmatprep.subr.bf16.mxu0 %v1399
        %2850 = vmatpush1.bf16.xpose.msra.mxu0 %v1398
        %2851 = vmatprep.subr.bf16.mxu0 %v1407
        %2852 = vmatpush1.bf16.xpose.msra.mxu0 %v1406
        %2853 = vmatprep.subr.bf16.mxu0 %v1415
        %2854 = vmatpush1.bf16.xpose.msra.mxu0 %v1414
        %2855 = vmatprep.subr.bf16.mxu0 %v1423
        %2856 = vmatpush1.bf16.xpose.msra.mxu0 %v1422
        %2857 = vmatprep.subr.bf16.mxu0 %v1431
        %2858 = vmatpush1.bf16.xpose.msra.mxu0 %v1430
        %2859 = vmatprep.subr.bf16.mxu0 %v1439
        %2860 = vmatpush1.bf16.xpose.msra.mxu0 %v1438
        %2861 = vmatprep.subr.bf16.mxu0 %v1447
        %2862 = vmatpush1.bf16.xpose.msra.mxu0 %v1446
        %2863 = vmatprep.subr.bf16.mxu0 %v1455
        %2864 = vmatpush1.bf16.xpose.msra.mxu0 %v1454
        %2865 = vmatprep.subr.bf16.mxu0 %v1463
        %2866 = vmatpush1.bf16.xpose.msra.mxu0 %v1462
        %2867 = vmatprep.subr.bf16.mxu0 %v1471
        %2868 = vmatpush1.bf16.xpose.msra.mxu0 %v1470
        %2869 = vmatprep.subr.bf16.mxu0 %v1479
        %2870 = vmatpush1.bf16.xpose.msra.mxu0 %v1478
        %2871 = vmatprep.subr.bf16.mxu0 %v1487
        %2872 = vmatpush1.bf16.xpose.msra.mxu0 %v1486
        %2873 = vmatprep.subr.bf16.mxu0 %v1495
        %2874 = vmatpush1.bf16.xpose.msra.mxu0 %v1494
        %2875 = vmatprep.mubr.bf16.mxu0 %v471
        %2876 = vmatmul.mubr.bf16.gmra.mrb[0].mxu0 %v470
        %v2877 = vpop.f32.mrb[0].mxu0
        %v2878 = vadd.f32 %v2837, %v2877
        %v2879 = vpop.f32.mrb[0].mxu0
        %v2880 = vadd.f32 %v2839, %v2879
        %v2881 = vpop.f32.mrb[0].mxu0
        %v2882 = vpop.f32.mrb[0].mxu0
        %2883 = vdwg.mxu0
        %2884 = vmatprep.subr.bf16.mxu0 %v1497
        %2885 = vmatpush1.bf16.xpose.msra.mxu0 %v1496
        %2886 = vmatprep.subr.bf16.mxu0 %v1505
        %2887 = vmatpush1.bf16.xpose.msra.mxu0 %v1504
        %2888 = vmatprep.subr.bf16.mxu0 %v1513
        %2889 = vmatpush1.bf16.xpose.msra.mxu0 %v1512
        %2890 = vmatprep.subr.bf16.mxu0 %v1521
        %2891 = vmatpush1.bf16.xpose.msra.mxu0 %v1520
        %2892 = vmatprep.subr.bf16.mxu0 %v1529
        %2893 = vmatpush1.bf16.xpose.msra.mxu0 %v1528
        %2894 = vmatprep.subr.bf16.mxu0 %v1537
        %2895 = vmatpush1.bf16.xpose.msra.mxu0 %v1536
        %2896 = vmatprep.subr.bf16.mxu0 %v1545
        %2897 = vmatpush1.bf16.xpose.msra.mxu0 %v1544
        %2898 = vmatprep.subr.bf16.mxu0 %v1553
        %2899 = vmatpush1.bf16.xpose.msra.mxu0 %v1552
        %2900 = vmatprep.subr.bf16.mxu0 %v1561
        %2901 = vmatpush1.bf16.xpose.msra.mxu0 %v1560
        %2902 = vmatprep.subr.bf16.mxu0 %v1569
        %2903 = vmatpush1.bf16.xpose.msra.mxu0 %v1568
        %2904 = vmatprep.subr.bf16.mxu0 %v1577
        %2905 = vmatpush1.bf16.xpose.msra.mxu0 %v1576
        %2906 = vmatprep.subr.bf16.mxu0 %v1585
        %2907 = vmatpush1.bf16.xpose.msra.mxu0 %v1584
        %2908 = vmatprep.subr.bf16.mxu0 %v1593
        %2909 = vmatpush1.bf16.xpose.msra.mxu0 %v1592
        %2910 = vmatprep.subr.bf16.mxu0 %v1601
        %2911 = vmatpush1.bf16.xpose.msra.mxu0 %v1600
        %2912 = vmatprep.subr.bf16.mxu0 %v1609
        %2913 = vmatpush1.bf16.xpose.msra.mxu0 %v1608
        %2914 = vmatprep.subr.bf16.mxu0 %v1617
        %2915 = vmatpush1.bf16.xpose.msra.mxu0 %v1616
        %2916 = vmatprep.mubr.bf16.mxu0 %v465
        %2917 = vmatmul.mubr.bf16.gmra.mrb[0].mxu0 %v464
        %v2918 = vpop.f32.mrb[0].mxu0
        %v2919 = vadd.f32 0.0, %v2918
        %v2920 = vpop.f32.mrb[0].mxu0
        %v2921 = vadd.f32 0.0, %v2920
        %v2922 = vpop.f32.mrb[0].mxu0
        %v2923 = vpop.f32.mrb[0].mxu0
        %2924 = vdwg.mxu0
        %2925 = vmatprep.subr.bf16.mxu0 %v1499
        %2926 = vmatpush1.bf16.xpose.msra.mxu0 %v1498
        %2927 = vmatprep.subr.bf16.mxu0 %v1507
        %2928 = vmatpush1.bf16.xpose.msra.mxu0 %v1506
        %2929 = vmatprep.subr.bf16.mxu0 %v1515
        %2930 = vmatpush1.bf16.xpose.msra.mxu0 %v1514
        %2931 = vmatprep.subr.bf16.mxu0 %v1523
        %2932 = vmatpush1.bf16.xpose.msra.mxu0 %v1522
        %2933 = vmatprep.subr.bf16.mxu0 %v1531
        %2934 = vmatpush1.bf16.xpose.msra.mxu0 %v1530
        %2935 = vmatprep.subr.bf16.mxu0 %v1539
        %2936 = vmatpush1.bf16.xpose.msra.mxu0 %v1538
        %2937 = vmatprep.subr.bf16.mxu0 %v1547
        %2938 = vmatpush1.bf16.xpose.msra.mxu0 %v1546
        %2939 = vmatprep.subr.bf16.mxu0 %v1555
        %2940 = vmatpush1.bf16.xpose.msra.mxu0 %v1554
        %2941 = vmatprep.subr.bf16.mxu0 %v1563
        %2942 = vmatpush1.bf16.xpose.msra.mxu0 %v1562
        %2943 = vmatprep.subr.bf16.mxu0 %v1571
        %2944 = vmatpush1.bf16.xpose.msra.mxu0 %v1570
        %2945 = vmatprep.subr.bf16.mxu0 %v1579
        %2946 = vmatpush1.bf16.xpose.msra.mxu0 %v1578
        %2947 = vmatprep.subr.bf16.mxu0 %v1587
        %2948 = vmatpush1.bf16.xpose.msra.mxu0 %v1586
        %2949 = vmatprep.subr.bf16.mxu0 %v1595
        %2950 = vmatpush1.bf16.xpose.msra.mxu0 %v1594
        %2951 = vmatprep.subr.bf16.mxu0 %v1603
        %2952 = vmatpush1.bf16.xpose.msra.mxu0 %v1602
        %2953 = vmatprep.subr.bf16.mxu0 %v1611
        %2954 = vmatpush1.bf16.xpose.msra.mxu0 %v1610
        %2955 = vmatprep.subr.bf16.mxu0 %v1619
        %2956 = vmatpush1.bf16.xpose.msra.mxu0 %v1618
        %2957 = vmatprep.mubr.bf16.mxu0 %v467
        %2958 = vmatmul.mubr.bf16.gmra.mrb[0].mxu0 %v466
        %v2959 = vpop.f32.mrb[0].mxu0
        %v2960 = vadd.f32 %v2919, %v2959
        %v2961 = vpop.f32.mrb[0].mxu0
        %v2962 = vadd.f32 %v2921, %v2961
        %v2963 = vpop.f32.mrb[0].mxu0
        %v2964 = vpop.f32.mrb[0].mxu0
        %2965 = vdwg.mxu0
        %2966 = vmatprep.subr.bf16.mxu0 %v1501
        %2967 = vmatpush1.bf16.xpose.msra.mxu0 %v1500
        %2968 = vmatprep.subr.bf16.mxu0 %v1509
        %2969 = vmatpush1.bf16.xpose.msra.mxu0 %v1508
        %2970 = vmatprep.subr.bf16.mxu0 %v1517
        %2971 = vmatpush1.bf16.xpose.msra.mxu0 %v1516
        %2972 = vmatprep.subr.bf16.mxu0 %v1525
        %2973 = vmatpush1.bf16.xpose.msra.mxu0 %v1524
        %2974 = vmatprep.subr.bf16.mxu0 %v1533
        %2975 = vmatpush1.bf16.xpose.msra.mxu0 %v1532
        %2976 = vmatprep.subr.bf16.mxu0 %v1541
        %2977 = vmatpush1.bf16.xpose.msra.mxu0 %v1540
        %2978 = vmatprep.subr.bf16.mxu0 %v1549
        %2979 = vmatpush1.bf16.xpose.msra.mxu0 %v1548
        %2980 = vmatprep.subr.bf16.mxu0 %v1557
        %2981 = vmatpush1.bf16.xpose.msra.mxu0 %v1556
        %2982 = vmatprep.subr.bf16.mxu0 %v1565
        %2983 = vmatpush1.bf16.xpose.msra.mxu0 %v1564
        %2984 = vmatprep.subr.bf16.mxu0 %v1573
        %2985 = vmatpush1.bf16.xpose.msra.mxu0 %v1572
        %2986 = vmatprep.subr.bf16.mxu0 %v1581
        %2987 = vmatpush1.bf16.xpose.msra.mxu0 %v1580
        %2988 = vmatprep.subr.bf16.mxu0 %v1589
        %2989 = vmatpush1.bf16.xpose.msra.mxu0 %v1588
        %2990 = vmatprep.subr.bf16.mxu0 %v1597
        %2991 = vmatpush1.bf16.xpose.msra.mxu0 %v1596
        %2992 = vmatprep.subr.bf16.mxu0 %v1605
        %2993 = vmatpush1.bf16.xpose.msra.mxu0 %v1604
        %2994 = vmatprep.subr.bf16.mxu0 %v1613
        %2995 = vmatpush1.bf16.xpose.msra.mxu0 %v1612
        %2996 = vmatprep.subr.bf16.mxu0 %v1621
        %2997 = vmatpush1.bf16.xpose.msra.mxu0 %v1620
        %2998 = vmatprep.mubr.bf16.mxu0 %v469
        %2999 = vmatmul.mubr.bf16.gmra.mrb[0].mxu0 %v468
        %v3000 = vpop.f32.mrb[0].mxu0
        %v3001 = vadd.f32 %v2960, %v3000
        %v3002 = vpop.f32.mrb[0].mxu0
        %v3003 = vadd.f32 %v2962, %v3002
        %v3004 = vpop.f32.mrb[0].mxu0
        %v3005 = vpop.f32.mrb[0].mxu0
        %3006 = vdwg.mxu0
        %3007 = vmatprep.subr.bf16.mxu0 %v1503
        %3008 = vmatpush1.bf16.xpose.msra.mxu0 %v1502
        %3009 = vmatprep.subr.bf16.mxu0 %v1511
        %3010 = vmatpush1.bf16.xpose.msra.mxu0 %v1510
        %3011 = vmatprep.subr.bf16.mxu0 %v1519
        %3012 = vmatpush1.bf16.xpose.msra.mxu0 %v1518
        %3013 = vmatprep.subr.bf16.mxu0 %v1527
        %3014 = vmatpush1.bf16.xpose.msra.mxu0 %v1526
        %3015 = vmatprep.subr.bf16.mxu0 %v1535
        %3016 = vmatpush1.bf16.xpose.msra.mxu0 %v1534
        %3017 = vmatprep.subr.bf16.mxu0 %v1543
        %3018 = vmatpush1.bf16.xpose.msra.mxu0 %v1542
        %3019 = vmatprep.subr.bf16.mxu0 %v1551
        %3020 = vmatpush1.bf16.xpose.msra.mxu0 %v1550
        %3021 = vmatprep.subr.bf16.mxu0 %v1559
        %3022 = vmatpush1.bf16.xpose.msra.mxu0 %v1558
        %3023 = vmatprep.subr.bf16.mxu0 %v1567
        %3024 = vmatpush1.bf16.xpose.msra.mxu0 %v1566
        %3025 = vmatprep.subr.bf16.mxu0 %v1575
        %3026 = vmatpush1.bf16.xpose.msra.mxu0 %v1574
        %3027 = vmatprep.subr.bf16.mxu0 %v1583
        %3028 = vmatpush1.bf16.xpose.msra.mxu0 %v1582
        %3029 = vmatprep.subr.bf16.mxu0 %v1591
        %3030 = vmatpush1.bf16.xpose.msra.mxu0 %v1590
        %3031 = vmatprep.subr.bf16.mxu0 %v1599
        %3032 = vmatpush1.bf16.xpose.msra.mxu0 %v1598
        %3033 = vmatprep.subr.bf16.mxu0 %v1607
        %3034 = vmatpush1.bf16.xpose.msra.mxu0 %v1606
        %3035 = vmatprep.subr.bf16.mxu0 %v1615
        %3036 = vmatpush1.bf16.xpose.msra.mxu0 %v1614
        %3037 = vmatprep.subr.bf16.mxu0 %v1623
        %3038 = vmatpush1.bf16.xpose.msra.mxu0 %v1622
        %3039 = vmatprep.mubr.bf16.mxu0 %v471
        %3040 = vmatmul.mubr.bf16.gmra.mrb[0].mxu0 %v470
        %v3041 = vpop.f32.mrb[0].mxu0
        %v3042 = vadd.f32 %v3001, %v3041
        %v3043 = vpop.f32.mrb[0].mxu0
        %v3044 = vadd.f32 %v3003, %v3043
        %v3045 = vpop.f32.mrb[0].mxu0
        %v3046 = vpop.f32.mrb[0].mxu0
        %3047 = vdwg.mxu0
        %3048 = vmatprep.subr.bf16.mxu0 %v1625
        %3049 = vmatpush1.bf16.xpose.msra.mxu0 %v1624
        %3050 = vmatprep.subr.bf16.mxu0 %v1633
        %3051 = vmatpush1.bf16.xpose.msra.mxu0 %v1632
        %3052 = vmatprep.subr.bf16.mxu0 %v1641
        %3053 = vmatpush1.bf16.xpose.msra.mxu0 %v1640
        %3054 = vmatprep.subr.bf16.mxu0 %v1649
        %3055 = vmatpush1.bf16.xpose.msra.mxu0 %v1648
        %3056 = vmatprep.subr.bf16.mxu0 %v1657
        %3057 = vmatpush1.bf16.xpose.msra.mxu0 %v1656
        %3058 = vmatprep.subr.bf16.mxu0 %v1665
        %3059 = vmatpush1.bf16.xpose.msra.mxu0 %v1664
        %3060 = vmatprep.subr.bf16.mxu0 %v1673
        %3061 = vmatpush1.bf16.xpose.msra.mxu0 %v1672
        %3062 = vmatprep.subr.bf16.mxu0 %v1681
        %3063 = vmatpush1.bf16.xpose.msra.mxu0 %v1680
        %3064 = vmatprep.subr.bf16.mxu0 %v1689
        %3065 = vmatpush1.bf16.xpose.msra.mxu0 %v1688
        %3066 = vmatprep.subr.bf16.mxu0 %v1697
        %3067 = vmatpush1.bf16.xpose.msra.mxu0 %v1696
        %3068 = vmatprep.subr.bf16.mxu0 %v1705
        %3069 = vmatpush1.bf16.xpose.msra.mxu0 %v1704
        %3070 = vmatprep.subr.bf16.mxu0 %v1713
        %3071 = vmatpush1.bf16.xpose.msra.mxu0 %v1712
        %3072 = vmatprep.subr.bf16.mxu0 %v1721
        %3073 = vmatpush1.bf16.xpose.msra.mxu0 %v1720
        %3074 = vmatprep.subr.bf16.mxu0 %v1729
        %3075 = vmatpush1.bf16.xpose.msra.mxu0 %v1728
        %3076 = vmatprep.subr.bf16.mxu0 %v1737
        %3077 = vmatpush1.bf16.xpose.msra.mxu0 %v1736
        %3078 = vmatprep.subr.bf16.mxu0 %v1745
        %3079 = vmatpush1.bf16.xpose.msra.mxu0 %v1744
        %3080 = vmatprep.mubr.bf16.mxu0 %v465
        %3081 = vmatmul.mubr.bf16.gmra.mrb[0].mxu0 %v464
        %v3082 = vpop.f32.mrb[0].mxu0
        %v3083 = vadd.f32 0.0, %v3082
        %v3084 = vpop.f32.mrb[0].mxu0
        %v3085 = vadd.f32 0.0, %v3084
        %v3086 = vpop.f32.mrb[0].mxu0
        %v3087 = vpop.f32.mrb[0].mxu0
        %3088 = vdwg.mxu0
        %3089 = vmatprep.subr.bf16.mxu0 %v1627
        %3090 = vmatpush1.bf16.xpose.msra.mxu0 %v1626
        %3091 = vmatprep.subr.bf16.mxu0 %v1635
        %3092 = vmatpush1.bf16.xpose.msra.mxu0 %v1634
        %3093 = vmatprep.subr.bf16.mxu0 %v1643
        %3094 = vmatpush1.bf16.xpose.msra.mxu0 %v1642
        %3095 = vmatprep.subr.bf16.mxu0 %v1651
        %3096 = vmatpush1.bf16.xpose.msra.mxu0 %v1650
        %3097 = vmatprep.subr.bf16.mxu0 %v1659
        %3098 = vmatpush1.bf16.xpose.msra.mxu0 %v1658
        %3099 = vmatprep.subr.bf16.mxu0 %v1667
        %3100 = vmatpush1.bf16.xpose.msra.mxu0 %v1666
        %3101 = vmatprep.subr.bf16.mxu0 %v1675
        %3102 = vmatpush1.bf16.xpose.msra.mxu0 %v1674
        %3103 = vmatprep.subr.bf16.mxu0 %v1683
        %3104 = vmatpush1.bf16.xpose.msra.mxu0 %v1682
        %3105 = vmatprep.subr.bf16.mxu0 %v1691
        %3106 = vmatpush1.bf16.xpose.msra.mxu0 %v1690
        %3107 = vmatprep.subr.bf16.mxu0 %v1699
        %3108 = vmatpush1.bf16.xpose.msra.mxu0 %v1698
        %3109 = vmatprep.subr.bf16.mxu0 %v1707
        %3110 = vmatpush1.bf16.xpose.msra.mxu0 %v1706
        %3111 = vmatprep.subr.bf16.mxu0 %v1715
        %3112 = vmatpush1.bf16.xpose.msra.mxu0 %v1714
        %3113 = vmatprep.subr.bf16.mxu0 %v1723
        %3114 = vmatpush1.bf16.xpose.msra.mxu0 %v1722
        %3115 = vmatprep.subr.bf16.mxu0 %v1731
        %3116 = vmatpush1.bf16.xpose.msra.mxu0 %v1730
        %3117 = vmatprep.subr.bf16.mxu0 %v1739
        %3118 = vmatpush1.bf16.xpose.msra.mxu0 %v1738
        %3119 = vmatprep.subr.bf16.mxu0 %v1747
        %3120 = vmatpush1.bf16.xpose.msra.mxu0 %v1746
        %3121 = vmatprep.mubr.bf16.mxu0 %v467
        %3122 = vmatmul.mubr.bf16.gmra.mrb[0].mxu0 %v466
        %v3123 = vpop.f32.mrb[0].mxu0
        %v3124 = vadd.f32 %v3083, %v3123
        %v3125 = vpop.f32.mrb[0].mxu0
        %v3126 = vadd.f32 %v3085, %v3125
        %v3127 = vpop.f32.mrb[0].mxu0
        %v3128 = vpop.f32.mrb[0].mxu0
        %3129 = vdwg.mxu0
        %3130 = vmatprep.subr.bf16.mxu0 %v1629
        %3131 = vmatpush1.bf16.xpose.msra.mxu0 %v1628
        %3132 = vmatprep.subr.bf16.mxu0 %v1637
        %3133 = vmatpush1.bf16.xpose.msra.mxu0 %v1636
        %3134 = vmatprep.subr.bf16.mxu0 %v1645
        %3135 = vmatpush1.bf16.xpose.msra.mxu0 %v1644
        %3136 = vmatprep.subr.bf16.mxu0 %v1653
        %3137 = vmatpush1.bf16.xpose.msra.mxu0 %v1652
        %3138 = vmatprep.subr.bf16.mxu0 %v1661
        %3139 = vmatpush1.bf16.xpose.msra.mxu0 %v1660
        %3140 = vmatprep.subr.bf16.mxu0 %v1669
        %3141 = vmatpush1.bf16.xpose.msra.mxu0 %v1668
        %3142 = vmatprep.subr.bf16.mxu0 %v1677
        %3143 = vmatpush1.bf16.xpose.msra.mxu0 %v1676
        %3144 = vmatprep.subr.bf16.mxu0 %v1685
        %3145 = vmatpush1.bf16.xpose.msra.mxu0 %v1684
        %3146 = vmatprep.subr.bf16.mxu0 %v1693
        %3147 = vmatpush1.bf16.xpose.msra.mxu0 %v1692
        %3148 = vmatprep.subr.bf16.mxu0 %v1701
        %3149 = vmatpush1.bf16.xpose.msra.mxu0 %v1700
        %3150 = vmatprep.subr.bf16.mxu0 %v1709
        %3151 = vmatpush1.bf16.xpose.msra.mxu0 %v1708
        %3152 = vmatprep.subr.bf16.mxu0 %v1717
        %3153 = vmatpush1.bf16.xpose.msra.mxu0 %v1716
        %3154 = vmatprep.subr.bf16.mxu0 %v1725
        %3155 = vmatpush1.bf16.xpose.msra.mxu0 %v1724
        %3156 = vmatprep.subr.bf16.mxu0 %v1733
        %3157 = vmatpush1.bf16.xpose.msra.mxu0 %v1732
        %3158 = vmatprep.subr.bf16.mxu0 %v1741
        %3159 = vmatpush1.bf16.xpose.msra.mxu0 %v1740
        %3160 = vmatprep.subr.bf16.mxu0 %v1749
        %3161 = vmatpush1.bf16.xpose.msra.mxu0 %v1748
        %3162 = vmatprep.mubr.bf16.mxu0 %v469
        %3163 = vmatmul.mubr.bf16.gmra.mrb[0].mxu0 %v468
        %v3164 = vpop.f32.mrb[0].mxu0
        %v3165 = vadd.f32 %v3124, %v3164
        %v3166 = vpop.f32.mrb[0].mxu0
        %v3167 = vadd.f32 %v3126, %v3166
        %v3168 = vpop.f32.mrb[0].mxu0
        %v3169 = vpop.f32.mrb[0].mxu0
        %3170 = vdwg.mxu0
        %3171 = vmatprep.subr.bf16.mxu0 %v1631
        %3172 = vmatpush1.bf16.xpose.msra.mxu0 %v1630
        %3173 = vmatprep.subr.bf16.mxu0 %v1639
        %3174 = vmatpush1.bf16.xpose.msra.mxu0 %v1638
        %3175 = vmatprep.subr.bf16.mxu0 %v1647
        %3176 = vmatpush1.bf16.xpose.msra.mxu0 %v1646
        %3177 = vmatprep.subr.bf16.mxu0 %v1655
        %3178 = vmatpush1.bf16.xpose.msra.mxu0 %v1654
        %3179 = vmatprep.subr.bf16.mxu0 %v1663
        %3180 = vmatpush1.bf16.xpose.msra.mxu0 %v1662
        %3181 = vmatprep.subr.bf16.mxu0 %v1671
        %3182 = vmatpush1.bf16.xpose.msra.mxu0 %v1670
        %3183 = vmatprep.subr.bf16.mxu0 %v1679
        %3184 = vmatpush1.bf16.xpose.msra.mxu0 %v1678
        %3185 = vmatprep.subr.bf16.mxu0 %v1687
        %3186 = vmatpush1.bf16.xpose.msra.mxu0 %v1686
        %3187 = vmatprep.subr.bf16.mxu0 %v1695
        %3188 = vmatpush1.bf16.xpose.msra.mxu0 %v1694
        %3189 = vmatprep.subr.bf16.mxu0 %v1703
        %3190 = vmatpush1.bf16.xpose.msra.mxu0 %v1702
        %3191 = vmatprep.subr.bf16.mxu0 %v1711
        %3192 = vmatpush1.bf16.xpose.msra.mxu0 %v1710
        %3193 = vmatprep.subr.bf16.mxu0 %v1719
        %3194 = vmatpush1.bf16.xpose.msra.mxu0 %v1718
        %3195 = vmatprep.subr.bf16.mxu0 %v1727
        %3196 = vmatpush1.bf16.xpose.msra.mxu0 %v1726
        %3197 = vmatprep.subr.bf16.mxu0 %v1735
        %3198 = vmatpush1.bf16.xpose.msra.mxu0 %v1734
        %3199 = vmatprep.subr.bf16.mxu0 %v1743
        %3200 = vmatpush1.bf16.xpose.msra.mxu0 %v1742
        %3201 = vmatprep.subr.bf16.mxu0 %v1751
        %3202 = vmatpush1.bf16.xpose.msra.mxu0 %v1750
        %3203 = vmatprep.mubr.bf16.mxu0 %v471
        %3204 = vmatmul.mubr.bf16.gmra.mrb[0].mxu0 %v470
        %v3205 = vpop.f32.mrb[0].mxu0
        %v3206 = vadd.f32 %v3165, %v3205
        %v3207 = vpop.f32.mrb[0].mxu0
        %v3208 = vadd.f32 %v3167, %v3207
        %v3209 = vpop.f32.mrb[0].mxu0
        %v3210 = vpop.f32.mrb[0].mxu0
        %3211 = vdwg.mxu0
        %3212 = vmatprep.subr.bf16.mxu0 %v1753
        %3213 = vmatpush1.bf16.xpose.msra.mxu0 %v1752
        %3214 = vmatprep.subr.bf16.mxu0 %v1761
        %3215 = vmatpush1.bf16.xpose.msra.mxu0 %v1760
        %3216 = vmatprep.subr.bf16.mxu0 %v1769
        %3217 = vmatpush1.bf16.xpose.msra.mxu0 %v1768
        %3218 = vmatprep.subr.bf16.mxu0 %v1777
        %3219 = vmatpush1.bf16.xpose.msra.mxu0 %v1776
        %3220 = vmatprep.subr.bf16.mxu0 %v1785
        %3221 = vmatpush1.bf16.xpose.msra.mxu0 %v1784
        %3222 = vmatprep.subr.bf16.mxu0 %v1793
        %3223 = vmatpush1.bf16.xpose.msra.mxu0 %v1792
        %3224 = vmatprep.subr.bf16.mxu0 %v1801
        %3225 = vmatpush1.bf16.xpose.msra.mxu0 %v1800
        %3226 = vmatprep.subr.bf16.mxu0 %v1809
        %3227 = vmatpush1.bf16.xpose.msra.mxu0 %v1808
        %3228 = vmatprep.subr.bf16.mxu0 %v1817
        %3229 = vmatpush1.bf16.xpose.msra.mxu0 %v1816
        %3230 = vmatprep.subr.bf16.mxu0 %v1825
        %3231 = vmatpush1.bf16.xpose.msra.mxu0 %v1824
        %3232 = vmatprep.subr.bf16.mxu0 %v1833
        %3233 = vmatpush1.bf16.xpose.msra.mxu0 %v1832
        %3234 = vmatprep.subr.bf16.mxu0 %v1841
        %3235 = vmatpush1.bf16.xpose.msra.mxu0 %v1840
        %3236 = vmatprep.subr.bf16.mxu0 %v1849
        %3237 = vmatpush1.bf16.xpose.msra.mxu0 %v1848
        %3238 = vmatprep.subr.bf16.mxu0 %v1857
        %3239 = vmatpush1.bf16.xpose.msra.mxu0 %v1856
        %3240 = vmatprep.subr.bf16.mxu0 %v1865
        %3241 = vmatpush1.bf16.xpose.msra.mxu0 %v1864
        %3242 = vmatprep.subr.bf16.mxu0 %v1873
        %3243 = vmatpush1.bf16.xpose.msra.mxu0 %v1872
        %3244 = vmatprep.mubr.bf16.mxu0 %v465
        %3245 = vmatmul.mubr.bf16.gmra.mrb[0].mxu0 %v464
        %v3246 = vpop.f32.mrb[0].mxu0
        %v3247 = vadd.f32 0.0, %v3246
        %v3248 = vpop.f32.mrb[0].mxu0
        %v3249 = vadd.f32 0.0, %v3248
        %v3250 = vpop.f32.mrb[0].mxu0
        %v3251 = vpop.f32.mrb[0].mxu0
        %3252 = vdwg.mxu0
        %3253 = vmatprep.subr.bf16.mxu0 %v1755
        %3254 = vmatpush1.bf16.xpose.msra.mxu0 %v1754
        %3255 = vmatprep.subr.bf16.mxu0 %v1763
        %3256 = vmatpush1.bf16.xpose.msra.mxu0 %v1762
        %3257 = vmatprep.subr.bf16.mxu0 %v1771
        %3258 = vmatpush1.bf16.xpose.msra.mxu0 %v1770
        %3259 = vmatprep.subr.bf16.mxu0 %v1779
        %3260 = vmatpush1.bf16.xpose.msra.mxu0 %v1778
        %3261 = vmatprep.subr.bf16.mxu0 %v1787
        %3262 = vmatpush1.bf16.xpose.msra.mxu0 %v1786
        %3263 = vmatprep.subr.bf16.mxu0 %v1795
        %3264 = vmatpush1.bf16.xpose.msra.mxu0 %v1794
        %3265 = vmatprep.subr.bf16.mxu0 %v1803
        %3266 = vmatpush1.bf16.xpose.msra.mxu0 %v1802
        %3267 = vmatprep.subr.bf16.mxu0 %v1811
        %3268 = vmatpush1.bf16.xpose.msra.mxu0 %v1810
        %3269 = vmatprep.subr.bf16.mxu0 %v1819
        %3270 = vmatpush1.bf16.xpose.msra.mxu0 %v1818
        %3271 = vmatprep.subr.bf16.mxu0 %v1827
        %3272 = vmatpush1.bf16.xpose.msra.mxu0 %v1826
        %3273 = vmatprep.subr.bf16.mxu0 %v1835
        %3274 = vmatpush1.bf16.xpose.msra.mxu0 %v1834
        %3275 = vmatprep.subr.bf16.mxu0 %v1843
        %3276 = vmatpush1.bf16.xpose.msra.mxu0 %v1842
        %3277 = vmatprep.subr.bf16.mxu0 %v1851
        %3278 = vmatpush1.bf16.xpose.msra.mxu0 %v1850
        %3279 = vmatprep.subr.bf16.mxu0 %v1859
        %3280 = vmatpush1.bf16.xpose.msra.mxu0 %v1858
        %3281 = vmatprep.subr.bf16.mxu0 %v1867
        %3282 = vmatpush1.bf16.xpose.msra.mxu0 %v1866
        %3283 = vmatprep.subr.bf16.mxu0 %v1875
        %3284 = vmatpush1.bf16.xpose.msra.mxu0 %v1874
        %3285 = vmatprep.mubr.bf16.mxu0 %v467
        %3286 = vmatmul.mubr.bf16.gmra.mrb[0].mxu0 %v466
        %v3287 = vpop.f32.mrb[0].mxu0
        %v3288 = vadd.f32 %v3247, %v3287
        %v3289 = vpop.f32.mrb[0].mxu0
        %v3290 = vadd.f32 %v3249, %v3289
        %v3291 = vpop.f32.mrb[0].mxu0
        %v3292 = vpop.f32.mrb[0].mxu0
        %3293 = vdwg.mxu0
        %3294 = vmatprep.subr.bf16.mxu0 %v1757
        %3295 = vmatpush1.bf16.xpose.msra.mxu0 %v1756
        %3296 = vmatprep.subr.bf16.mxu0 %v1765
        %3297 = vmatpush1.bf16.xpose.msra.mxu0 %v1764
        %3298 = vmatprep.subr.bf16.mxu0 %v1773
        %3299 = vmatpush1.bf16.xpose.msra.mxu0 %v1772
        %3300 = vmatprep.subr.bf16.mxu0 %v1781
        %3301 = vmatpush1.bf16.xpose.msra.mxu0 %v1780
        %3302 = vmatprep.subr.bf16.mxu0 %v1789
        %3303 = vmatpush1.bf16.xpose.msra.mxu0 %v1788
        %3304 = vmatprep.subr.bf16.mxu0 %v1797
        %3305 = vmatpush1.bf16.xpose.msra.mxu0 %v1796
        %3306 = vmatprep.subr.bf16.mxu0 %v1805
        %3307 = vmatpush1.bf16.xpose.msra.mxu0 %v1804
        %3308 = vmatprep.subr.bf16.mxu0 %v1813
        %3309 = vmatpush1.bf16.xpose.msra.mxu0 %v1812
        %3310 = vmatprep.subr.bf16.mxu0 %v1821
        %3311 = vmatpush1.bf16.xpose.msra.mxu0 %v1820
        %3312 = vmatprep.subr.bf16.mxu0 %v1829
        %3313 = vmatpush1.bf16.xpose.msra.mxu0 %v1828
        %3314 = vmatprep.subr.bf16.mxu0 %v1837
        %3315 = vmatpush1.bf16.xpose.msra.mxu0 %v1836
        %3316 = vmatprep.subr.bf16.mxu0 %v1845
        %3317 = vmatpush1.bf16.xpose.msra.mxu0 %v1844
        %3318 = vmatprep.subr.bf16.mxu0 %v1853
        %3319 = vmatpush1.bf16.xpose.msra.mxu0 %v1852
        %3320 = vmatprep.subr.bf16.mxu0 %v1861
        %3321 = vmatpush1.bf16.xpose.msra.mxu0 %v1860
        %3322 = vmatprep.subr.bf16.mxu0 %v1869
        %3323 = vmatpush1.bf16.xpose.msra.mxu0 %v1868
        %3324 = vmatprep.subr.bf16.mxu0 %v1877
        %3325 = vmatpush1.bf16.xpose.msra.mxu0 %v1876
        %3326 = vmatprep.mubr.bf16.mxu0 %v469
        %3327 = vmatmul.mubr.bf16.gmra.mrb[0].mxu0 %v468
        %v3328 = vpop.f32.mrb[0].mxu0
        %v3329 = vadd.f32 %v3288, %v3328
        %v3330 = vpop.f32.mrb[0].mxu0
        %v3331 = vadd.f32 %v3290, %v3330
        %v3332 = vpop.f32.mrb[0].mxu0
        %v3333 = vpop.f32.mrb[0].mxu0
        %3334 = vdwg.mxu0
        %3335 = vmatprep.subr.bf16.mxu0 %v1759
        %3336 = vmatpush1.bf16.xpose.msra.mxu0 %v1758
        %3337 = vmatprep.subr.bf16.mxu0 %v1767
        %3338 = vmatpush1.bf16.xpose.msra.mxu0 %v1766
        %3339 = vmatprep.subr.bf16.mxu0 %v1775
        %3340 = vmatpush1.bf16.xpose.msra.mxu0 %v1774
        %3341 = vmatprep.subr.bf16.mxu0 %v1783
        %3342 = vmatpush1.bf16.xpose.msra.mxu0 %v1782
        %3343 = vmatprep.subr.bf16.mxu0 %v1791
        %3344 = vmatpush1.bf16.xpose.msra.mxu0 %v1790
        %3345 = vmatprep.subr.bf16.mxu0 %v1799
        %3346 = vmatpush1.bf16.xpose.msra.mxu0 %v1798
        %3347 = vmatprep.subr.bf16.mxu0 %v1807
        %3348 = vmatpush1.bf16.xpose.msra.mxu0 %v1806
        %3349 = vmatprep.subr.bf16.mxu0 %v1815
        %3350 = vmatpush1.bf16.xpose.msra.mxu0 %v1814
        %3351 = vmatprep.subr.bf16.mxu0 %v1823
        %3352 = vmatpush1.bf16.xpose.msra.mxu0 %v1822
        %3353 = vmatprep.subr.bf16.mxu0 %v1831
        %3354 = vmatpush1.bf16.xpose.msra.mxu0 %v1830
        %3355 = vmatprep.subr.bf16.mxu0 %v1839
        %3356 = vmatpush1.bf16.xpose.msra.mxu0 %v1838
        %3357 = vmatprep.subr.bf16.mxu0 %v1847
        %3358 = vmatpush1.bf16.xpose.msra.mxu0 %v1846
        %3359 = vmatprep.subr.bf16.mxu0 %v1855
        %3360 = vmatpush1.bf16.xpose.msra.mxu0 %v1854
        %3361 = vmatprep.subr.bf16.mxu0 %v1863
        %3362 = vmatpush1.bf16.xpose.msra.mxu0 %v1862
        %3363 = vmatprep.subr.bf16.mxu0 %v1871
        %3364 = vmatpush1.bf16.xpose.msra.mxu0 %v1870
        %3365 = vmatprep.subr.bf16.mxu0 %v1879
        %3366 = vmatpush1.bf16.xpose.msra.mxu0 %v1878
        %3367 = vmatprep.mubr.bf16.mxu0 %v471
        %3368 = vmatmul.mubr.bf16.gmra.mrb[0].mxu0 %v470
        %v3369 = vpop.f32.mrb[0].mxu0
        %v3370 = vadd.f32 %v3329, %v3369
        %v3371 = vpop.f32.mrb[0].mxu0
        %v3372 = vadd.f32 %v3331, %v3371
        %v3373 = vpop.f32.mrb[0].mxu0
        %v3374 = vpop.f32.mrb[0].mxu0
        %3375 = vdwg.mxu0
        %3376 = vmatprep.subr.bf16.mxu0 %v1881
        %3377 = vmatpush1.bf16.xpose.msra.mxu0 %v1880
        %3378 = vmatprep.subr.bf16.mxu0 %v1889
        %3379 = vmatpush1.bf16.xpose.msra.mxu0 %v1888
        %3380 = vmatprep.subr.bf16.mxu0 %v1897
        %3381 = vmatpush1.bf16.xpose.msra.mxu0 %v1896
        %3382 = vmatprep.subr.bf16.mxu0 %v1905
        %3383 = vmatpush1.bf16.xpose.msra.mxu0 %v1904
        %3384 = vmatprep.subr.bf16.mxu0 %v1913
        %3385 = vmatpush1.bf16.xpose.msra.mxu0 %v1912
        %3386 = vmatprep.subr.bf16.mxu0 %v1921
        %3387 = vmatpush1.bf16.xpose.msra.mxu0 %v1920
        %3388 = vmatprep.subr.bf16.mxu0 %v1929
        %3389 = vmatpush1.bf16.xpose.msra.mxu0 %v1928
        %3390 = vmatprep.subr.bf16.mxu0 %v1937
        %3391 = vmatpush1.bf16.xpose.msra.mxu0 %v1936
        %3392 = vmatprep.subr.bf16.mxu0 %v1945
        %3393 = vmatpush1.bf16.xpose.msra.mxu0 %v1944
        %3394 = vmatprep.subr.bf16.mxu0 %v1953
        %3395 = vmatpush1.bf16.xpose.msra.mxu0 %v1952
        %3396 = vmatprep.subr.bf16.mxu0 %v1961
        %3397 = vmatpush1.bf16.xpose.msra.mxu0 %v1960
        %3398 = vmatprep.subr.bf16.mxu0 %v1969
        %3399 = vmatpush1.bf16.xpose.msra.mxu0 %v1968
        %3400 = vmatprep.subr.bf16.mxu0 %v1977
        %3401 = vmatpush1.bf16.xpose.msra.mxu0 %v1976
        %3402 = vmatprep.subr.bf16.mxu0 %v1985
        %3403 = vmatpush1.bf16.xpose.msra.mxu0 %v1984
        %3404 = vmatprep.subr.bf16.mxu0 %v1993
        %3405 = vmatpush1.bf16.xpose.msra.mxu0 %v1992
        %3406 = vmatprep.subr.bf16.mxu0 %v2001
        %3407 = vmatpush1.bf16.xpose.msra.mxu0 %v2000
        %3408 = vmatprep.mubr.bf16.mxu0 %v465
        %3409 = vmatmul.mubr.bf16.gmra.mrb[0].mxu0 %v464
        %v3410 = vpop.f32.mrb[0].mxu0
        %v3411 = vadd.f32 0.0, %v3410
        %v3412 = vpop.f32.mrb[0].mxu0
        %v3413 = vadd.f32 0.0, %v3412
        %v3414 = vpop.f32.mrb[0].mxu0
        %v3415 = vpop.f32.mrb[0].mxu0
        %3416 = vdwg.mxu0
        %3417 = vmatprep.subr.bf16.mxu0 %v1883
        %3418 = vmatpush1.bf16.xpose.msra.mxu0 %v1882
        %3419 = vmatprep.subr.bf16.mxu0 %v1891
        %3420 = vmatpush1.bf16.xpose.msra.mxu0 %v1890
        %3421 = vmatprep.subr.bf16.mxu0 %v1899
        %3422 = vmatpush1.bf16.xpose.msra.mxu0 %v1898
        %3423 = vmatprep.subr.bf16.mxu0 %v1907
        %3424 = vmatpush1.bf16.xpose.msra.mxu0 %v1906
        %3425 = vmatprep.subr.bf16.mxu0 %v1915
        %3426 = vmatpush1.bf16.xpose.msra.mxu0 %v1914
        %3427 = vmatprep.subr.bf16.mxu0 %v1923
        %3428 = vmatpush1.bf16.xpose.msra.mxu0 %v1922
        %3429 = vmatprep.subr.bf16.mxu0 %v1931
        %3430 = vmatpush1.bf16.xpose.msra.mxu0 %v1930
        %3431 = vmatprep.subr.bf16.mxu0 %v1939
        %3432 = vmatpush1.bf16.xpose.msra.mxu0 %v1938
        %3433 = vmatprep.subr.bf16.mxu0 %v1947
        %3434 = vmatpush1.bf16.xpose.msra.mxu0 %v1946
        %3435 = vmatprep.subr.bf16.mxu0 %v1955
        %3436 = vmatpush1.bf16.xpose.msra.mxu0 %v1954
        %3437 = vmatprep.subr.bf16.mxu0 %v1963
        %3438 = vmatpush1.bf16.xpose.msra.mxu0 %v1962
        %3439 = vmatprep.subr.bf16.mxu0 %v1971
        %3440 = vmatpush1.bf16.xpose.msra.mxu0 %v1970
        %3441 = vmatprep.subr.bf16.mxu0 %v1979
        %3442 = vmatpush1.bf16.xpose.msra.mxu0 %v1978
        %3443 = vmatprep.subr.bf16.mxu0 %v1987
        %3444 = vmatpush1.bf16.xpose.msra.mxu0 %v1986
        %3445 = vmatprep.subr.bf16.mxu0 %v1995
        %3446 = vmatpush1.bf16.xpose.msra.mxu0 %v1994
        %3447 = vmatprep.subr.bf16.mxu0 %v2003
        %3448 = vmatpush1.bf16.xpose.msra.mxu0 %v2002
        %3449 = vmatprep.mubr.bf16.mxu0 %v467
        %3450 = vmatmul.mubr.bf16.gmra.mrb[0].mxu0 %v466
        %v3451 = vpop.f32.mrb[0].mxu0
        %v3452 = vadd.f32 %v3411, %v3451
        %v3453 = vpop.f32.mrb[0].mxu0
        %v3454 = vadd.f32 %v3413, %v3453
        %v3455 = vpop.f32.mrb[0].mxu0
        %v3456 = vpop.f32.mrb[0].mxu0
        %3457 = vdwg.mxu0
        %3458 = vmatprep.subr.bf16.mxu0 %v1885
        %3459 = vmatpush1.bf16.xpose.msra.mxu0 %v1884
        %3460 = vmatprep.subr.bf16.mxu0 %v1893
        %3461 = vmatpush1.bf16.xpose.msra.mxu0 %v1892
        %3462 = vmatprep.subr.bf16.mxu0 %v1901
        %3463 = vmatpush1.bf16.xpose.msra.mxu0 %v1900
        %3464 = vmatprep.subr.bf16.mxu0 %v1909
        %3465 = vmatpush1.bf16.xpose.msra.mxu0 %v1908
        %3466 = vmatprep.subr.bf16.mxu0 %v1917
        %3467 = vmatpush1.bf16.xpose.msra.mxu0 %v1916
        %3468 = vmatprep.subr.bf16.mxu0 %v1925
        %3469 = vmatpush1.bf16.xpose.msra.mxu0 %v1924
        %3470 = vmatprep.subr.bf16.mxu0 %v1933
        %3471 = vmatpush1.bf16.xpose.msra.mxu0 %v1932
        %3472 = vmatprep.subr.bf16.mxu0 %v1941
        %3473 = vmatpush1.bf16.xpose.msra.mxu0 %v1940
        %3474 = vmatprep.subr.bf16.mxu0 %v1949
        %3475 = vmatpush1.bf16.xpose.msra.mxu0 %v1948
        %3476 = vmatprep.subr.bf16.mxu0 %v1957
        %3477 = vmatpush1.bf16.xpose.msra.mxu0 %v1956
        %3478 = vmatprep.subr.bf16.mxu0 %v1965
        %3479 = vmatpush1.bf16.xpose.msra.mxu0 %v1964
        %3480 = vmatprep.subr.bf16.mxu0 %v1973
        %3481 = vmatpush1.bf16.xpose.msra.mxu0 %v1972
        %3482 = vmatprep.subr.bf16.mxu0 %v1981
        %3483 = vmatpush1.bf16.xpose.msra.mxu0 %v1980
        %3484 = vmatprep.subr.bf16.mxu0 %v1989
        %3485 = vmatpush1.bf16.xpose.msra.mxu0 %v1988
        %3486 = vmatprep.subr.bf16.mxu0 %v1997
        %3487 = vmatpush1.bf16.xpose.msra.mxu0 %v1996
        %3488 = vmatprep.subr.bf16.mxu0 %v2005
        %3489 = vmatpush1.bf16.xpose.msra.mxu0 %v2004
        %3490 = vmatprep.mubr.bf16.mxu0 %v469
        %3491 = vmatmul.mubr.bf16.gmra.mrb[0].mxu0 %v468
        %v3492 = vpop.f32.mrb[0].mxu0
        %v3493 = vadd.f32 %v3452, %v3492
        %v3494 = vpop.f32.mrb[0].mxu0
        %v3495 = vadd.f32 %v3454, %v3494
        %v3496 = vpop.f32.mrb[0].mxu0
        %v3497 = vpop.f32.mrb[0].mxu0
        %3498 = vdwg.mxu0
        %3499 = vmatprep.subr.bf16.mxu0 %v1887
        %3500 = vmatpush1.bf16.xpose.msra.mxu0 %v1886
        %3501 = vmatprep.subr.bf16.mxu0 %v1895
        %3502 = vmatpush1.bf16.xpose.msra.mxu0 %v1894
        %3503 = vmatprep.subr.bf16.mxu0 %v1903
        %3504 = vmatpush1.bf16.xpose.msra.mxu0 %v1902
        %3505 = vmatprep.subr.bf16.mxu0 %v1911
        %3506 = vmatpush1.bf16.xpose.msra.mxu0 %v1910
        %3507 = vmatprep.subr.bf16.mxu0 %v1919
        %3508 = vmatpush1.bf16.xpose.msra.mxu0 %v1918
        %3509 = vmatprep.subr.bf16.mxu0 %v1927
        %3510 = vmatpush1.bf16.xpose.msra.mxu0 %v1926
        %3511 = vmatprep.subr.bf16.mxu0 %v1935
        %3512 = vmatpush1.bf16.xpose.msra.mxu0 %v1934
        %3513 = vmatprep.subr.bf16.mxu0 %v1943
        %3514 = vmatpush1.bf16.xpose.msra.mxu0 %v1942
        %3515 = vmatprep.subr.bf16.mxu0 %v1951
        %3516 = vmatpush1.bf16.xpose.msra.mxu0 %v1950
        %3517 = vmatprep.subr.bf16.mxu0 %v1959
        %3518 = vmatpush1.bf16.xpose.msra.mxu0 %v1958
        %3519 = vmatprep.subr.bf16.mxu0 %v1967
        %3520 = vmatpush1.bf16.xpose.msra.mxu0 %v1966
        %3521 = vmatprep.subr.bf16.mxu0 %v1975
        %3522 = vmatpush1.bf16.xpose.msra.mxu0 %v1974
        %3523 = vmatprep.subr.bf16.mxu0 %v1983
        %3524 = vmatpush1.bf16.xpose.msra.mxu0 %v1982
        %3525 = vmatprep.subr.bf16.mxu0 %v1991
        %3526 = vmatpush1.bf16.xpose.msra.mxu0 %v1990
        %3527 = vmatprep.subr.bf16.mxu0 %v1999
        %3528 = vmatpush1.bf16.xpose.msra.mxu0 %v1998
        %3529 = vmatprep.subr.bf16.mxu0 %v2007
        %3530 = vmatpush1.bf16.xpose.msra.mxu0 %v2006
        %3531 = vmatprep.mubr.bf16.mxu0 %v471
        %3532 = vmatmul.mubr.bf16.gmra.mrb[0].mxu0 %v470
        %v3533 = vpop.f32.mrb[0].mxu0
        %v3534 = vadd.f32 %v3493, %v3533
        %v3535 = vpop.f32.mrb[0].mxu0
        %v3536 = vadd.f32 %v3495, %v3535
        %v3537 = vpop.f32.mrb[0].mxu0
        %v3538 = vpop.f32.mrb[0].mxu0
        %3539 = vdwg.mxu0
        %3540 = vmatprep.subr.bf16.mxu0 %v2009
        %3541 = vmatpush1.bf16.xpose.msra.mxu0 %v2008
        %3542 = vmatprep.subr.bf16.mxu0 %v2017
        %3543 = vmatpush1.bf16.xpose.msra.mxu0 %v2016
        %3544 = vmatprep.subr.bf16.mxu0 %v2025
        %3545 = vmatpush1.bf16.xpose.msra.mxu0 %v2024
        %3546 = vmatprep.subr.bf16.mxu0 %v2033
        %3547 = vmatpush1.bf16.xpose.msra.mxu0 %v2032
        %3548 = vmatprep.subr.bf16.mxu0 %v2041
        %3549 = vmatpush1.bf16.xpose.msra.mxu0 %v2040
        %3550 = vmatprep.subr.bf16.mxu0 %v2049
        %3551 = vmatpush1.bf16.xpose.msra.mxu0 %v2048
        %3552 = vmatprep.subr.bf16.mxu0 %v2057
        %3553 = vmatpush1.bf16.xpose.msra.mxu0 %v2056
        %3554 = vmatprep.subr.bf16.mxu0 %v2065
        %3555 = vmatpush1.bf16.xpose.msra.mxu0 %v2064
        %3556 = vmatprep.subr.bf16.mxu0 %v2073
        %3557 = vmatpush1.bf16.xpose.msra.mxu0 %v2072
        %3558 = vmatprep.subr.bf16.mxu0 %v2081
        %3559 = vmatpush1.bf16.xpose.msra.mxu0 %v2080
        %3560 = vmatprep.subr.bf16.mxu0 %v2089
        %3561 = vmatpush1.bf16.xpose.msra.mxu0 %v2088
        %3562 = vmatprep.subr.bf16.mxu0 %v2097
        %3563 = vmatpush1.bf16.xpose.msra.mxu0 %v2096
        %3564 = vmatprep.subr.bf16.mxu0 %v2105
        %3565 = vmatpush1.bf16.xpose.msra.mxu0 %v2104
        %3566 = vmatprep.subr.bf16.mxu0 %v2113
        %3567 = vmatpush1.bf16.xpose.msra.mxu0 %v2112
        %3568 = vmatprep.subr.bf16.mxu0 %v2121
        %3569 = vmatpush1.bf16.xpose.msra.mxu0 %v2120
        %3570 = vmatprep.subr.bf16.mxu0 %v2129
        %3571 = vmatpush1.bf16.xpose.msra.mxu0 %v2128
        %3572 = vmatprep.mubr.bf16.mxu0 %v465
        %3573 = vmatmul.mubr.bf16.gmra.mrb[0].mxu0 %v464
        %v3574 = vpop.f32.mrb[0].mxu0
        %v3575 = vadd.f32 0.0, %v3574
        %v3576 = vpop.f32.mrb[0].mxu0
        %v3577 = vadd.f32 0.0, %v3576
        %v3578 = vpop.f32.mrb[0].mxu0
        %v3579 = vpop.f32.mrb[0].mxu0
        %3580 = vdwg.mxu0
        %3581 = vmatprep.subr.bf16.mxu0 %v2011
        %3582 = vmatpush1.bf16.xpose.msra.mxu0 %v2010
        %3583 = vmatprep.subr.bf16.mxu0 %v2019
        %3584 = vmatpush1.bf16.xpose.msra.mxu0 %v2018
        %3585 = vmatprep.subr.bf16.mxu0 %v2027
        %3586 = vmatpush1.bf16.xpose.msra.mxu0 %v2026
        %3587 = vmatprep.subr.bf16.mxu0 %v2035
        %3588 = vmatpush1.bf16.xpose.msra.mxu0 %v2034
        %3589 = vmatprep.subr.bf16.mxu0 %v2043
        %3590 = vmatpush1.bf16.xpose.msra.mxu0 %v2042
        %3591 = vmatprep.subr.bf16.mxu0 %v2051
        %3592 = vmatpush1.bf16.xpose.msra.mxu0 %v2050
        %3593 = vmatprep.subr.bf16.mxu0 %v2059
        %3594 = vmatpush1.bf16.xpose.msra.mxu0 %v2058
        %3595 = vmatprep.subr.bf16.mxu0 %v2067
        %3596 = vmatpush1.bf16.xpose.msra.mxu0 %v2066
        %3597 = vmatprep.subr.bf16.mxu0 %v2075
        %3598 = vmatpush1.bf16.xpose.msra.mxu0 %v2074
        %3599 = vmatprep.subr.bf16.mxu0 %v2083
        %3600 = vmatpush1.bf16.xpose.msra.mxu0 %v2082
        %3601 = vmatprep.subr.bf16.mxu0 %v2091
        %3602 = vmatpush1.bf16.xpose.msra.mxu0 %v2090
        %3603 = vmatprep.subr.bf16.mxu0 %v2099
        %3604 = vmatpush1.bf16.xpose.msra.mxu0 %v2098
        %3605 = vmatprep.subr.bf16.mxu0 %v2107
        %3606 = vmatpush1.bf16.xpose.msra.mxu0 %v2106
        %3607 = vmatprep.subr.bf16.mxu0 %v2115
        %3608 = vmatpush1.bf16.xpose.msra.mxu0 %v2114
        %3609 = vmatprep.subr.bf16.mxu0 %v2123
        %3610 = vmatpush1.bf16.xpose.msra.mxu0 %v2122
        %3611 = vmatprep.subr.bf16.mxu0 %v2131
        %3612 = vmatpush1.bf16.xpose.msra.mxu0 %v2130
        %3613 = vmatprep.mubr.bf16.mxu0 %v467
        %3614 = vmatmul.mubr.bf16.gmra.mrb[0].mxu0 %v466
        %v3615 = vpop.f32.mrb[0].mxu0
        %v3616 = vadd.f32 %v3575, %v3615
        %v3617 = vpop.f32.mrb[0].mxu0
        %v3618 = vadd.f32 %v3577, %v3617
        %v3619 = vpop.f32.mrb[0].mxu0
        %v3620 = vpop.f32.mrb[0].mxu0
        %3621 = vdwg.mxu0
        %3622 = vmatprep.subr.bf16.mxu0 %v2013
        %3623 = vmatpush1.bf16.xpose.msra.mxu0 %v2012
        %3624 = vmatprep.subr.bf16.mxu0 %v2021
        %3625 = vmatpush1.bf16.xpose.msra.mxu0 %v2020
        %3626 = vmatprep.subr.bf16.mxu0 %v2029
        %3627 = vmatpush1.bf16.xpose.msra.mxu0 %v2028
        %3628 = vmatprep.subr.bf16.mxu0 %v2037
        %3629 = vmatpush1.bf16.xpose.msra.mxu0 %v2036
        %3630 = vmatprep.subr.bf16.mxu0 %v2045
        %3631 = vmatpush1.bf16.xpose.msra.mxu0 %v2044
        %3632 = vmatprep.subr.bf16.mxu0 %v2053
        %3633 = vmatpush1.bf16.xpose.msra.mxu0 %v2052
        %3634 = vmatprep.subr.bf16.mxu0 %v2061
        %3635 = vmatpush1.bf16.xpose.msra.mxu0 %v2060
        %3636 = vmatprep.subr.bf16.mxu0 %v2069
        %3637 = vmatpush1.bf16.xpose.msra.mxu0 %v2068
        %3638 = vmatprep.subr.bf16.mxu0 %v2077
        %3639 = vmatpush1.bf16.xpose.msra.mxu0 %v2076
        %3640 = vmatprep.subr.bf16.mxu0 %v2085
        %3641 = vmatpush1.bf16.xpose.msra.mxu0 %v2084
        %3642 = vmatprep.subr.bf16.mxu0 %v2093
        %3643 = vmatpush1.bf16.xpose.msra.mxu0 %v2092
        %3644 = vmatprep.subr.bf16.mxu0 %v2101
        %3645 = vmatpush1.bf16.xpose.msra.mxu0 %v2100
        %3646 = vmatprep.subr.bf16.mxu0 %v2109
        %3647 = vmatpush1.bf16.xpose.msra.mxu0 %v2108
        %3648 = vmatprep.subr.bf16.mxu0 %v2117
        %3649 = vmatpush1.bf16.xpose.msra.mxu0 %v2116
        %3650 = vmatprep.subr.bf16.mxu0 %v2125
        %3651 = vmatpush1.bf16.xpose.msra.mxu0 %v2124
        %3652 = vmatprep.subr.bf16.mxu0 %v2133
        %3653 = vmatpush1.bf16.xpose.msra.mxu0 %v2132
        %3654 = vmatprep.mubr.bf16.mxu0 %v469
        %3655 = vmatmul.mubr.bf16.gmra.mrb[0].mxu0 %v468
        %v3656 = vpop.f32.mrb[0].mxu0
        %v3657 = vadd.f32 %v3616, %v3656
        %v3658 = vpop.f32.mrb[0].mxu0
        %v3659 = vadd.f32 %v3618, %v3658
        %v3660 = vpop.f32.mrb[0].mxu0
        %v3661 = vpop.f32.mrb[0].mxu0
        %3662 = vdwg.mxu0
        %3663 = vmatprep.subr.bf16.mxu0 %v2015
        %3664 = vmatpush1.bf16.xpose.msra.mxu0 %v2014
        %3665 = vmatprep.subr.bf16.mxu0 %v2023
        %3666 = vmatpush1.bf16.xpose.msra.mxu0 %v2022
        %3667 = vmatprep.subr.bf16.mxu0 %v2031
        %3668 = vmatpush1.bf16.xpose.msra.mxu0 %v2030
        %3669 = vmatprep.subr.bf16.mxu0 %v2039
        %3670 = vmatpush1.bf16.xpose.msra.mxu0 %v2038
        %3671 = vmatprep.subr.bf16.mxu0 %v2047
        %3672 = vmatpush1.bf16.xpose.msra.mxu0 %v2046
        %3673 = vmatprep.subr.bf16.mxu0 %v2055
        %3674 = vmatpush1.bf16.xpose.msra.mxu0 %v2054
        %3675 = vmatprep.subr.bf16.mxu0 %v2063
        %3676 = vmatpush1.bf16.xpose.msra.mxu0 %v2062
        %3677 = vmatprep.subr.bf16.mxu0 %v2071
        %3678 = vmatpush1.bf16.xpose.msra.mxu0 %v2070
        %3679 = vmatprep.subr.bf16.mxu0 %v2079
        %3680 = vmatpush1.bf16.xpose.msra.mxu0 %v2078
        %3681 = vmatprep.subr.bf16.mxu0 %v2087
        %3682 = vmatpush1.bf16.xpose.msra.mxu0 %v2086
        %3683 = vmatprep.subr.bf16.mxu0 %v2095
        %3684 = vmatpush1.bf16.xpose.msra.mxu0 %v2094
        %3685 = vmatprep.subr.bf16.mxu0 %v2103
        %3686 = vmatpush1.bf16.xpose.msra.mxu0 %v2102
        %3687 = vmatprep.subr.bf16.mxu0 %v2111
        %3688 = vmatpush1.bf16.xpose.msra.mxu0 %v2110
        %3689 = vmatprep.subr.bf16.mxu0 %v2119
        %3690 = vmatpush1.bf16.xpose.msra.mxu0 %v2118
        %3691 = vmatprep.subr.bf16.mxu0 %v2127
        %3692 = vmatpush1.bf16.xpose.msra.mxu0 %v2126
        %3693 = vmatprep.subr.bf16.mxu0 %v2135
        %3694 = vmatpush1.bf16.xpose.msra.mxu0 %v2134
        %3695 = vmatprep.mubr.bf16.mxu0 %v471
        %3696 = vmatmul.mubr.bf16.gmra.mrb[0].mxu0 %v470
        %v3697 = vpop.f32.mrb[0].mxu0
        %v3698 = vadd.f32 %v3657, %v3697
        %v3699 = vpop.f32.mrb[0].mxu0
        %v3700 = vadd.f32 %v3659, %v3699
        %v3701 = vpop.f32.mrb[0].mxu0
        %v3702 = vpop.f32.mrb[0].mxu0
        %3703 = vdwg.mxu0
        %3704 = vmatprep.subr.bf16.mxu0 %v2137
        %3705 = vmatpush1.bf16.xpose.msra.mxu0 %v2136
        %3706 = vmatprep.subr.bf16.mxu0 %v2145
        %3707 = vmatpush1.bf16.xpose.msra.mxu0 %v2144
        %3708 = vmatprep.subr.bf16.mxu0 %v2153
        %3709 = vmatpush1.bf16.xpose.msra.mxu0 %v2152
        %3710 = vmatprep.subr.bf16.mxu0 %v2161
        %3711 = vmatpush1.bf16.xpose.msra.mxu0 %v2160
        %3712 = vmatprep.subr.bf16.mxu0 %v2169
        %3713 = vmatpush1.bf16.xpose.msra.mxu0 %v2168
        %3714 = vmatprep.subr.bf16.mxu0 %v2177
        %3715 = vmatpush1.bf16.xpose.msra.mxu0 %v2176
        %3716 = vmatprep.subr.bf16.mxu0 %v2185
        %3717 = vmatpush1.bf16.xpose.msra.mxu0 %v2184
        %3718 = vmatprep.subr.bf16.mxu0 %v2193
        %3719 = vmatpush1.bf16.xpose.msra.mxu0 %v2192
        %3720 = vmatprep.subr.bf16.mxu0 %v2201
        %3721 = vmatpush1.bf16.xpose.msra.mxu0 %v2200
        %3722 = vmatprep.subr.bf16.mxu0 %v2209
        %3723 = vmatpush1.bf16.xpose.msra.mxu0 %v2208
        %3724 = vmatprep.subr.bf16.mxu0 %v2217
        %3725 = vmatpush1.bf16.xpose.msra.mxu0 %v2216
        %3726 = vmatprep.subr.bf16.mxu0 %v2225
        %3727 = vmatpush1.bf16.xpose.msra.mxu0 %v2224
        %3728 = vmatprep.subr.bf16.mxu0 %v2233
        %3729 = vmatpush1.bf16.xpose.msra.mxu0 %v2232
        %3730 = vmatprep.subr.bf16.mxu0 %v2241
        %3731 = vmatpush1.bf16.xpose.msra.mxu0 %v2240
        %3732 = vmatprep.subr.bf16.mxu0 %v2249
        %3733 = vmatpush1.bf16.xpose.msra.mxu0 %v2248
        %3734 = vmatprep.subr.bf16.mxu0 %v2257
        %3735 = vmatpush1.bf16.xpose.msra.mxu0 %v2256
        %3736 = vmatprep.mubr.bf16.mxu0 %v465
        %3737 = vmatmul.mubr.bf16.gmra.mrb[0].mxu0 %v464
        %v3738 = vpop.f32.mrb[0].mxu0
        %v3739 = vadd.f32 0.0, %v3738
        %v3740 = vpop.f32.mrb[0].mxu0
        %v3741 = vadd.f32 0.0, %v3740
        %v3742 = vpop.f32.mrb[0].mxu0
        %v3743 = vpop.f32.mrb[0].mxu0
        %3744 = vdwg.mxu0
        %3745 = vmatprep.subr.bf16.mxu0 %v2139
        %3746 = vmatpush1.bf16.xpose.msra.mxu0 %v2138
        %3747 = vmatprep.subr.bf16.mxu0 %v2147
        %3748 = vmatpush1.bf16.xpose.msra.mxu0 %v2146
        %3749 = vmatprep.subr.bf16.mxu0 %v2155
        %3750 = vmatpush1.bf16.xpose.msra.mxu0 %v2154
        %3751 = vmatprep.subr.bf16.mxu0 %v2163
        %3752 = vmatpush1.bf16.xpose.msra.mxu0 %v2162
        %3753 = vmatprep.subr.bf16.mxu0 %v2171
        %3754 = vmatpush1.bf16.xpose.msra.mxu0 %v2170
        %3755 = vmatprep.subr.bf16.mxu0 %v2179
        %3756 = vmatpush1.bf16.xpose.msra.mxu0 %v2178
        %3757 = vmatprep.subr.bf16.mxu0 %v2187
        %3758 = vmatpush1.bf16.xpose.msra.mxu0 %v2186
        %3759 = vmatprep.subr.bf16.mxu0 %v2195
        %3760 = vmatpush1.bf16.xpose.msra.mxu0 %v2194
        %3761 = vmatprep.subr.bf16.mxu0 %v2203
        %3762 = vmatpush1.bf16.xpose.msra.mxu0 %v2202
        %3763 = vmatprep.subr.bf16.mxu0 %v2211
        %3764 = vmatpush1.bf16.xpose.msra.mxu0 %v2210
        %3765 = vmatprep.subr.bf16.mxu0 %v2219
        %3766 = vmatpush1.bf16.xpose.msra.mxu0 %v2218
        %3767 = vmatprep.subr.bf16.mxu0 %v2227
        %3768 = vmatpush1.bf16.xpose.msra.mxu0 %v2226
        %3769 = vmatprep.subr.bf16.mxu0 %v2235
        %3770 = vmatpush1.bf16.xpose.msra.mxu0 %v2234
        %3771 = vmatprep.subr.bf16.mxu0 %v2243
        %3772 = vmatpush1.bf16.xpose.msra.mxu0 %v2242
        %3773 = vmatprep.subr.bf16.mxu0 %v2251
        %3774 = vmatpush1.bf16.xpose.msra.mxu0 %v2250
        %3775 = vmatprep.subr.bf16.mxu0 %v2259
        %3776 = vmatpush1.bf16.xpose.msra.mxu0 %v2258
        %3777 = vmatprep.mubr.bf16.mxu0 %v467
        %3778 = vmatmul.mubr.bf16.gmra.mrb[0].mxu0 %v466
        %v3779 = vpop.f32.mrb[0].mxu0
        %v3780 = vadd.f32 %v3739, %v3779
        %v3781 = vpop.f32.mrb[0].mxu0
        %v3782 = vadd.f32 %v3741, %v3781
        %v3783 = vpop.f32.mrb[0].mxu0
        %v3784 = vpop.f32.mrb[0].mxu0
        %3785 = vdwg.mxu0
        %3786 = vmatprep.subr.bf16.mxu0 %v2141
        %3787 = vmatpush1.bf16.xpose.msra.mxu0 %v2140
        %3788 = vmatprep.subr.bf16.mxu0 %v2149
        %3789 = vmatpush1.bf16.xpose.msra.mxu0 %v2148
        %3790 = vmatprep.subr.bf16.mxu0 %v2157
        %3791 = vmatpush1.bf16.xpose.msra.mxu0 %v2156
        %3792 = vmatprep.subr.bf16.mxu0 %v2165
        %3793 = vmatpush1.bf16.xpose.msra.mxu0 %v2164
        %3794 = vmatprep.subr.bf16.mxu0 %v2173
        %3795 = vmatpush1.bf16.xpose.msra.mxu0 %v2172
        %3796 = vmatprep.subr.bf16.mxu0 %v2181
        %3797 = vmatpush1.bf16.xpose.msra.mxu0 %v2180
        %3798 = vmatprep.subr.bf16.mxu0 %v2189
        %3799 = vmatpush1.bf16.xpose.msra.mxu0 %v2188
        %3800 = vmatprep.subr.bf16.mxu0 %v2197
        %3801 = vmatpush1.bf16.xpose.msra.mxu0 %v2196
        %3802 = vmatprep.subr.bf16.mxu0 %v2205
        %3803 = vmatpush1.bf16.xpose.msra.mxu0 %v2204
        %3804 = vmatprep.subr.bf16.mxu0 %v2213
        %3805 = vmatpush1.bf16.xpose.msra.mxu0 %v2212
        %3806 = vmatprep.subr.bf16.mxu0 %v2221
        %3807 = vmatpush1.bf16.xpose.msra.mxu0 %v2220
        %3808 = vmatprep.subr.bf16.mxu0 %v2229
        %3809 = vmatpush1.bf16.xpose.msra.mxu0 %v2228
        %3810 = vmatprep.subr.bf16.mxu0 %v2237
        %3811 = vmatpush1.bf16.xpose.msra.mxu0 %v2236
        %3812 = vmatprep.subr.bf16.mxu0 %v2245
        %3813 = vmatpush1.bf16.xpose.msra.mxu0 %v2244
        %3814 = vmatprep.subr.bf16.mxu0 %v2253
        %3815 = vmatpush1.bf16.xpose.msra.mxu0 %v2252
        %3816 = vmatprep.subr.bf16.mxu0 %v2261
        %3817 = vmatpush1.bf16.xpose.msra.mxu0 %v2260
        %3818 = vmatprep.mubr.bf16.mxu0 %v469
        %3819 = vmatmul.mubr.bf16.gmra.mrb[0].mxu0 %v468
        %v3820 = vpop.f32.mrb[0].mxu0
        %v3821 = vadd.f32 %v3780, %v3820
        %v3822 = vpop.f32.mrb[0].mxu0
        %v3823 = vadd.f32 %v3782, %v3822
        %v3824 = vpop.f32.mrb[0].mxu0
        %v3825 = vpop.f32.mrb[0].mxu0
        %3826 = vdwg.mxu0
        %3827 = vmatprep.subr.bf16.mxu0 %v2143
        %3828 = vmatpush1.bf16.xpose.msra.mxu0 %v2142
        %3829 = vmatprep.subr.bf16.mxu0 %v2151
        %3830 = vmatpush1.bf16.xpose.msra.mxu0 %v2150
        %3831 = vmatprep.subr.bf16.mxu0 %v2159
        %3832 = vmatpush1.bf16.xpose.msra.mxu0 %v2158
        %3833 = vmatprep.subr.bf16.mxu0 %v2167
        %3834 = vmatpush1.bf16.xpose.msra.mxu0 %v2166
        %3835 = vmatprep.subr.bf16.mxu0 %v2175
        %3836 = vmatpush1.bf16.xpose.msra.mxu0 %v2174
        %3837 = vmatprep.subr.bf16.mxu0 %v2183
        %3838 = vmatpush1.bf16.xpose.msra.mxu0 %v2182
        %3839 = vmatprep.subr.bf16.mxu0 %v2191
        %3840 = vmatpush1.bf16.xpose.msra.mxu0 %v2190
        %3841 = vmatprep.subr.bf16.mxu0 %v2199
        %3842 = vmatpush1.bf16.xpose.msra.mxu0 %v2198
        %3843 = vmatprep.subr.bf16.mxu0 %v2207
        %3844 = vmatpush1.bf16.xpose.msra.mxu0 %v2206
        %3845 = vmatprep.subr.bf16.mxu0 %v2215
        %3846 = vmatpush1.bf16.xpose.msra.mxu0 %v2214
        %3847 = vmatprep.subr.bf16.mxu0 %v2223
        %3848 = vmatpush1.bf16.xpose.msra.mxu0 %v2222
        %3849 = vmatprep.subr.bf16.mxu0 %v2231
        %3850 = vmatpush1.bf16.xpose.msra.mxu0 %v2230
        %3851 = vmatprep.subr.bf16.mxu0 %v2239
        %3852 = vmatpush1.bf16.xpose.msra.mxu0 %v2238
        %3853 = vmatprep.subr.bf16.mxu0 %v2247
        %3854 = vmatpush1.bf16.xpose.msra.mxu0 %v2246
        %3855 = vmatprep.subr.bf16.mxu0 %v2255
        %3856 = vmatpush1.bf16.xpose.msra.mxu0 %v2254
        %3857 = vmatprep.subr.bf16.mxu0 %v2263
        %3858 = vmatpush1.bf16.xpose.msra.mxu0 %v2262
        %3859 = vmatprep.mubr.bf16.mxu0 %v471
        %3860 = vmatmul.mubr.bf16.gmra.mrb[0].mxu0 %v470
        %v3861 = vpop.f32.mrb[0].mxu0
        %v3862 = vadd.f32 %v3821, %v3861
        %v3863 = vpop.f32.mrb[0].mxu0
        %v3864 = vadd.f32 %v3823, %v3863
        %v3865 = vpop.f32.mrb[0].mxu0
        %v3866 = vpop.f32.mrb[0].mxu0
        %3867 = vdwg.mxu0
        %3868 = vmatprep.subr.bf16.mxu0 %v2265
        %3869 = vmatpush1.bf16.xpose.msra.mxu0 %v2264
        %3870 = vmatprep.subr.bf16.mxu0 %v2273
        %3871 = vmatpush1.bf16.xpose.msra.mxu0 %v2272
        %3872 = vmatprep.subr.bf16.mxu0 %v2281
        %3873 = vmatpush1.bf16.xpose.msra.mxu0 %v2280
        %3874 = vmatprep.subr.bf16.mxu0 %v2289
        %3875 = vmatpush1.bf16.xpose.msra.mxu0 %v2288
        %3876 = vmatprep.subr.bf16.mxu0 %v2297
        %3877 = vmatpush1.bf16.xpose.msra.mxu0 %v2296
        %3878 = vmatprep.subr.bf16.mxu0 %v2305
        %3879 = vmatpush1.bf16.xpose.msra.mxu0 %v2304
        %3880 = vmatprep.subr.bf16.mxu0 %v2313
        %3881 = vmatpush1.bf16.xpose.msra.mxu0 %v2312
        %3882 = vmatprep.subr.bf16.mxu0 %v2321
        %3883 = vmatpush1.bf16.xpose.msra.mxu0 %v2320
        %3884 = vmatprep.subr.bf16.mxu0 %v2329
        %3885 = vmatpush1.bf16.xpose.msra.mxu0 %v2328
        %3886 = vmatprep.subr.bf16.mxu0 %v2337
        %3887 = vmatpush1.bf16.xpose.msra.mxu0 %v2336
        %3888 = vmatprep.subr.bf16.mxu0 %v2345
        %3889 = vmatpush1.bf16.xpose.msra.mxu0 %v2344
        %3890 = vmatprep.subr.bf16.mxu0 %v2353
        %3891 = vmatpush1.bf16.xpose.msra.mxu0 %v2352
        %3892 = vmatprep.subr.bf16.mxu0 %v2361
        %3893 = vmatpush1.bf16.xpose.msra.mxu0 %v2360
        %3894 = vmatprep.subr.bf16.mxu0 %v2369
        %3895 = vmatpush1.bf16.xpose.msra.mxu0 %v2368
        %3896 = vmatprep.subr.bf16.mxu0 %v2377
        %3897 = vmatpush1.bf16.xpose.msra.mxu0 %v2376
        %3898 = vmatprep.subr.bf16.mxu0 %v2385
        %3899 = vmatpush1.bf16.xpose.msra.mxu0 %v2384
        %3900 = vmatprep.mubr.bf16.mxu0 %v465
        %3901 = vmatmul.mubr.bf16.gmra.mrb[0].mxu0 %v464
        %v3902 = vpop.f32.mrb[0].mxu0
        %v3903 = vadd.f32 0.0, %v3902
        %v3904 = vpop.f32.mrb[0].mxu0
        %v3905 = vadd.f32 0.0, %v3904
        %v3906 = vpop.f32.mrb[0].mxu0
        %v3907 = vpop.f32.mrb[0].mxu0
        %3908 = vdwg.mxu0
        %3909 = vmatprep.subr.bf16.mxu0 %v2267
        %3910 = vmatpush1.bf16.xpose.msra.mxu0 %v2266
        %3911 = vmatprep.subr.bf16.mxu0 %v2275
        %3912 = vmatpush1.bf16.xpose.msra.mxu0 %v2274
        %3913 = vmatprep.subr.bf16.mxu0 %v2283
        %3914 = vmatpush1.bf16.xpose.msra.mxu0 %v2282
        %3915 = vmatprep.subr.bf16.mxu0 %v2291
        %3916 = vmatpush1.bf16.xpose.msra.mxu0 %v2290
        %3917 = vmatprep.subr.bf16.mxu0 %v2299
        %3918 = vmatpush1.bf16.xpose.msra.mxu0 %v2298
        %3919 = vmatprep.subr.bf16.mxu0 %v2307
        %3920 = vmatpush1.bf16.xpose.msra.mxu0 %v2306
        %3921 = vmatprep.subr.bf16.mxu0 %v2315
        %3922 = vmatpush1.bf16.xpose.msra.mxu0 %v2314
        %3923 = vmatprep.subr.bf16.mxu0 %v2323
        %3924 = vmatpush1.bf16.xpose.msra.mxu0 %v2322
        %3925 = vmatprep.subr.bf16.mxu0 %v2331
        %3926 = vmatpush1.bf16.xpose.msra.mxu0 %v2330
        %3927 = vmatprep.subr.bf16.mxu0 %v2339
        %3928 = vmatpush1.bf16.xpose.msra.mxu0 %v2338
        %3929 = vmatprep.subr.bf16.mxu0 %v2347
        %3930 = vmatpush1.bf16.xpose.msra.mxu0 %v2346
        %3931 = vmatprep.subr.bf16.mxu0 %v2355
        %3932 = vmatpush1.bf16.xpose.msra.mxu0 %v2354
        %3933 = vmatprep.subr.bf16.mxu0 %v2363
        %3934 = vmatpush1.bf16.xpose.msra.mxu0 %v2362
        %3935 = vmatprep.subr.bf16.mxu0 %v2371
        %3936 = vmatpush1.bf16.xpose.msra.mxu0 %v2370
        %3937 = vmatprep.subr.bf16.mxu0 %v2379
        %3938 = vmatpush1.bf16.xpose.msra.mxu0 %v2378
        %3939 = vmatprep.subr.bf16.mxu0 %v2387
        %3940 = vmatpush1.bf16.xpose.msra.mxu0 %v2386
        %3941 = vmatprep.mubr.bf16.mxu0 %v467
        %3942 = vmatmul.mubr.bf16.gmra.mrb[0].mxu0 %v466
        %v3943 = vpop.f32.mrb[0].mxu0
        %v3944 = vadd.f32 %v3903, %v3943
        %v3945 = vpop.f32.mrb[0].mxu0
        %v3946 = vadd.f32 %v3905, %v3945
        %v3947 = vpop.f32.mrb[0].mxu0
        %v3948 = vpop.f32.mrb[0].mxu0
        %3949 = vdwg.mxu0
        %3950 = vmatprep.subr.bf16.mxu0 %v2269
        %3951 = vmatpush1.bf16.xpose.msra.mxu0 %v2268
        %3952 = vmatprep.subr.bf16.mxu0 %v2277
        %3953 = vmatpush1.bf16.xpose.msra.mxu0 %v2276
        %3954 = vmatprep.subr.bf16.mxu0 %v2285
        %3955 = vmatpush1.bf16.xpose.msra.mxu0 %v2284
        %3956 = vmatprep.subr.bf16.mxu0 %v2293
        %3957 = vmatpush1.bf16.xpose.msra.mxu0 %v2292
        %3958 = vmatprep.subr.bf16.mxu0 %v2301
        %3959 = vmatpush1.bf16.xpose.msra.mxu0 %v2300
        %3960 = vmatprep.subr.bf16.mxu0 %v2309
        %3961 = vmatpush1.bf16.xpose.msra.mxu0 %v2308
        %3962 = vmatprep.subr.bf16.mxu0 %v2317
        %3963 = vmatpush1.bf16.xpose.msra.mxu0 %v2316
        %3964 = vmatprep.subr.bf16.mxu0 %v2325
        %3965 = vmatpush1.bf16.xpose.msra.mxu0 %v2324
        %3966 = vmatprep.subr.bf16.mxu0 %v2333
        %3967 = vmatpush1.bf16.xpose.msra.mxu0 %v2332
        %3968 = vmatprep.subr.bf16.mxu0 %v2341
        %3969 = vmatpush1.bf16.xpose.msra.mxu0 %v2340
        %3970 = vmatprep.subr.bf16.mxu0 %v2349
        %3971 = vmatpush1.bf16.xpose.msra.mxu0 %v2348
        %3972 = vmatprep.subr.bf16.mxu0 %v2357
        %3973 = vmatpush1.bf16.xpose.msra.mxu0 %v2356
        %3974 = vmatprep.subr.bf16.mxu0 %v2365
        %3975 = vmatpush1.bf16.xpose.msra.mxu0 %v2364
        %3976 = vmatprep.subr.bf16.mxu0 %v2373
        %3977 = vmatpush1.bf16.xpose.msra.mxu0 %v2372
        %3978 = vmatprep.subr.bf16.mxu0 %v2381
        %3979 = vmatpush1.bf16.xpose.msra.mxu0 %v2380
        %3980 = vmatprep.subr.bf16.mxu0 %v2389
        %3981 = vmatpush1.bf16.xpose.msra.mxu0 %v2388
        %3982 = vmatprep.mubr.bf16.mxu0 %v469
        %3983 = vmatmul.mubr.bf16.gmra.mrb[0].mxu0 %v468
        %v3984 = vpop.f32.mrb[0].mxu0
        %v3985 = vadd.f32 %v3944, %v3984
        %v3986 = vpop.f32.mrb[0].mxu0
        %v3987 = vadd.f32 %v3946, %v3986
        %v3988 = vpop.f32.mrb[0].mxu0
        %v3989 = vpop.f32.mrb[0].mxu0
        %3990 = vdwg.mxu0
        %3991 = vmatprep.subr.bf16.mxu0 %v2271
        %3992 = vmatpush1.bf16.xpose.msra.mxu0 %v2270
        %3993 = vmatprep.subr.bf16.mxu0 %v2279
        %3994 = vmatpush1.bf16.xpose.msra.mxu0 %v2278
        %3995 = vmatprep.subr.bf16.mxu0 %v2287
        %3996 = vmatpush1.bf16.xpose.msra.mxu0 %v2286
        %3997 = vmatprep.subr.bf16.mxu0 %v2295
        %3998 = vmatpush1.bf16.xpose.msra.mxu0 %v2294
        %3999 = vmatprep.subr.bf16.mxu0 %v2303
        %4000 = vmatpush1.bf16.xpose.msra.mxu0 %v2302
        %4001 = vmatprep.subr.bf16.mxu0 %v2311
        %4002 = vmatpush1.bf16.xpose.msra.mxu0 %v2310
        %4003 = vmatprep.subr.bf16.mxu0 %v2319
        %4004 = vmatpush1.bf16.xpose.msra.mxu0 %v2318
        %4005 = vmatprep.subr.bf16.mxu0 %v2327
        %4006 = vmatpush1.bf16.xpose.msra.mxu0 %v2326
        %4007 = vmatprep.subr.bf16.mxu0 %v2335
        %4008 = vmatpush1.bf16.xpose.msra.mxu0 %v2334
        %4009 = vmatprep.subr.bf16.mxu0 %v2343
        %4010 = vmatpush1.bf16.xpose.msra.mxu0 %v2342
        %4011 = vmatprep.subr.bf16.mxu0 %v2351
        %4012 = vmatpush1.bf16.xpose.msra.mxu0 %v2350
        %4013 = vmatprep.subr.bf16.mxu0 %v2359
        %4014 = vmatpush1.bf16.xpose.msra.mxu0 %v2358
        %4015 = vmatprep.subr.bf16.mxu0 %v2367
        %4016 = vmatpush1.bf16.xpose.msra.mxu0 %v2366
        %4017 = vmatprep.subr.bf16.mxu0 %v2375
        %4018 = vmatpush1.bf16.xpose.msra.mxu0 %v2374
        %4019 = vmatprep.subr.bf16.mxu0 %v2383
        %4020 = vmatpush1.bf16.xpose.msra.mxu0 %v2382
        %4021 = vmatprep.subr.bf16.mxu0 %v2391
        %4022 = vmatpush1.bf16.xpose.msra.mxu0 %v2390
        %4023 = vmatprep.mubr.bf16.mxu0 %v471
        %4024 = vmatmul.mubr.bf16.gmra.mrb[0].mxu0 %v470
        %v4025 = vpop.f32.mrb[0].mxu0
        %v4026 = vadd.f32 %v3985, %v4025
        %v4027 = vpop.f32.mrb[0].mxu0
        %v4028 = vadd.f32 %v3987, %v4027
        %v4029 = vpop.f32.mrb[0].mxu0
        %v4030 = vpop.f32.mrb[0].mxu0
        %4031 = vdwg.mxu0
        %v4032 = vld [vmem:[%s364] sm:$0xff]
        %v4033 = vld [vmem:[%s364 + $0x8] sm:$0xff]
        %v4034 = vld [vmem:[%s364 + $0x10] sm:$0xf]
        %v4038 = vlaneseq
        %v4039 = vshrl.u32 %v4038, 7
        %v4040 = vsub.s32 0, %v4039
        %v4041 = vrot.slane %v4032, %v4040
        %v4042 = vlaneseq
        %v4043 = vshrl.u32 %v4042, 7
        %v4044 = vsub.s32 1, %v4043
        %v4045 = vrot.slane %v4032, %v4044
        %v4046 = vlaneseq
        %v4047 = vshrl.u32 %v4046, 7
        %v4048 = vsub.s32 2, %v4047
        %v4049 = vrot.slane %v4032, %v4048
        %v4050 = vlaneseq
        %v4051 = vshrl.u32 %v4050, 7
        %v4052 = vsub.s32 3, %v4051
        %v4053 = vrot.slane %v4032, %v4052
        %v4054 = vlaneseq
        %v4055 = vshrl.u32 %v4054, 7
        %v4056 = vsub.s32 4, %v4055
        %v4057 = vrot.slane %v4032, %v4056
        %v4058 = vlaneseq
        %v4059 = vshrl.u32 %v4058, 7
        %v4060 = vsub.s32 5, %v4059
        %v4061 = vrot.slane %v4032, %v4060
        %v4062 = vlaneseq
        %v4063 = vshrl.u32 %v4062, 7
        %v4064 = vsub.s32 6, %v4063
        %v4065 = vrot.slane %v4032, %v4064
        %v4066 = vlaneseq
        %v4067 = vshrl.u32 %v4066, 7
        %v4068 = vsub.s32 7, %v4067
        %v4069 = vrot.slane %v4032, %v4068
        %v4070 = vlaneseq
        %v4071 = vshrl.u32 %v4070, 7
        %v4072 = vsub.s32 0, %v4071
        %v4073 = vrot.slane %v4033, %v4072
        %v4074 = vlaneseq
        %v4075 = vshrl.u32 %v4074, 7
        %v4076 = vsub.s32 1, %v4075
        %v4077 = vrot.slane %v4033, %v4076
        %v4078 = vlaneseq
        %v4079 = vshrl.u32 %v4078, 7
        %v4080 = vsub.s32 2, %v4079
        %v4081 = vrot.slane %v4033, %v4080
        %v4082 = vlaneseq
        %v4083 = vshrl.u32 %v4082, 7
        %v4084 = vsub.s32 3, %v4083
        %v4085 = vrot.slane %v4033, %v4084
        %v4086 = vlaneseq
        %v4087 = vshrl.u32 %v4086, 7
        %v4088 = vsub.s32 4, %v4087
        %v4089 = vrot.slane %v4033, %v4088
        %v4090 = vlaneseq
        %v4091 = vshrl.u32 %v4090, 7
        %v4092 = vsub.s32 5, %v4091
        %v4093 = vrot.slane %v4033, %v4092
        %v4094 = vlaneseq
        %v4095 = vshrl.u32 %v4094, 7
        %v4096 = vsub.s32 6, %v4095
        %v4097 = vrot.slane %v4033, %v4096
        %v4098 = vlaneseq
        %v4099 = vshrl.u32 %v4098, 7
        %v4100 = vsub.s32 7, %v4099
        %v4101 = vrot.slane %v4033, %v4100
        %v4102 = vlaneseq
        %v4103 = vshrl.u32 %v4102, 7
        %v4104 = vsub.s32 0, %v4103
        %v4105 = vrot.slane %v4034, %v4104
        %v4106 = vlaneseq
        %v4107 = vshrl.u32 %v4106, 7
        %v4108 = vsub.s32 1, %v4107
        %v4109 = vrot.slane %v4034, %v4108
        %v4110 = vlaneseq
        %v4111 = vshrl.u32 %v4110, 7
        %v4112 = vsub.s32 2, %v4111
        %v4113 = vrot.slane %v4034, %v4112
        %v4114 = vlaneseq
        %v4115 = vshrl.u32 %v4114, 7
        %v4116 = vsub.s32 3, %v4115
        %v4117 = vrot.slane %v4034, %v4116
        %v4138 = vmul.f32 %v2550, %v4041
        %v4139 = vmul.f32 %v2552, %v4045
        %v4140 = vmul.f32 %v2714, %v4049
        %v4141 = vmul.f32 %v2716, %v4053
        %v4142 = vmul.f32 %v2878, %v4057
        %v4143 = vmul.f32 %v2880, %v4061
        %v4144 = vmul.f32 %v3042, %v4065
        %v4145 = vmul.f32 %v3044, %v4069
        %v4146 = vmul.f32 %v3206, %v4073
        %v4147 = vmul.f32 %v3208, %v4077
        %v4148 = vmul.f32 %v3370, %v4081
        %v4149 = vmul.f32 %v3372, %v4085
        %v4150 = vmul.f32 %v3534, %v4089
        %v4151 = vmul.f32 %v3536, %v4093
        %v4152 = vmul.f32 %v3698, %v4097
        %v4153 = vmul.f32 %v3700, %v4101
        %v4154 = vmul.f32 %v3862, %v4105
        %v4155 = vmul.f32 %v3864, %v4109
        %v4156 = vmul.f32 %v4026, %v4113
        %v4157 = vmul.f32 %v4028, %v4117
        %v4158 = vld [vmem:[%s373] sm:$0xff]
        %v4159 = vld [vmem:[%s373 + $0x8] sm:$0xff]
        %v4160 = vld [vmem:[%s373 + $0x10] sm:$0xf]
        %v4164 = vlaneseq
        %v4165 = vshrl.u32 %v4164, 7
        %v4166 = vsub.s32 0, %v4165
        %v4167 = vrot.slane %v4158, %v4166
        %v4168 = vlaneseq
        %v4169 = vshrl.u32 %v4168, 7
        %v4170 = vsub.s32 1, %v4169
        %v4171 = vrot.slane %v4158, %v4170
        %v4172 = vlaneseq
        %v4173 = vshrl.u32 %v4172, 7
        %v4174 = vsub.s32 2, %v4173
        %v4175 = vrot.slane %v4158, %v4174
        %v4176 = vlaneseq
        %v4177 = vshrl.u32 %v4176, 7
        %v4178 = vsub.s32 3, %v4177
        %v4179 = vrot.slane %v4158, %v4178
        %v4180 = vlaneseq
        %v4181 = vshrl.u32 %v4180, 7
        %v4182 = vsub.s32 4, %v4181
        %v4183 = vrot.slane %v4158, %v4182
        %v4184 = vlaneseq
        %v4185 = vshrl.u32 %v4184, 7
        %v4186 = vsub.s32 5, %v4185
        %v4187 = vrot.slane %v4158, %v4186
        %v4188 = vlaneseq
        %v4189 = vshrl.u32 %v4188, 7
        %v4190 = vsub.s32 6, %v4189
        %v4191 = vrot.slane %v4158, %v4190
        %v4192 = vlaneseq
        %v4193 = vshrl.u32 %v4192, 7
        %v4194 = vsub.s32 7, %v4193
        %v4195 = vrot.slane %v4158, %v4194
        %v4196 = vlaneseq
        %v4197 = vshrl.u32 %v4196, 7
        %v4198 = vsub.s32 0, %v4197
        %v4199 = vrot.slane %v4159, %v4198
        %v4200 = vlaneseq
        %v4201 = vshrl.u32 %v4200, 7
        %v4202 = vsub.s32 1, %v4201
        %v4203 = vrot.slane %v4159, %v4202
        %v4204 = vlaneseq
        %v4205 = vshrl.u32 %v4204, 7
        %v4206 = vsub.s32 2, %v4205
        %v4207 = vrot.slane %v4159, %v4206
        %v4208 = vlaneseq
        %v4209 = vshrl.u32 %v4208, 7
        %v4210 = vsub.s32 3, %v4209
        %v4211 = vrot.slane %v4159, %v4210
        %v4212 = vlaneseq
        %v4213 = vshrl.u32 %v4212, 7
        %v4214 = vsub.s32 4, %v4213
        %v4215 = vrot.slane %v4159, %v4214
        %v4216 = vlaneseq
        %v4217 = vshrl.u32 %v4216, 7
        %v4218 = vsub.s32 5, %v4217
        %v4219 = vrot.slane %v4159, %v4218
        %v4220 = vlaneseq
        %v4221 = vshrl.u32 %v4220, 7
        %v4222 = vsub.s32 6, %v4221
        %v4223 = vrot.slane %v4159, %v4222
        %v4224 = vlaneseq
        %v4225 = vshrl.u32 %v4224, 7
        %v4226 = vsub.s32 7, %v4225
        %v4227 = vrot.slane %v4159, %v4226
        %v4228 = vlaneseq
        %v4229 = vshrl.u32 %v4228, 7
        %v4230 = vsub.s32 0, %v4229
        %v4231 = vrot.slane %v4160, %v4230
        %v4232 = vlaneseq
        %v4233 = vshrl.u32 %v4232, 7
        %v4234 = vsub.s32 1, %v4233
        %v4235 = vrot.slane %v4160, %v4234
        %v4236 = vlaneseq
        %v4237 = vshrl.u32 %v4236, 7
        %v4238 = vsub.s32 2, %v4237
        %v4239 = vrot.slane %v4160, %v4238
        %v4240 = vlaneseq
        %v4241 = vshrl.u32 %v4240, 7
        %v4242 = vsub.s32 3, %v4241
        %v4243 = vrot.slane %v4160, %v4242
        %v4264 = vadd.f32 %v4138, %v4167
        %v4265 = vadd.f32 %v4139, %v4171
        %v4266 = vadd.f32 %v4140, %v4175
        %v4267 = vadd.f32 %v4141, %v4179
        %v4268 = vadd.f32 %v4142, %v4183
        %v4269 = vadd.f32 %v4143, %v4187
        %v4270 = vadd.f32 %v4144, %v4191
        %v4271 = vadd.f32 %v4145, %v4195
        %v4272 = vadd.f32 %v4146, %v4199
        %v4273 = vadd.f32 %v4147, %v4203
        %v4274 = vadd.f32 %v4148, %v4207
        %v4275 = vadd.f32 %v4149, %v4211
        %v4276 = vadd.f32 %v4150, %v4215
        %v4277 = vadd.f32 %v4151, %v4219
        %v4278 = vadd.f32 %v4152, %v4223
        %v4279 = vadd.f32 %v4153, %v4227
        %v4280 = vadd.f32 %v4154, %v4231
        %v4281 = vadd.f32 %v4155, %v4235
        %v4282 = vadd.f32 %v4156, %v4239
        %v4283 = vadd.f32 %v4157, %v4243
        %v4284 = vmax.f32 %v4264, 0.0
        %v4285 = vmax.f32 %v4265, 0.0
        %v4286 = vmax.f32 %v4266, 0.0
        %v4287 = vmax.f32 %v4267, 0.0
        %v4288 = vmax.f32 %v4268, 0.0
        %v4289 = vmax.f32 %v4269, 0.0
        %v4290 = vmax.f32 %v4270, 0.0
        %v4291 = vmax.f32 %v4271, 0.0
        %v4292 = vmax.f32 %v4272, 0.0
        %v4293 = vmax.f32 %v4273, 0.0
        %v4294 = vmax.f32 %v4274, 0.0
        %v4295 = vmax.f32 %v4275, 0.0
        %v4296 = vmax.f32 %v4276, 0.0
        %v4297 = vmax.f32 %v4277, 0.0
        %v4298 = vmax.f32 %v4278, 0.0
        %v4299 = vmax.f32 %v4279, 0.0
        %v4300 = vmax.f32 %v4280, 0.0
        %v4301 = vmax.f32 %v4281, 0.0
        %v4302 = vmax.f32 %v4282, 0.0
        %v4303 = vmax.f32 %v4283, 0.0
        %v4304 = vld [vmem:[#allocation11] sm:$0xff]
        %v4305 = vpack.c.bf16 %v4284, %v4284
        %v4306 = vpack.c.bf16 %v4285, %v4285
        %v4307 = vpack.c.bf16 %v4286, %v4286
        %v4308 = vpack.c.bf16 %v4287, %v4287
        %v4309 = vpack.c.bf16 %v4288, %v4288
        %v4310 = vpack.c.bf16 %v4289, %v4289
        %v4311 = vpack.c.bf16 %v4290, %v4290
        %v4312 = vpack.c.bf16 %v4291, %v4291
        %v4313 = vpack.c.bf16 %v4292, %v4292
        %v4314 = vpack.c.bf16 %v4293, %v4293
        %v4315 = vpack.c.bf16 %v4294, %v4294
        %v4316 = vpack.c.bf16 %v4295, %v4295
        %v4317 = vpack.c.bf16 %v4296, %v4296
        %v4318 = vpack.c.bf16 %v4297, %v4297
        %v4319 = vpack.c.bf16 %v4298, %v4298
        %v4320 = vpack.c.bf16 %v4299, %v4299
        %v4321 = vpack.c.bf16 %v4300, %v4300
        %v4322 = vpack.c.bf16 %v4301, %v4301
        %v4323 = vpack.c.bf16 %v4302, %v4302
        %v4324 = vpack.c.bf16 %v4303, %v4303
        %v4325 = vld [vmem:[%s382] sm:$0xf]
        %v4326 = vld [vmem:[%s382 + $0x4] sm:$0xf]
        %v4327 = vld [vmem:[%s382 + $0x8] sm:$0xf]
        %v4328 = vld [vmem:[%s382 + $0xc] sm:$0xf]
        %v4329 = vld [vmem:[%s382 + $0x10] sm:$0xf]
        %v4330 = vld [vmem:[%s382 + $0x14] sm:$0xf]
        %v4331 = vld [vmem:[%s382 + $0x18] sm:$0xf]
        %v4332 = vld [vmem:[%s382 + $0x1c] sm:$0xf]
        %v4333 = vld [vmem:[%s382 + $0x20] sm:$0xf]
        %v4334 = vld [vmem:[%s382 + $0x24] sm:$0xf]
        %v4335 = vld [vmem:[%s382 + $0x28] sm:$0xf]
        %v4336 = vld [vmem:[%s382 + $0x2c] sm:$0xf]
        %v4337 = vld [vmem:[%s382 + $0x30] sm:$0xf]
        %v4338 = vld [vmem:[%s382 + $0x34] sm:$0xf]
        %v4339 = vld [vmem:[%s382 + $0x38] sm:$0xf]
        %v4340 = vld [vmem:[%s382 + $0x3c] sm:$0xf]
        %v4341 = vld [vmem:[%s382 + $0x40] sm:$0xf]
        %v4342 = vld [vmem:[%s382 + $0x44] sm:$0xf]
        %v4343 = vld [vmem:[%s382 + $0x48] sm:$0xf]
        %v4344 = vld [vmem:[%s382 + $0x4c] sm:$0xf]
        %v4345 = vld [vmem:[%s382 + $0x50] sm:$0xf]
        %v4346 = vld [vmem:[%s382 + $0x54] sm:$0xf]
        %v4347 = vld [vmem:[%s382 + $0x58] sm:$0xf]
        %v4348 = vld [vmem:[%s382 + $0x5c] sm:$0xf]
        %v4349 = vld [vmem:[%s382 + $0x60] sm:$0xf]
        %v4350 = vld [vmem:[%s382 + $0x64] sm:$0xf]
        %v4351 = vld [vmem:[%s382 + $0x68] sm:$0xf]
        %v4352 = vld [vmem:[%s382 + $0x6c] sm:$0xf]
        %v4353 = vld [vmem:[%s382 + $0x70] sm:$0xf]
        %v4354 = vld [vmem:[%s382 + $0x74] sm:$0xf]
        %v4355 = vld [vmem:[%s382 + $0x78] sm:$0xf]
        %v4356 = vld [vmem:[%s382 + $0x7c] sm:$0xf]
        %v4357 = vld [vmem:[%s382 + $0x80] sm:$0xf]
        %v4358 = vld [vmem:[%s382 + $0x84] sm:$0xf]
        %v4359 = vld [vmem:[%s382 + $0x88] sm:$0xf]
        %v4360 = vld [vmem:[%s382 + $0x8c] sm:$0xf]
        %v4361 = vld [vmem:[%s382 + $0x90] sm:$0xf]
        %v4362 = vld [vmem:[%s382 + $0x94] sm:$0xf]
        %v4363 = vld [vmem:[%s382 + $0x98] sm:$0xf]
        %v4364 = vld [vmem:[%s382 + $0x9c] sm:$0xf]
        %v4365 = vld [vmem:[%s382 + $0xa0] sm:$0xf]
        %v4366 = vld [vmem:[%s382 + $0xa4] sm:$0xf]
        %v4367 = vld [vmem:[%s382 + $0xa8] sm:$0xf]
        %v4368 = vld [vmem:[%s382 + $0xac] sm:$0xf]
        %v4369 = vld [vmem:[%s382 + $0xb0] sm:$0xf]
        %v4370 = vld [vmem:[%s382 + $0xb4] sm:$0xf]
        %v4371 = vld [vmem:[%s382 + $0xb8] sm:$0xf]
        %v4372 = vld [vmem:[%s382 + $0xbc] sm:$0xf]
        %v4373 = vld [vmem:[%s382 + $0xc0] sm:$0xf]
        %v4374 = vld [vmem:[%s382 + $0xc4] sm:$0xf]
        %v4375 = vld [vmem:[%s382 + $0xc8] sm:$0xf]
        %v4376 = vld [vmem:[%s382 + $0xcc] sm:$0xf]
        %v4377 = vld [vmem:[%s382 + $0xd0] sm:$0xf]
        %v4378 = vld [vmem:[%s382 + $0xd4] sm:$0xf]
        %v4379 = vld [vmem:[%s382 + $0xd8] sm:$0xf]
        %v4380 = vld [vmem:[%s382 + $0xdc] sm:$0xf]
        %v4381 = vld [vmem:[%s382 + $0xe0] sm:$0xf]
        %v4382 = vld [vmem:[%s382 + $0xe4] sm:$0xf]
        %v4383 = vld [vmem:[%s382 + $0xe8] sm:$0xf]
        %v4384 = vld [vmem:[%s382 + $0xec] sm:$0xf]
        %v4385 = vld [vmem:[%s382 + $0xf0] sm:$0xf]
        %v4386 = vld [vmem:[%s382 + $0xf4] sm:$0xf]
        %v4387 = vld [vmem:[%s382 + $0xf8] sm:$0xf]
        %v4388 = vld [vmem:[%s382 + $0xfc] sm:$0xf]
        %v4389 = vld [vmem:[%s382 + $0x100] sm:$0xf]
        %v4390 = vld [vmem:[%s382 + $0x104] sm:$0xf]
        %v4391 = vld [vmem:[%s382 + $0x108] sm:$0xf]
        %v4392 = vld [vmem:[%s382 + $0x10c] sm:$0xf]
        %v4393 = vld [vmem:[%s382 + $0x110] sm:$0xf]
        %v4394 = vld [vmem:[%s382 + $0x114] sm:$0xf]
        %v4395 = vld [vmem:[%s382 + $0x118] sm:$0xf]
        %v4396 = vld [vmem:[%s382 + $0x11c] sm:$0xf]
        %v4397 = vld [vmem:[%s382 + $0x120] sm:$0xf]
        %v4398 = vld [vmem:[%s382 + $0x124] sm:$0xf]
        %v4399 = vld [vmem:[%s382 + $0x128] sm:$0xf]
        %v4400 = vld [vmem:[%s382 + $0x12c] sm:$0xf]
        %v4401 = vld [vmem:[%s382 + $0x130] sm:$0xf]
        %v4402 = vld [vmem:[%s382 + $0x134] sm:$0xf]
        %v4403 = vld [vmem:[%s382 + $0x138] sm:$0xf]
        %v4404 = vld [vmem:[%s382 + $0x13c] sm:$0xf]
        %v4405 = vld [vmem:[%s382 + $0x140] sm:$0xf]
        %v4406 = vld [vmem:[%s382 + $0x144] sm:$0xf]
        %v4407 = vld [vmem:[%s382 + $0x148] sm:$0xf]
        %v4408 = vld [vmem:[%s382 + $0x14c] sm:$0xf]
        %v4409 = vld [vmem:[%s382 + $0x150] sm:$0xf]
        %v4410 = vld [vmem:[%s382 + $0x154] sm:$0xf]
        %v4411 = vld [vmem:[%s382 + $0x158] sm:$0xf]
        %v4412 = vld [vmem:[%s382 + $0x15c] sm:$0xf]
        %v4413 = vld [vmem:[%s382 + $0x160] sm:$0xf]
        %v4414 = vld [vmem:[%s382 + $0x164] sm:$0xf]
        %v4415 = vld [vmem:[%s382 + $0x168] sm:$0xf]
        %v4416 = vld [vmem:[%s382 + $0x16c] sm:$0xf]
        %v4417 = vld [vmem:[%s382 + $0x170] sm:$0xf]
        %v4418 = vld [vmem:[%s382 + $0x174] sm:$0xf]
        %v4419 = vld [vmem:[%s382 + $0x178] sm:$0xf]
        %v4420 = vld [vmem:[%s382 + $0x17c] sm:$0xf]
        %v4421 = vld [vmem:[%s382 + $0x180] sm:$0xf]
        %v4422 = vld [vmem:[%s382 + $0x184] sm:$0xf]
        %v4423 = vld [vmem:[%s382 + $0x188] sm:$0xf]
        %v4424 = vld [vmem:[%s382 + $0x18c] sm:$0xf]
        %v4425 = vld [vmem:[%s382 + $0x190] sm:$0xf]
        %v4426 = vld [vmem:[%s382 + $0x194] sm:$0xf]
        %v4427 = vld [vmem:[%s382 + $0x198] sm:$0xf]
        %v4428 = vld [vmem:[%s382 + $0x19c] sm:$0xf]
        %v4429 = vld [vmem:[%s382 + $0x1a0] sm:$0xf]
        %v4430 = vld [vmem:[%s382 + $0x1a4] sm:$0xf]
        %v4431 = vld [vmem:[%s382 + $0x1a8] sm:$0xf]
        %v4432 = vld [vmem:[%s382 + $0x1ac] sm:$0xf]
        %v4433 = vld [vmem:[%s382 + $0x1b0] sm:$0xf]
        %v4434 = vld [vmem:[%s382 + $0x1b4] sm:$0xf]
        %v4435 = vld [vmem:[%s382 + $0x1b8] sm:$0xf]
        %v4436 = vld [vmem:[%s382 + $0x1bc] sm:$0xf]
        %v4437 = vld [vmem:[%s382 + $0x1c0] sm:$0xf]
        %v4438 = vld [vmem:[%s382 + $0x1c4] sm:$0xf]
        %v4439 = vld [vmem:[%s382 + $0x1c8] sm:$0xf]
        %v4440 = vld [vmem:[%s382 + $0x1cc] sm:$0xf]
        %v4441 = vld [vmem:[%s382 + $0x1d0] sm:$0xf]
        %v4442 = vld [vmem:[%s382 + $0x1d4] sm:$0xf]
        %v4443 = vld [vmem:[%s382 + $0x1d8] sm:$0xf]
        %v4444 = vld [vmem:[%s382 + $0x1dc] sm:$0xf]
        %v4445 = vld [vmem:[%s382 + $0x1e0] sm:$0xf]
        %v4446 = vld [vmem:[%s382 + $0x1e4] sm:$0xf]
        %v4447 = vld [vmem:[%s382 + $0x1e8] sm:$0xf]
        %v4448 = vld [vmem:[%s382 + $0x1ec] sm:$0xf]
        %v4449 = vld [vmem:[%s382 + $0x1f0] sm:$0xf]
        %v4450 = vld [vmem:[%s382 + $0x1f4] sm:$0xf]
        %v4451 = vld [vmem:[%s382 + $0x1f8] sm:$0xf]
        %v4452 = vld [vmem:[%s382 + $0x1fc] sm:$0xf]
        %v4453 = vld [vmem:[%s382 + $0x200] sm:$0xf]
        %v4454 = vld [vmem:[%s382 + $0x204] sm:$0xf]
        %v4455 = vld [vmem:[%s382 + $0x208] sm:$0xf]
        %v4456 = vld [vmem:[%s382 + $0x20c] sm:$0xf]
        %v4457 = vld [vmem:[%s382 + $0x210] sm:$0xf]
        %v4458 = vld [vmem:[%s382 + $0x214] sm:$0xf]
        %v4459 = vld [vmem:[%s382 + $0x218] sm:$0xf]
        %v4460 = vld [vmem:[%s382 + $0x21c] sm:$0xf]
        %v4461 = vld [vmem:[%s382 + $0x220] sm:$0xf]
        %v4462 = vld [vmem:[%s382 + $0x224] sm:$0xf]
        %v4463 = vld [vmem:[%s382 + $0x228] sm:$0xf]
        %v4464 = vld [vmem:[%s382 + $0x22c] sm:$0xf]
        %v4465 = vld [vmem:[%s382 + $0x230] sm:$0xf]
        %v4466 = vld [vmem:[%s382 + $0x234] sm:$0xf]
        %v4467 = vld [vmem:[%s382 + $0x238] sm:$0xf]
        %v4468 = vld [vmem:[%s382 + $0x23c] sm:$0xf]
        %v4469 = vld [vmem:[%s382 + $0x240] sm:$0xf]
        %v4470 = vld [vmem:[%s382 + $0x244] sm:$0xf]
        %v4471 = vld [vmem:[%s382 + $0x248] sm:$0xf]
        %v4472 = vld [vmem:[%s382 + $0x24c] sm:$0xf]
        %v4473 = vld [vmem:[%s382 + $0x250] sm:$0xf]
        %v4474 = vld [vmem:[%s382 + $0x254] sm:$0xf]
        %v4475 = vld [vmem:[%s382 + $0x258] sm:$0xf]
        %v4476 = vld [vmem:[%s382 + $0x25c] sm:$0xf]
        %v4477 = vld [vmem:[%s382 + $0x260] sm:$0xf]
        %v4478 = vld [vmem:[%s382 + $0x264] sm:$0xf]
        %v4479 = vld [vmem:[%s382 + $0x268] sm:$0xf]
        %v4480 = vld [vmem:[%s382 + $0x26c] sm:$0xf]
        %v4481 = vld [vmem:[%s382 + $0x270] sm:$0xf]
        %v4482 = vld [vmem:[%s382 + $0x274] sm:$0xf]
        %v4483 = vld [vmem:[%s382 + $0x278] sm:$0xf]
        %v4484 = vld [vmem:[%s382 + $0x27c] sm:$0xf]
        %v4485 = vld [vmem:[%s382 + $0x280] sm:$0xf]
        %v4486 = vld [vmem:[%s382 + $0x284] sm:$0xf]
        %v4487 = vld [vmem:[%s382 + $0x288] sm:$0xf]
        %v4488 = vld [vmem:[%s382 + $0x28c] sm:$0xf]
        %v4489 = vld [vmem:[%s382 + $0x290] sm:$0xf]
        %v4490 = vld [vmem:[%s382 + $0x294] sm:$0xf]
        %v4491 = vld [vmem:[%s382 + $0x298] sm:$0xf]
        %v4492 = vld [vmem:[%s382 + $0x29c] sm:$0xf]
        %v4493 = vld [vmem:[%s382 + $0x2a0] sm:$0xf]
        %v4494 = vld [vmem:[%s382 + $0x2a4] sm:$0xf]
        %v4495 = vld [vmem:[%s382 + $0x2a8] sm:$0xf]
        %v4496 = vld [vmem:[%s382 + $0x2ac] sm:$0xf]
        %v4497 = vld [vmem:[%s382 + $0x2b0] sm:$0xf]
        %v4498 = vld [vmem:[%s382 + $0x2b4] sm:$0xf]
        %v4499 = vld [vmem:[%s382 + $0x2b8] sm:$0xf]
        %v4500 = vld [vmem:[%s382 + $0x2bc] sm:$0xf]
        %v4501 = vld [vmem:[%s382 + $0x2c0] sm:$0xf]
        %v4502 = vld [vmem:[%s382 + $0x2c4] sm:$0xf]
        %v4503 = vld [vmem:[%s382 + $0x2c8] sm:$0xf]
        %v4504 = vld [vmem:[%s382 + $0x2cc] sm:$0xf]
        %v4505 = vld [vmem:[%s382 + $0x2d0] sm:$0xf]
        %v4506 = vld [vmem:[%s382 + $0x2d4] sm:$0xf]
        %v4507 = vld [vmem:[%s382 + $0x2d8] sm:$0xf]
        %v4508 = vld [vmem:[%s382 + $0x2dc] sm:$0xf]
        %v4509 = vld [vmem:[%s382 + $0x2e0] sm:$0xf]
        %v4510 = vld [vmem:[%s382 + $0x2e4] sm:$0xf]
        %v4511 = vld [vmem:[%s382 + $0x2e8] sm:$0xf]
        %v4512 = vld [vmem:[%s382 + $0x2ec] sm:$0xf]
        %v4513 = vld [vmem:[%s382 + $0x2f0] sm:$0xf]
        %v4514 = vld [vmem:[%s382 + $0x2f4] sm:$0xf]
        %v4515 = vld [vmem:[%s382 + $0x2f8] sm:$0xf]
        %v4516 = vld [vmem:[%s382 + $0x2fc] sm:$0xf]
        %v4517 = vld [vmem:[%s382 + $0x300] sm:$0xf]
        %v4518 = vld [vmem:[%s382 + $0x304] sm:$0xf]
        %v4519 = vld [vmem:[%s382 + $0x308] sm:$0xf]
        %v4520 = vld [vmem:[%s382 + $0x30c] sm:$0xf]
        %v4521 = vld [vmem:[%s382 + $0x310] sm:$0xf]
        %v4522 = vld [vmem:[%s382 + $0x314] sm:$0xf]
        %v4523 = vld [vmem:[%s382 + $0x318] sm:$0xf]
        %v4524 = vld [vmem:[%s382 + $0x31c] sm:$0xf]
        %v4525 = vld [vmem:[%s382 + $0x320] sm:$0xf]
        %v4526 = vld [vmem:[%s382 + $0x324] sm:$0xf]
        %v4527 = vld [vmem:[%s382 + $0x328] sm:$0xf]
        %v4528 = vld [vmem:[%s382 + $0x32c] sm:$0xf]
        %v4529 = vld [vmem:[%s382 + $0x330] sm:$0xf]
        %v4530 = vld [vmem:[%s382 + $0x334] sm:$0xf]
        %v4531 = vld [vmem:[%s382 + $0x338] sm:$0xf]
        %v4532 = vld [vmem:[%s382 + $0x33c] sm:$0xf]
        %v4533 = vld [vmem:[%s382 + $0x340] sm:$0xf]
        %v4534 = vld [vmem:[%s382 + $0x344] sm:$0xf]
        %v4535 = vld [vmem:[%s382 + $0x348] sm:$0xf]
        %v4536 = vld [vmem:[%s382 + $0x34c] sm:$0xf]
        %v4537 = vld [vmem:[%s382 + $0x350] sm:$0xf]
        %v4538 = vld [vmem:[%s382 + $0x354] sm:$0xf]
        %v4539 = vld [vmem:[%s382 + $0x358] sm:$0xf]
        %v4540 = vld [vmem:[%s382 + $0x35c] sm:$0xf]
        %v4541 = vld [vmem:[%s382 + $0x360] sm:$0xf]
        %v4542 = vld [vmem:[%s382 + $0x364] sm:$0xf]
        %v4543 = vld [vmem:[%s382 + $0x368] sm:$0xf]
        %v4544 = vld [vmem:[%s382 + $0x36c] sm:$0xf]
        %v4545 = vld [vmem:[%s382 + $0x370] sm:$0xf]
        %v4546 = vld [vmem:[%s382 + $0x374] sm:$0xf]
        %v4547 = vld [vmem:[%s382 + $0x378] sm:$0xf]
        %v4548 = vld [vmem:[%s382 + $0x37c] sm:$0xf]
        %v4549 = vld [vmem:[%s382 + $0x380] sm:$0xf]
        %v4550 = vld [vmem:[%s382 + $0x384] sm:$0xf]
        %v4551 = vld [vmem:[%s382 + $0x388] sm:$0xf]
        %v4552 = vld [vmem:[%s382 + $0x38c] sm:$0xf]
        %v4553 = vld [vmem:[%s382 + $0x390] sm:$0xf]
        %v4554 = vld [vmem:[%s382 + $0x394] sm:$0xf]
        %v4555 = vld [vmem:[%s382 + $0x398] sm:$0xf]
        %v4556 = vld [vmem:[%s382 + $0x39c] sm:$0xf]
        %v4557 = vld [vmem:[%s382 + $0x3a0] sm:$0xf]
        %v4558 = vld [vmem:[%s382 + $0x3a4] sm:$0xf]
        %v4559 = vld [vmem:[%s382 + $0x3a8] sm:$0xf]
        %v4560 = vld [vmem:[%s382 + $0x3ac] sm:$0xf]
        %v4561 = vld [vmem:[%s382 + $0x3b0] sm:$0xf]
        %v4562 = vld [vmem:[%s382 + $0x3b4] sm:$0xf]
        %v4563 = vld [vmem:[%s382 + $0x3b8] sm:$0xf]
        %v4564 = vld [vmem:[%s382 + $0x3bc] sm:$0xf]
        %v4565 = vld [vmem:[%s382 + $0x3c0] sm:$0xf]
        %v4566 = vld [vmem:[%s382 + $0x3c4] sm:$0xf]
        %v4567 = vld [vmem:[%s382 + $0x3c8] sm:$0xf]
        %v4568 = vld [vmem:[%s382 + $0x3cc] sm:$0xf]
        %v4569 = vld [vmem:[%s382 + $0x3d0] sm:$0xf]
        %v4570 = vld [vmem:[%s382 + $0x3d4] sm:$0xf]
        %v4571 = vld [vmem:[%s382 + $0x3d8] sm:$0xf]
        %v4572 = vld [vmem:[%s382 + $0x3dc] sm:$0xf]
        %v4573 = vld [vmem:[%s382 + $0x3e0] sm:$0xf]
        %v4574 = vld [vmem:[%s382 + $0x3e4] sm:$0xf]
        %v4575 = vld [vmem:[%s382 + $0x3e8] sm:$0xf]
        %v4576 = vld [vmem:[%s382 + $0x3ec] sm:$0xf]
        %v4577 = vld [vmem:[%s382 + $0x3f0] sm:$0xf]
        %v4578 = vld [vmem:[%s382 + $0x3f4] sm:$0xf]
        %v4579 = vld [vmem:[%s382 + $0x3f8] sm:$0xf]
        %v4580 = vld [vmem:[%s382 + $0x3fc] sm:$0xf]
        %v4581 = vld [vmem:[%s382 + $0x400] sm:$0xf]
        %v4582 = vld [vmem:[%s382 + $0x404] sm:$0xf]
        %v4583 = vld [vmem:[%s382 + $0x408] sm:$0xf]
        %v4584 = vld [vmem:[%s382 + $0x40c] sm:$0xf]
        %v4585 = vld [vmem:[%s382 + $0x410] sm:$0xf]
        %v4586 = vld [vmem:[%s382 + $0x414] sm:$0xf]
        %v4587 = vld [vmem:[%s382 + $0x418] sm:$0xf]
        %v4588 = vld [vmem:[%s382 + $0x41c] sm:$0xf]
        %v4589 = vld [vmem:[%s382 + $0x420] sm:$0xf]
        %v4590 = vld [vmem:[%s382 + $0x424] sm:$0xf]
        %v4591 = vld [vmem:[%s382 + $0x428] sm:$0xf]
        %v4592 = vld [vmem:[%s382 + $0x42c] sm:$0xf]
        %v4593 = vld [vmem:[%s382 + $0x430] sm:$0xf]
        %v4594 = vld [vmem:[%s382 + $0x434] sm:$0xf]
        %v4595 = vld [vmem:[%s382 + $0x438] sm:$0xf]
        %v4596 = vld [vmem:[%s382 + $0x43c] sm:$0xf]
        %v4597 = vld [vmem:[%s382 + $0x440] sm:$0xf]
        %v4598 = vld [vmem:[%s382 + $0x444] sm:$0xf]
        %v4599 = vld [vmem:[%s382 + $0x448] sm:$0xf]
        %v4600 = vld [vmem:[%s382 + $0x44c] sm:$0xf]
        %v4601 = vld [vmem:[%s382 + $0x450] sm:$0xf]
        %v4602 = vld [vmem:[%s382 + $0x454] sm:$0xf]
        %v4603 = vld [vmem:[%s382 + $0x458] sm:$0xf]
        %v4604 = vld [vmem:[%s382 + $0x45c] sm:$0xf]
        %v4605 = vld [vmem:[%s382 + $0x460] sm:$0xf]
        %v4606 = vld [vmem:[%s382 + $0x464] sm:$0xf]
        %v4607 = vld [vmem:[%s382 + $0x468] sm:$0xf]
        %v4608 = vld [vmem:[%s382 + $0x46c] sm:$0xf]
        %v4609 = vld [vmem:[%s382 + $0x470] sm:$0xf]
        %v4610 = vld [vmem:[%s382 + $0x474] sm:$0xf]
        %v4611 = vld [vmem:[%s382 + $0x478] sm:$0xf]
        %v4612 = vld [vmem:[%s382 + $0x47c] sm:$0xf]
        %v4613 = vld [vmem:[%s382 + $0x480] sm:$0xf]
        %v4614 = vld [vmem:[%s382 + $0x484] sm:$0xf]
        %v4615 = vld [vmem:[%s382 + $0x488] sm:$0xf]
        %v4616 = vld [vmem:[%s382 + $0x48c] sm:$0xf]
        %v4617 = vld [vmem:[%s382 + $0x490] sm:$0xf]
        %v4618 = vld [vmem:[%s382 + $0x494] sm:$0xf]
        %v4619 = vld [vmem:[%s382 + $0x498] sm:$0xf]
        %v4620 = vld [vmem:[%s382 + $0x49c] sm:$0xf]
        %v4621 = vld [vmem:[%s382 + $0x4a0] sm:$0xf]
        %v4622 = vld [vmem:[%s382 + $0x4a4] sm:$0xf]
        %v4623 = vld [vmem:[%s382 + $0x4a8] sm:$0xf]
        %v4624 = vld [vmem:[%s382 + $0x4ac] sm:$0xf]
        %v4625 = vld [vmem:[%s382 + $0x4b0] sm:$0xf]
        %v4626 = vld [vmem:[%s382 + $0x4b4] sm:$0xf]
        %v4627 = vld [vmem:[%s382 + $0x4b8] sm:$0xf]
        %v4628 = vld [vmem:[%s382 + $0x4bc] sm:$0xf]
        %v4629 = vld [vmem:[%s382 + $0x4c0] sm:$0xf]
        %v4630 = vld [vmem:[%s382 + $0x4c4] sm:$0xf]
        %v4631 = vld [vmem:[%s382 + $0x4c8] sm:$0xf]
        %v4632 = vld [vmem:[%s382 + $0x4cc] sm:$0xf]
        %v4633 = vld [vmem:[%s382 + $0x4d0] sm:$0xf]
        %v4634 = vld [vmem:[%s382 + $0x4d4] sm:$0xf]
        %v4635 = vld [vmem:[%s382 + $0x4d8] sm:$0xf]
        %v4636 = vld [vmem:[%s382 + $0x4dc] sm:$0xf]
        %v4637 = vld [vmem:[%s382 + $0x4e0] sm:$0xf]
        %v4638 = vld [vmem:[%s382 + $0x4e4] sm:$0xf]
        %v4639 = vld [vmem:[%s382 + $0x4e8] sm:$0xf]
        %v4640 = vld [vmem:[%s382 + $0x4ec] sm:$0xf]
        %v4641 = vld [vmem:[%s382 + $0x4f0] sm:$0xf]
        %v4642 = vld [vmem:[%s382 + $0x4f4] sm:$0xf]
        %v4643 = vld [vmem:[%s382 + $0x4f8] sm:$0xf]
        %v4644 = vld [vmem:[%s382 + $0x4fc] sm:$0xf]
        %v4965 = vunpack.c.l.b16 %v4325
        %v4966 = vunpack.c.l.b16 %v4326
        %v4967 = vunpack.c.l.b16 %v4327
        %v4968 = vunpack.c.l.b16 %v4328
        %v4969 = vunpack.c.l.b16 %v4329
        %v4970 = vunpack.c.l.b16 %v4330
        %v4971 = vunpack.c.l.b16 %v4331
        %v4972 = vunpack.c.l.b16 %v4332
        %v4973 = vunpack.c.l.b16 %v4333
        %v4974 = vunpack.c.l.b16 %v4334
        %v4975 = vunpack.c.l.b16 %v4335
        %v4976 = vunpack.c.l.b16 %v4336
        %v4977 = vunpack.c.l.b16 %v4337
        %v4978 = vunpack.c.l.b16 %v4338
        %v4979 = vunpack.c.l.b16 %v4339
        %v4980 = vunpack.c.l.b16 %v4340
        %v4981 = vunpack.c.l.b16 %v4341
        %v4982 = vunpack.c.l.b16 %v4342
        %v4983 = vunpack.c.l.b16 %v4343
        %v4984 = vunpack.c.l.b16 %v4344
        %v4985 = vunpack.c.l.b16 %v4345
        %v4986 = vunpack.c.l.b16 %v4346
        %v4987 = vunpack.c.l.b16 %v4347
        %v4988 = vunpack.c.l.b16 %v4348
        %v4989 = vunpack.c.l.b16 %v4349
        %v4990 = vunpack.c.l.b16 %v4350
        %v4991 = vunpack.c.l.b16 %v4351
        %v4992 = vunpack.c.l.b16 %v4352
        %v4993 = vunpack.c.l.b16 %v4353
        %v4994 = vunpack.c.l.b16 %v4354
        %v4995 = vunpack.c.l.b16 %v4355
        %v4996 = vunpack.c.l.b16 %v4356
        %v4997 = vunpack.c.l.b16 %v4357
        %v4998 = vunpack.c.l.b16 %v4358
        %v4999 = vunpack.c.l.b16 %v4359
        %v5000 = vunpack.c.l.b16 %v4360
        %v5001 = vunpack.c.l.b16 %v4361
        %v5002 = vunpack.c.l.b16 %v4362
        %v5003 = vunpack.c.l.b16 %v4363
        %v5004 = vunpack.c.l.b16 %v4364
        %v5005 = vunpack.c.l.b16 %v4365
        %v5006 = vunpack.c.l.b16 %v4366
        %v5007 = vunpack.c.l.b16 %v4367
        %v5008 = vunpack.c.l.b16 %v4368
        %v5009 = vunpack.c.l.b16 %v4369
        %v5010 = vunpack.c.l.b16 %v4370
        %v5011 = vunpack.c.l.b16 %v4371
        %v5012 = vunpack.c.l.b16 %v4372
        %v5013 = vunpack.c.l.b16 %v4373
        %v5014 = vunpack.c.l.b16 %v4374
        %v5015 = vunpack.c.l.b16 %v4375
        %v5016 = vunpack.c.l.b16 %v4376
        %v5017 = vunpack.c.l.b16 %v4377
        %v5018 = vunpack.c.l.b16 %v4378
        %v5019 = vunpack.c.l.b16 %v4379
        %v5020 = vunpack.c.l.b16 %v4380
        %v5021 = vunpack.c.l.b16 %v4381
        %v5022 = vunpack.c.l.b16 %v4382
        %v5023 = vunpack.c.l.b16 %v4383
        %v5024 = vunpack.c.l.b16 %v4384
        %v5025 = vunpack.c.l.b16 %v4385
        %v5026 = vunpack.c.l.b16 %v4386
        %v5027 = vunpack.c.l.b16 %v4387
        %v5028 = vunpack.c.l.b16 %v4388
        %v5029 = vunpack.c.l.b16 %v4389
        %v5030 = vunpack.c.l.b16 %v4390
        %v5031 = vunpack.c.l.b16 %v4391
        %v5032 = vunpack.c.l.b16 %v4392
        %v5033 = vunpack.c.l.b16 %v4393
        %v5034 = vunpack.c.l.b16 %v4394
        %v5035 = vunpack.c.l.b16 %v4395
        %v5036 = vunpack.c.l.b16 %v4396
        %v5037 = vunpack.c.l.b16 %v4397
        %v5038 = vunpack.c.l.b16 %v4398
        %v5039 = vunpack.c.l.b16 %v4399
        %v5040 = vunpack.c.l.b16 %v4400
        %v5041 = vunpack.c.l.b16 %v4401
        %v5042 = vunpack.c.l.b16 %v4402
        %v5043 = vunpack.c.l.b16 %v4403
        %v5044 = vunpack.c.l.b16 %v4404
        %v5045 = vunpack.c.l.b16 %v4405
        %v5046 = vunpack.c.l.b16 %v4406
        %v5047 = vunpack.c.l.b16 %v4407
        %v5048 = vunpack.c.l.b16 %v4408
        %v5049 = vunpack.c.l.b16 %v4409
        %v5050 = vunpack.c.l.b16 %v4410
        %v5051 = vunpack.c.l.b16 %v4411
        %v5052 = vunpack.c.l.b16 %v4412
        %v5053 = vunpack.c.l.b16 %v4413
        %v5054 = vunpack.c.l.b16 %v4414
        %v5055 = vunpack.c.l.b16 %v4415
        %v5056 = vunpack.c.l.b16 %v4416
        %v5057 = vunpack.c.l.b16 %v4417
        %v5058 = vunpack.c.l.b16 %v4418
        %v5059 = vunpack.c.l.b16 %v4419
        %v5060 = vunpack.c.l.b16 %v4420
        %v5061 = vunpack.c.l.b16 %v4421
        %v5062 = vunpack.c.l.b16 %v4422
        %v5063 = vunpack.c.l.b16 %v4423
        %v5064 = vunpack.c.l.b16 %v4424
        %v5065 = vunpack.c.l.b16 %v4425
        %v5066 = vunpack.c.l.b16 %v4426
        %v5067 = vunpack.c.l.b16 %v4427
        %v5068 = vunpack.c.l.b16 %v4428
        %v5069 = vunpack.c.l.b16 %v4429
        %v5070 = vunpack.c.l.b16 %v4430
        %v5071 = vunpack.c.l.b16 %v4431
        %v5072 = vunpack.c.l.b16 %v4432
        %v5073 = vunpack.c.l.b16 %v4433
        %v5074 = vunpack.c.l.b16 %v4434
        %v5075 = vunpack.c.l.b16 %v4435
        %v5076 = vunpack.c.l.b16 %v4436
        %v5077 = vunpack.c.l.b16 %v4437
        %v5078 = vunpack.c.l.b16 %v4438
        %v5079 = vunpack.c.l.b16 %v4439
        %v5080 = vunpack.c.l.b16 %v4440
        %v5081 = vunpack.c.l.b16 %v4441
        %v5082 = vunpack.c.l.b16 %v4442
        %v5083 = vunpack.c.l.b16 %v4443
        %v5084 = vunpack.c.l.b16 %v4444
        %v5085 = vunpack.c.l.b16 %v4445
        %v5086 = vunpack.c.l.b16 %v4446
        %v5087 = vunpack.c.l.b16 %v4447
        %v5088 = vunpack.c.l.b16 %v4448
        %v5089 = vunpack.c.l.b16 %v4449
        %v5090 = vunpack.c.l.b16 %v4450
        %v5091 = vunpack.c.l.b16 %v4451
        %v5092 = vunpack.c.l.b16 %v4452
        %v5093 = vunpack.c.l.b16 %v4453
        %v5094 = vunpack.c.l.b16 %v4454
        %v5095 = vunpack.c.l.b16 %v4455
        %v5096 = vunpack.c.l.b16 %v4456
        %v5097 = vunpack.c.l.b16 %v4457
        %v5098 = vunpack.c.l.b16 %v4458
        %v5099 = vunpack.c.l.b16 %v4459
        %v5100 = vunpack.c.l.b16 %v4460
        %v5101 = vunpack.c.l.b16 %v4461
        %v5102 = vunpack.c.l.b16 %v4462
        %v5103 = vunpack.c.l.b16 %v4463
        %v5104 = vunpack.c.l.b16 %v4464
        %v5105 = vunpack.c.l.b16 %v4465
        %v5106 = vunpack.c.l.b16 %v4466
        %v5107 = vunpack.c.l.b16 %v4467
        %v5108 = vunpack.c.l.b16 %v4468
        %v5109 = vunpack.c.l.b16 %v4469
        %v5110 = vunpack.c.l.b16 %v4470
        %v5111 = vunpack.c.l.b16 %v4471
        %v5112 = vunpack.c.l.b16 %v4472
        %v5113 = vunpack.c.l.b16 %v4473
        %v5114 = vunpack.c.l.b16 %v4474
        %v5115 = vunpack.c.l.b16 %v4475
        %v5116 = vunpack.c.l.b16 %v4476
        %v5117 = vunpack.c.l.b16 %v4477
        %v5118 = vunpack.c.l.b16 %v4478
        %v5119 = vunpack.c.l.b16 %v4479
        %v5120 = vunpack.c.l.b16 %v4480
        %v5121 = vunpack.c.l.b16 %v4481
        %v5122 = vunpack.c.l.b16 %v4482
        %v5123 = vunpack.c.l.b16 %v4483
        %v5124 = vunpack.c.l.b16 %v4484
        %v5125 = vunpack.c.l.b16 %v4485
        %v5126 = vunpack.c.l.b16 %v4486
        %v5127 = vunpack.c.l.b16 %v4487
        %v5128 = vunpack.c.l.b16 %v4488
        %v5129 = vunpack.c.l.b16 %v4489
        %v5130 = vunpack.c.l.b16 %v4490
        %v5131 = vunpack.c.l.b16 %v4491
        %v5132 = vunpack.c.l.b16 %v4492
        %v5133 = vunpack.c.l.b16 %v4493
        %v5134 = vunpack.c.l.b16 %v4494
        %v5135 = vunpack.c.l.b16 %v4495
        %v5136 = vunpack.c.l.b16 %v4496
        %v5137 = vunpack.c.l.b16 %v4497
        %v5138 = vunpack.c.l.b16 %v4498
        %v5139 = vunpack.c.l.b16 %v4499
        %v5140 = vunpack.c.l.b16 %v4500
        %v5141 = vunpack.c.l.b16 %v4501
        %v5142 = vunpack.c.l.b16 %v4502
        %v5143 = vunpack.c.l.b16 %v4503
        %v5144 = vunpack.c.l.b16 %v4504
        %v5145 = vunpack.c.l.b16 %v4505
        %v5146 = vunpack.c.l.b16 %v4506
        %v5147 = vunpack.c.l.b16 %v4507
        %v5148 = vunpack.c.l.b16 %v4508
        %v5149 = vunpack.c.l.b16 %v4509
        %v5150 = vunpack.c.l.b16 %v4510
        %v5151 = vunpack.c.l.b16 %v4511
        %v5152 = vunpack.c.l.b16 %v4512
        %v5153 = vunpack.c.l.b16 %v4513
        %v5154 = vunpack.c.l.b16 %v4514
        %v5155 = vunpack.c.l.b16 %v4515
        %v5156 = vunpack.c.l.b16 %v4516
        %v5157 = vunpack.c.l.b16 %v4517
        %v5158 = vunpack.c.l.b16 %v4518
        %v5159 = vunpack.c.l.b16 %v4519
        %v5160 = vunpack.c.l.b16 %v4520
        %v5161 = vunpack.c.l.b16 %v4521
        %v5162 = vunpack.c.l.b16 %v4522
        %v5163 = vunpack.c.l.b16 %v4523
        %v5164 = vunpack.c.l.b16 %v4524
        %v5165 = vunpack.c.l.b16 %v4525
        %v5166 = vunpack.c.l.b16 %v4526
        %v5167 = vunpack.c.l.b16 %v4527
        %v5168 = vunpack.c.l.b16 %v4528
        %v5169 = vunpack.c.l.b16 %v4529
        %v5170 = vunpack.c.l.b16 %v4530
        %v5171 = vunpack.c.l.b16 %v4531
        %v5172 = vunpack.c.l.b16 %v4532
        %v5173 = vunpack.c.l.b16 %v4533
        %v5174 = vunpack.c.l.b16 %v4534
        %v5175 = vunpack.c.l.b16 %v4535
        %v5176 = vunpack.c.l.b16 %v4536
        %v5177 = vunpack.c.l.b16 %v4537
        %v5178 = vunpack.c.l.b16 %v4538
        %v5179 = vunpack.c.l.b16 %v4539
        %v5180 = vunpack.c.l.b16 %v4540
        %v5181 = vunpack.c.l.b16 %v4541
        %v5182 = vunpack.c.l.b16 %v4542
        %v5183 = vunpack.c.l.b16 %v4543
        %v5184 = vunpack.c.l.b16 %v4544
        %v5185 = vunpack.c.l.b16 %v4545
        %v5186 = vunpack.c.l.b16 %v4546
        %v5187 = vunpack.c.l.b16 %v4547
        %v5188 = vunpack.c.l.b16 %v4548
        %v5189 = vunpack.c.l.b16 %v4549
        %v5190 = vunpack.c.l.b16 %v4550
        %v5191 = vunpack.c.l.b16 %v4551
        %v5192 = vunpack.c.l.b16 %v4552
        %v5193 = vunpack.c.l.b16 %v4553
        %v5194 = vunpack.c.l.b16 %v4554
        %v5195 = vunpack.c.l.b16 %v4555
        %v5196 = vunpack.c.l.b16 %v4556
        %v5197 = vunpack.c.l.b16 %v4557
        %v5198 = vunpack.c.l.b16 %v4558
        %v5199 = vunpack.c.l.b16 %v4559
        %v5200 = vunpack.c.l.b16 %v4560
        %v5201 = vunpack.c.l.b16 %v4561
        %v5202 = vunpack.c.l.b16 %v4562
        %v5203 = vunpack.c.l.b16 %v4563
        %v5204 = vunpack.c.l.b16 %v4564
        %v5205 = vunpack.c.l.b16 %v4565
        %v5206 = vunpack.c.l.b16 %v4566
        %v5207 = vunpack.c.l.b16 %v4567
        %v5208 = vunpack.c.l.b16 %v4568
        %v5209 = vunpack.c.l.b16 %v4569
        %v5210 = vunpack.c.l.b16 %v4570
        %v5211 = vunpack.c.l.b16 %v4571
        %v5212 = vunpack.c.l.b16 %v4572
        %v5213 = vunpack.c.l.b16 %v4573
        %v5214 = vunpack.c.l.b16 %v4574
        %v5215 = vunpack.c.l.b16 %v4575
        %v5216 = vunpack.c.l.b16 %v4576
        %v5217 = vunpack.c.l.b16 %v4577
        %v5218 = vunpack.c.l.b16 %v4578
        %v5219 = vunpack.c.l.b16 %v4579
        %v5220 = vunpack.c.l.b16 %v4580
        %v5221 = vunpack.c.l.b16 %v4581
        %v5222 = vunpack.c.l.b16 %v4582
        %v5223 = vunpack.c.l.b16 %v4583
        %v5224 = vunpack.c.l.b16 %v4584
        %v5225 = vunpack.c.l.b16 %v4585
        %v5226 = vunpack.c.l.b16 %v4586
        %v5227 = vunpack.c.l.b16 %v4587
        %v5228 = vunpack.c.l.b16 %v4588
        %v5229 = vunpack.c.l.b16 %v4589
        %v5230 = vunpack.c.l.b16 %v4590
        %v5231 = vunpack.c.l.b16 %v4591
        %v5232 = vunpack.c.l.b16 %v4592
        %v5233 = vunpack.c.l.b16 %v4593
        %v5234 = vunpack.c.l.b16 %v4594
        %v5235 = vunpack.c.l.b16 %v4595
        %v5236 = vunpack.c.l.b16 %v4596
        %v5237 = vunpack.c.l.b16 %v4597
        %v5238 = vunpack.c.l.b16 %v4598
        %v5239 = vunpack.c.l.b16 %v4599
        %v5240 = vunpack.c.l.b16 %v4600
        %v5241 = vunpack.c.l.b16 %v4601
        %v5242 = vunpack.c.l.b16 %v4602
        %v5243 = vunpack.c.l.b16 %v4603
        %v5244 = vunpack.c.l.b16 %v4604
        %v5245 = vunpack.c.l.b16 %v4605
        %v5246 = vunpack.c.l.b16 %v4606
        %v5247 = vunpack.c.l.b16 %v4607
        %v5248 = vunpack.c.l.b16 %v4608
        %v5249 = vunpack.c.l.b16 %v4609
        %v5250 = vunpack.c.l.b16 %v4610
        %v5251 = vunpack.c.l.b16 %v4611
        %v5252 = vunpack.c.l.b16 %v4612
        %v5253 = vunpack.c.l.b16 %v4613
        %v5254 = vunpack.c.l.b16 %v4614
        %v5255 = vunpack.c.l.b16 %v4615
        %v5256 = vunpack.c.l.b16 %v4616
        %v5257 = vunpack.c.l.b16 %v4617
        %v5258 = vunpack.c.l.b16 %v4618
        %v5259 = vunpack.c.l.b16 %v4619
        %v5260 = vunpack.c.l.b16 %v4620
        %v5261 = vunpack.c.l.b16 %v4621
        %v5262 = vunpack.c.l.b16 %v4622
        %v5263 = vunpack.c.l.b16 %v4623
        %v5264 = vunpack.c.l.b16 %v4624
        %v5265 = vunpack.c.l.b16 %v4625
        %v5266 = vunpack.c.l.b16 %v4626
        %v5267 = vunpack.c.l.b16 %v4627
        %v5268 = vunpack.c.l.b16 %v4628
        %v5269 = vunpack.c.l.b16 %v4629
        %v5270 = vunpack.c.l.b16 %v4630
        %v5271 = vunpack.c.l.b16 %v4631
        %v5272 = vunpack.c.l.b16 %v4632
        %v5273 = vunpack.c.l.b16 %v4633
        %v5274 = vunpack.c.l.b16 %v4634
        %v5275 = vunpack.c.l.b16 %v4635
        %v5276 = vunpack.c.l.b16 %v4636
        %v5277 = vunpack.c.l.b16 %v4637
        %v5278 = vunpack.c.l.b16 %v4638
        %v5279 = vunpack.c.l.b16 %v4639
        %v5280 = vunpack.c.l.b16 %v4640
        %v5281 = vunpack.c.l.b16 %v4641
        %v5282 = vunpack.c.l.b16 %v4642
        %v5283 = vunpack.c.l.b16 %v4643
        %v5284 = vunpack.c.l.b16 %v4644
        %v5285 = vpack.c.b16 %v4966, %v4965
        %v5286 = vpack.c.b16 %v4968, %v4967
        %v5287 = vpack.c.b16 %v4970, %v4969
        %v5288 = vpack.c.b16 %v4972, %v4971
        %v5289 = vpack.c.b16 %v4974, %v4973
        %v5290 = vpack.c.b16 %v4976, %v4975
        %v5291 = vpack.c.b16 %v4978, %v4977
        %v5292 = vpack.c.b16 %v4980, %v4979
        %v5293 = vpack.c.b16 %v4982, %v4981
        %v5294 = vpack.c.b16 %v4984, %v4983
        %v5295 = vpack.c.b16 %v4986, %v4985
        %v5296 = vpack.c.b16 %v4988, %v4987
        %v5297 = vpack.c.b16 %v4990, %v4989
        %v5298 = vpack.c.b16 %v4992, %v4991
        %v5299 = vpack.c.b16 %v4994, %v4993
        %v5300 = vpack.c.b16 %v4996, %v4995
        %v5301 = vpack.c.b16 %v4998, %v4997
        %v5302 = vpack.c.b16 %v5000, %v4999
        %v5303 = vpack.c.b16 %v5002, %v5001
        %v5304 = vpack.c.b16 %v5004, %v5003
        %v5305 = vpack.c.b16 %v5006, %v5005
        %v5306 = vpack.c.b16 %v5008, %v5007
        %v5307 = vpack.c.b16 %v5010, %v5009
        %v5308 = vpack.c.b16 %v5012, %v5011
        %v5309 = vpack.c.b16 %v5014, %v5013
        %v5310 = vpack.c.b16 %v5016, %v5015
        %v5311 = vpack.c.b16 %v5018, %v5017
        %v5312 = vpack.c.b16 %v5020, %v5019
        %v5313 = vpack.c.b16 %v5022, %v5021
        %v5314 = vpack.c.b16 %v5024, %v5023
        %v5315 = vpack.c.b16 %v5026, %v5025
        %v5316 = vpack.c.b16 %v5028, %v5027
        %v5317 = vpack.c.b16 %v5030, %v5029
        %v5318 = vpack.c.b16 %v5032, %v5031
        %v5319 = vpack.c.b16 %v5034, %v5033
        %v5320 = vpack.c.b16 %v5036, %v5035
        %v5321 = vpack.c.b16 %v5038, %v5037
        %v5322 = vpack.c.b16 %v5040, %v5039
        %v5323 = vpack.c.b16 %v5042, %v5041
        %v5324 = vpack.c.b16 %v5044, %v5043
        %v5325 = vpack.c.b16 %v5046, %v5045
        %v5326 = vpack.c.b16 %v5048, %v5047
        %v5327 = vpack.c.b16 %v5050, %v5049
        %v5328 = vpack.c.b16 %v5052, %v5051
        %v5329 = vpack.c.b16 %v5054, %v5053
        %v5330 = vpack.c.b16 %v5056, %v5055
        %v5331 = vpack.c.b16 %v5058, %v5057
        %v5332 = vpack.c.b16 %v5060, %v5059
        %v5333 = vpack.c.b16 %v5062, %v5061
        %v5334 = vpack.c.b16 %v5064, %v5063
        %v5335 = vpack.c.b16 %v5066, %v5065
        %v5336 = vpack.c.b16 %v5068, %v5067
        %v5337 = vpack.c.b16 %v5070, %v5069
        %v5338 = vpack.c.b16 %v5072, %v5071
        %v5339 = vpack.c.b16 %v5074, %v5073
        %v5340 = vpack.c.b16 %v5076, %v5075
        %v5341 = vpack.c.b16 %v5078, %v5077
        %v5342 = vpack.c.b16 %v5080, %v5079
        %v5343 = vpack.c.b16 %v5082, %v5081
        %v5344 = vpack.c.b16 %v5084, %v5083
        %v5345 = vpack.c.b16 %v5086, %v5085
        %v5346 = vpack.c.b16 %v5088, %v5087
        %v5347 = vpack.c.b16 %v5090, %v5089
        %v5348 = vpack.c.b16 %v5092, %v5091
        %v5349 = vpack.c.b16 %v5094, %v5093
        %v5350 = vpack.c.b16 %v5096, %v5095
        %v5351 = vpack.c.b16 %v5098, %v5097
        %v5352 = vpack.c.b16 %v5100, %v5099
        %v5353 = vpack.c.b16 %v5102, %v5101
        %v5354 = vpack.c.b16 %v5104, %v5103
        %v5355 = vpack.c.b16 %v5106, %v5105
        %v5356 = vpack.c.b16 %v5108, %v5107
        %v5357 = vpack.c.b16 %v5110, %v5109
        %v5358 = vpack.c.b16 %v5112, %v5111
        %v5359 = vpack.c.b16 %v5114, %v5113
        %v5360 = vpack.c.b16 %v5116, %v5115
        %v5361 = vpack.c.b16 %v5118, %v5117
        %v5362 = vpack.c.b16 %v5120, %v5119
        %v5363 = vpack.c.b16 %v5122, %v5121
        %v5364 = vpack.c.b16 %v5124, %v5123
        %v5365 = vpack.c.b16 %v5126, %v5125
        %v5366 = vpack.c.b16 %v5128, %v5127
        %v5367 = vpack.c.b16 %v5130, %v5129
        %v5368 = vpack.c.b16 %v5132, %v5131
        %v5369 = vpack.c.b16 %v5134, %v5133
        %v5370 = vpack.c.b16 %v5136, %v5135
        %v5371 = vpack.c.b16 %v5138, %v5137
        %v5372 = vpack.c.b16 %v5140, %v5139
        %v5373 = vpack.c.b16 %v5142, %v5141
        %v5374 = vpack.c.b16 %v5144, %v5143
        %v5375 = vpack.c.b16 %v5146, %v5145
        %v5376 = vpack.c.b16 %v5148, %v5147
        %v5377 = vpack.c.b16 %v5150, %v5149
        %v5378 = vpack.c.b16 %v5152, %v5151
        %v5379 = vpack.c.b16 %v5154, %v5153
        %v5380 = vpack.c.b16 %v5156, %v5155
        %v5381 = vpack.c.b16 %v5158, %v5157
        %v5382 = vpack.c.b16 %v5160, %v5159
        %v5383 = vpack.c.b16 %v5162, %v5161
        %v5384 = vpack.c.b16 %v5164, %v5163
        %v5385 = vpack.c.b16 %v5166, %v5165
        %v5386 = vpack.c.b16 %v5168, %v5167
        %v5387 = vpack.c.b16 %v5170, %v5169
        %v5388 = vpack.c.b16 %v5172, %v5171
        %v5389 = vpack.c.b16 %v5174, %v5173
        %v5390 = vpack.c.b16 %v5176, %v5175
        %v5391 = vpack.c.b16 %v5178, %v5177
        %v5392 = vpack.c.b16 %v5180, %v5179
        %v5393 = vpack.c.b16 %v5182, %v5181
        %v5394 = vpack.c.b16 %v5184, %v5183
        %v5395 = vpack.c.b16 %v5186, %v5185
        %v5396 = vpack.c.b16 %v5188, %v5187
        %v5397 = vpack.c.b16 %v5190, %v5189
        %v5398 = vpack.c.b16 %v5192, %v5191
        %v5399 = vpack.c.b16 %v5194, %v5193
        %v5400 = vpack.c.b16 %v5196, %v5195
        %v5401 = vpack.c.b16 %v5198, %v5197
        %v5402 = vpack.c.b16 %v5200, %v5199
        %v5403 = vpack.c.b16 %v5202, %v5201
        %v5404 = vpack.c.b16 %v5204, %v5203
        %v5405 = vpack.c.b16 %v5206, %v5205
        %v5406 = vpack.c.b16 %v5208, %v5207
        %v5407 = vpack.c.b16 %v5210, %v5209
        %v5408 = vpack.c.b16 %v5212, %v5211
        %v5409 = vpack.c.b16 %v5214, %v5213
        %v5410 = vpack.c.b16 %v5216, %v5215
        %v5411 = vpack.c.b16 %v5218, %v5217
        %v5412 = vpack.c.b16 %v5220, %v5219
        %v5413 = vpack.c.b16 %v5222, %v5221
        %v5414 = vpack.c.b16 %v5224, %v5223
        %v5415 = vpack.c.b16 %v5226, %v5225
        %v5416 = vpack.c.b16 %v5228, %v5227
        %v5417 = vpack.c.b16 %v5230, %v5229
        %v5418 = vpack.c.b16 %v5232, %v5231
        %v5419 = vpack.c.b16 %v5234, %v5233
        %v5420 = vpack.c.b16 %v5236, %v5235
        %v5421 = vpack.c.b16 %v5238, %v5237
        %v5422 = vpack.c.b16 %v5240, %v5239
        %v5423 = vpack.c.b16 %v5242, %v5241
        %v5424 = vpack.c.b16 %v5244, %v5243
        %v5425 = vpack.c.b16 %v5246, %v5245
        %v5426 = vpack.c.b16 %v5248, %v5247
        %v5427 = vpack.c.b16 %v5250, %v5249
        %v5428 = vpack.c.b16 %v5252, %v5251
        %v5429 = vpack.c.b16 %v5254, %v5253
        %v5430 = vpack.c.b16 %v5256, %v5255
        %v5431 = vpack.c.b16 %v5258, %v5257
        %v5432 = vpack.c.b16 %v5260, %v5259
        %v5433 = vpack.c.b16 %v5262, %v5261
        %v5434 = vpack.c.b16 %v5264, %v5263
        %v5435 = vpack.c.b16 %v5266, %v5265
        %v5436 = vpack.c.b16 %v5268, %v5267
        %v5437 = vpack.c.b16 %v5270, %v5269
        %v5438 = vpack.c.b16 %v5272, %v5271
        %v5439 = vpack.c.b16 %v5274, %v5273
        %v5440 = vpack.c.b16 %v5276, %v5275
        %v5441 = vpack.c.b16 %v5278, %v5277
        %v5442 = vpack.c.b16 %v5280, %v5279
        %v5443 = vpack.c.b16 %v5282, %v5281
        %v5444 = vpack.c.b16 %v5284, %v5283
        %5605 = vmatprep.subr.bf16.mxu0 0
        %5606 = vmatpush1.bf16.msra.mxu0 %v5285
        %5607 = vmatprep.subr.bf16.mxu0 0
        %5608 = vmatpush1.bf16.msra.mxu0 %v5286
        %5609 = vmatprep.subr.bf16.mxu0 0
        %5610 = vmatpush1.bf16.msra.mxu0 %v5287
        %5611 = vmatprep.subr.bf16.mxu0 0
        %5612 = vmatpush1.bf16.msra.mxu0 %v5288
        %5613 = vmatprep.subr.bf16.mxu0 0
        %5614 = vmatpush1.bf16.msra.mxu0 %v5289
        %5615 = vmatprep.subr.bf16.mxu0 0
        %5616 = vmatpush1.bf16.msra.mxu0 %v5290
        %5617 = vmatprep.subr.bf16.mxu0 0
        %5618 = vmatpush1.bf16.msra.mxu0 %v5291
        %5619 = vmatprep.subr.bf16.mxu0 0
        %5620 = vmatpush1.bf16.msra.mxu0 %v5292
        %5621 = vmatprep.subr.bf16.mxu0 0
        %5622 = vmatpush1.bf16.msra.mxu0 %v5293
        %5623 = vmatprep.subr.bf16.mxu0 0
        %5624 = vmatpush1.bf16.msra.mxu0 %v5294
        %5625 = vmatprep.subr.bf16.mxu0 0
        %5626 = vmatpush1.bf16.msra.mxu0 %v5295
        %5627 = vmatprep.subr.bf16.mxu0 0
        %5628 = vmatpush1.bf16.msra.mxu0 %v5296
        %5629 = vmatprep.subr.bf16.mxu0 0
        %5630 = vmatpush1.bf16.msra.mxu0 %v5297
        %5631 = vmatprep.subr.bf16.mxu0 0
        %5632 = vmatpush1.bf16.msra.mxu0 %v5298
        %5633 = vmatprep.subr.bf16.mxu0 0
        %5634 = vmatpush1.bf16.msra.mxu0 %v5299
        %5635 = vmatprep.subr.bf16.mxu0 0
        %5636 = vmatpush1.bf16.msra.mxu0 %v5300
        %5637 = vmatprep.mubr.bf16.mxu0 %v4306
        %5638 = vmatmul.mubr.bf16.gmra.mrb[0].mxu0 %v4305
        %v5639 = vpop.f32.mrb[0].mxu0
        %v5640 = vadd.f32 0.0, %v5639
        %v5641 = vpop.f32.mrb[0].mxu0
        %v5642 = vpop.f32.mrb[0].mxu0
        %v5643 = vpop.f32.mrb[0].mxu0
        %5644 = vdwg.mxu0
        %5645 = vmatprep.subr.bf16.mxu0 0
        %5646 = vmatpush1.bf16.msra.mxu0 %v5301
        %5647 = vmatprep.subr.bf16.mxu0 0
        %5648 = vmatpush1.bf16.msra.mxu0 %v5302
        %5649 = vmatprep.subr.bf16.mxu0 0
        %5650 = vmatpush1.bf16.msra.mxu0 %v5303
        %5651 = vmatprep.subr.bf16.mxu0 0
        %5652 = vmatpush1.bf16.msra.mxu0 %v5304
        %5653 = vmatprep.subr.bf16.mxu0 0
        %5654 = vmatpush1.bf16.msra.mxu0 %v5305
        %5655 = vmatprep.subr.bf16.mxu0 0
        %5656 = vmatpush1.bf16.msra.mxu0 %v5306
        %5657 = vmatprep.subr.bf16.mxu0 0
        %5658 = vmatpush1.bf16.msra.mxu0 %v5307
        %5659 = vmatprep.subr.bf16.mxu0 0
        %5660 = vmatpush1.bf16.msra.mxu0 %v5308
        %5661 = vmatprep.subr.bf16.mxu0 0
        %5662 = vmatpush1.bf16.msra.mxu0 %v5309
        %5663 = vmatprep.subr.bf16.mxu0 0
        %5664 = vmatpush1.bf16.msra.mxu0 %v5310
        %5665 = vmatprep.subr.bf16.mxu0 0
        %5666 = vmatpush1.bf16.msra.mxu0 %v5311
        %5667 = vmatprep.subr.bf16.mxu0 0
        %5668 = vmatpush1.bf16.msra.mxu0 %v5312
        %5669 = vmatprep.subr.bf16.mxu0 0
        %5670 = vmatpush1.bf16.msra.mxu0 %v5313
        %5671 = vmatprep.subr.bf16.mxu0 0
        %5672 = vmatpush1.bf16.msra.mxu0 %v5314
        %5673 = vmatprep.subr.bf16.mxu0 0
        %5674 = vmatpush1.bf16.msra.mxu0 %v5315
        %5675 = vmatprep.subr.bf16.mxu0 0
        %5676 = vmatpush1.bf16.msra.mxu0 %v5316
        %5677 = vmatprep.mubr.bf16.mxu0 %v4308
        %5678 = vmatmul.mubr.bf16.gmra.mrb[0].mxu0 %v4307
        %v5679 = vpop.f32.mrb[0].mxu0
        %v5680 = vadd.f32 %v5640, %v5679
        %v5681 = vpop.f32.mrb[0].mxu0
        %v5682 = vpop.f32.mrb[0].mxu0
        %v5683 = vpop.f32.mrb[0].mxu0
        %5684 = vdwg.mxu0
        %5685 = vmatprep.subr.bf16.mxu0 0
        %5686 = vmatpush1.bf16.msra.mxu0 %v5317
        %5687 = vmatprep.subr.bf16.mxu0 0
        %5688 = vmatpush1.bf16.msra.mxu0 %v5318
        %5689 = vmatprep.subr.bf16.mxu0 0
        %5690 = vmatpush1.bf16.msra.mxu0 %v5319
        %5691 = vmatprep.subr.bf16.mxu0 0
        %5692 = vmatpush1.bf16.msra.mxu0 %v5320
        %5693 = vmatprep.subr.bf16.mxu0 0
        %5694 = vmatpush1.bf16.msra.mxu0 %v5321
        %5695 = vmatprep.subr.bf16.mxu0 0
        %5696 = vmatpush1.bf16.msra.mxu0 %v5322
        %5697 = vmatprep.subr.bf16.mxu0 0
        %5698 = vmatpush1.bf16.msra.mxu0 %v5323
        %5699 = vmatprep.subr.bf16.mxu0 0
        %5700 = vmatpush1.bf16.msra.mxu0 %v5324
        %5701 = vmatprep.subr.bf16.mxu0 0
        %5702 = vmatpush1.bf16.msra.mxu0 %v5325
        %5703 = vmatprep.subr.bf16.mxu0 0
        %5704 = vmatpush1.bf16.msra.mxu0 %v5326
        %5705 = vmatprep.subr.bf16.mxu0 0
        %5706 = vmatpush1.bf16.msra.mxu0 %v5327
        %5707 = vmatprep.subr.bf16.mxu0 0
        %5708 = vmatpush1.bf16.msra.mxu0 %v5328
        %5709 = vmatprep.subr.bf16.mxu0 0
        %5710 = vmatpush1.bf16.msra.mxu0 %v5329
        %5711 = vmatprep.subr.bf16.mxu0 0
        %5712 = vmatpush1.bf16.msra.mxu0 %v5330
        %5713 = vmatprep.subr.bf16.mxu0 0
        %5714 = vmatpush1.bf16.msra.mxu0 %v5331
        %5715 = vmatprep.subr.bf16.mxu0 0
        %5716 = vmatpush1.bf16.msra.mxu0 %v5332
        %5717 = vmatprep.mubr.bf16.mxu0 %v4310
        %5718 = vmatmul.mubr.bf16.gmra.mrb[0].mxu0 %v4309
        %v5719 = vpop.f32.mrb[0].mxu0
        %v5720 = vadd.f32 %v5680, %v5719
        %v5721 = vpop.f32.mrb[0].mxu0
        %v5722 = vpop.f32.mrb[0].mxu0
        %v5723 = vpop.f32.mrb[0].mxu0
        %5724 = vdwg.mxu0
        %5725 = vmatprep.subr.bf16.mxu0 0
        %5726 = vmatpush1.bf16.msra.mxu0 %v5333
        %5727 = vmatprep.subr.bf16.mxu0 0
        %5728 = vmatpush1.bf16.msra.mxu0 %v5334
        %5729 = vmatprep.subr.bf16.mxu0 0
        %5730 = vmatpush1.bf16.msra.mxu0 %v5335
        %5731 = vmatprep.subr.bf16.mxu0 0
        %5732 = vmatpush1.bf16.msra.mxu0 %v5336
        %5733 = vmatprep.subr.bf16.mxu0 0
        %5734 = vmatpush1.bf16.msra.mxu0 %v5337
        %5735 = vmatprep.subr.bf16.mxu0 0
        %5736 = vmatpush1.bf16.msra.mxu0 %v5338
        %5737 = vmatprep.subr.bf16.mxu0 0
        %5738 = vmatpush1.bf16.msra.mxu0 %v5339
        %5739 = vmatprep.subr.bf16.mxu0 0
        %5740 = vmatpush1.bf16.msra.mxu0 %v5340
        %5741 = vmatprep.subr.bf16.mxu0 0
        %5742 = vmatpush1.bf16.msra.mxu0 %v5341
        %5743 = vmatprep.subr.bf16.mxu0 0
        %5744 = vmatpush1.bf16.msra.mxu0 %v5342
        %5745 = vmatprep.subr.bf16.mxu0 0
        %5746 = vmatpush1.bf16.msra.mxu0 %v5343
        %5747 = vmatprep.subr.bf16.mxu0 0
        %5748 = vmatpush1.bf16.msra.mxu0 %v5344
        %5749 = vmatprep.subr.bf16.mxu0 0
        %5750 = vmatpush1.bf16.msra.mxu0 %v5345
        %5751 = vmatprep.subr.bf16.mxu0 0
        %5752 = vmatpush1.bf16.msra.mxu0 %v5346
        %5753 = vmatprep.subr.bf16.mxu0 0
        %5754 = vmatpush1.bf16.msra.mxu0 %v5347
        %5755 = vmatprep.subr.bf16.mxu0 0
        %5756 = vmatpush1.bf16.msra.mxu0 %v5348
        %5757 = vmatprep.mubr.bf16.mxu0 %v4312
        %5758 = vmatmul.mubr.bf16.gmra.mrb[0].mxu0 %v4311
        %v5759 = vpop.f32.mrb[0].mxu0
        %v5760 = vadd.f32 %v5720, %v5759
        %v5761 = vpop.f32.mrb[0].mxu0
        %v5762 = vpop.f32.mrb[0].mxu0
        %v5763 = vpop.f32.mrb[0].mxu0
        %5764 = vdwg.mxu0
        %5765 = vmatprep.subr.bf16.mxu0 0
        %5766 = vmatpush1.bf16.msra.mxu0 %v5349
        %5767 = vmatprep.subr.bf16.mxu0 0
        %5768 = vmatpush1.bf16.msra.mxu0 %v5350
        %5769 = vmatprep.subr.bf16.mxu0 0
        %5770 = vmatpush1.bf16.msra.mxu0 %v5351
        %5771 = vmatprep.subr.bf16.mxu0 0
        %5772 = vmatpush1.bf16.msra.mxu0 %v5352
        %5773 = vmatprep.subr.bf16.mxu0 0
        %5774 = vmatpush1.bf16.msra.mxu0 %v5353
        %5775 = vmatprep.subr.bf16.mxu0 0
        %5776 = vmatpush1.bf16.msra.mxu0 %v5354
        %5777 = vmatprep.subr.bf16.mxu0 0
        %5778 = vmatpush1.bf16.msra.mxu0 %v5355
        %5779 = vmatprep.subr.bf16.mxu0 0
        %5780 = vmatpush1.bf16.msra.mxu0 %v5356
        %5781 = vmatprep.subr.bf16.mxu0 0
        %5782 = vmatpush1.bf16.msra.mxu0 %v5357
        %5783 = vmatprep.subr.bf16.mxu0 0
        %5784 = vmatpush1.bf16.msra.mxu0 %v5358
        %5785 = vmatprep.subr.bf16.mxu0 0
        %5786 = vmatpush1.bf16.msra.mxu0 %v5359
        %5787 = vmatprep.subr.bf16.mxu0 0
        %5788 = vmatpush1.bf16.msra.mxu0 %v5360
        %5789 = vmatprep.subr.bf16.mxu0 0
        %5790 = vmatpush1.bf16.msra.mxu0 %v5361
        %5791 = vmatprep.subr.bf16.mxu0 0
        %5792 = vmatpush1.bf16.msra.mxu0 %v5362
        %5793 = vmatprep.subr.bf16.mxu0 0
        %5794 = vmatpush1.bf16.msra.mxu0 %v5363
        %5795 = vmatprep.subr.bf16.mxu0 0
        %5796 = vmatpush1.bf16.msra.mxu0 %v5364
        %5797 = vmatprep.mubr.bf16.mxu0 %v4314
        %5798 = vmatmul.mubr.bf16.gmra.mrb[0].mxu0 %v4313
        %v5799 = vpop.f32.mrb[0].mxu0
        %v5800 = vadd.f32 %v5760, %v5799
        %v5801 = vpop.f32.mrb[0].mxu0
        %v5802 = vpop.f32.mrb[0].mxu0
        %v5803 = vpop.f32.mrb[0].mxu0
        %5804 = vdwg.mxu0
        %5805 = vmatprep.subr.bf16.mxu0 0
        %5806 = vmatpush1.bf16.msra.mxu0 %v5365
        %5807 = vmatprep.subr.bf16.mxu0 0
        %5808 = vmatpush1.bf16.msra.mxu0 %v5366
        %5809 = vmatprep.subr.bf16.mxu0 0
        %5810 = vmatpush1.bf16.msra.mxu0 %v5367
        %5811 = vmatprep.subr.bf16.mxu0 0
        %5812 = vmatpush1.bf16.msra.mxu0 %v5368
        %5813 = vmatprep.subr.bf16.mxu0 0
        %5814 = vmatpush1.bf16.msra.mxu0 %v5369
        %5815 = vmatprep.subr.bf16.mxu0 0
        %5816 = vmatpush1.bf16.msra.mxu0 %v5370
        %5817 = vmatprep.subr.bf16.mxu0 0
        %5818 = vmatpush1.bf16.msra.mxu0 %v5371
        %5819 = vmatprep.subr.bf16.mxu0 0
        %5820 = vmatpush1.bf16.msra.mxu0 %v5372
        %5821 = vmatprep.subr.bf16.mxu0 0
        %5822 = vmatpush1.bf16.msra.mxu0 %v5373
        %5823 = vmatprep.subr.bf16.mxu0 0
        %5824 = vmatpush1.bf16.msra.mxu0 %v5374
        %5825 = vmatprep.subr.bf16.mxu0 0
        %5826 = vmatpush1.bf16.msra.mxu0 %v5375
        %5827 = vmatprep.subr.bf16.mxu0 0
        %5828 = vmatpush1.bf16.msra.mxu0 %v5376
        %5829 = vmatprep.subr.bf16.mxu0 0
        %5830 = vmatpush1.bf16.msra.mxu0 %v5377
        %5831 = vmatprep.subr.bf16.mxu0 0
        %5832 = vmatpush1.bf16.msra.mxu0 %v5378
        %5833 = vmatprep.subr.bf16.mxu0 0
        %5834 = vmatpush1.bf16.msra.mxu0 %v5379
        %5835 = vmatprep.subr.bf16.mxu0 0
        %5836 = vmatpush1.bf16.msra.mxu0 %v5380
        %5837 = vmatprep.mubr.bf16.mxu0 %v4316
        %5838 = vmatmul.mubr.bf16.gmra.mrb[0].mxu0 %v4315
        %v5839 = vpop.f32.mrb[0].mxu0
        %v5840 = vadd.f32 %v5800, %v5839
        %v5841 = vpop.f32.mrb[0].mxu0
        %v5842 = vpop.f32.mrb[0].mxu0
        %v5843 = vpop.f32.mrb[0].mxu0
        %5844 = vdwg.mxu0
        %5845 = vmatprep.subr.bf16.mxu0 0
        %5846 = vmatpush1.bf16.msra.mxu0 %v5381
        %5847 = vmatprep.subr.bf16.mxu0 0
        %5848 = vmatpush1.bf16.msra.mxu0 %v5382
        %5849 = vmatprep.subr.bf16.mxu0 0
        %5850 = vmatpush1.bf16.msra.mxu0 %v5383
        %5851 = vmatprep.subr.bf16.mxu0 0
        %5852 = vmatpush1.bf16.msra.mxu0 %v5384
        %5853 = vmatprep.subr.bf16.mxu0 0
        %5854 = vmatpush1.bf16.msra.mxu0 %v5385
        %5855 = vmatprep.subr.bf16.mxu0 0
        %5856 = vmatpush1.bf16.msra.mxu0 %v5386
        %5857 = vmatprep.subr.bf16.mxu0 0
        %5858 = vmatpush1.bf16.msra.mxu0 %v5387
        %5859 = vmatprep.subr.bf16.mxu0 0
        %5860 = vmatpush1.bf16.msra.mxu0 %v5388
        %5861 = vmatprep.subr.bf16.mxu0 0
        %5862 = vmatpush1.bf16.msra.mxu0 %v5389
        %5863 = vmatprep.subr.bf16.mxu0 0
        %5864 = vmatpush1.bf16.msra.mxu0 %v5390
        %5865 = vmatprep.subr.bf16.mxu0 0
        %5866 = vmatpush1.bf16.msra.mxu0 %v5391
        %5867 = vmatprep.subr.bf16.mxu0 0
        %5868 = vmatpush1.bf16.msra.mxu0 %v5392
        %5869 = vmatprep.subr.bf16.mxu0 0
        %5870 = vmatpush1.bf16.msra.mxu0 %v5393
        %5871 = vmatprep.subr.bf16.mxu0 0
        %5872 = vmatpush1.bf16.msra.mxu0 %v5394
        %5873 = vmatprep.subr.bf16.mxu0 0
        %5874 = vmatpush1.bf16.msra.mxu0 %v5395
        %5875 = vmatprep.subr.bf16.mxu0 0
        %5876 = vmatpush1.bf16.msra.mxu0 %v5396
        %5877 = vmatprep.mubr.bf16.mxu0 %v4318
        %5878 = vmatmul.mubr.bf16.gmra.mrb[0].mxu0 %v4317
        %v5879 = vpop.f32.mrb[0].mxu0
        %v5880 = vadd.f32 %v5840, %v5879
        %v5881 = vpop.f32.mrb[0].mxu0
        %v5882 = vpop.f32.mrb[0].mxu0
        %v5883 = vpop.f32.mrb[0].mxu0
        %5884 = vdwg.mxu0
        %5885 = vmatprep.subr.bf16.mxu0 0
        %5886 = vmatpush1.bf16.msra.mxu0 %v5397
        %5887 = vmatprep.subr.bf16.mxu0 0
        %5888 = vmatpush1.bf16.msra.mxu0 %v5398
        %5889 = vmatprep.subr.bf16.mxu0 0
        %5890 = vmatpush1.bf16.msra.mxu0 %v5399
        %5891 = vmatprep.subr.bf16.mxu0 0
        %5892 = vmatpush1.bf16.msra.mxu0 %v5400
        %5893 = vmatprep.subr.bf16.mxu0 0
        %5894 = vmatpush1.bf16.msra.mxu0 %v5401
        %5895 = vmatprep.subr.bf16.mxu0 0
        %5896 = vmatpush1.bf16.msra.mxu0 %v5402
        %5897 = vmatprep.subr.bf16.mxu0 0
        %5898 = vmatpush1.bf16.msra.mxu0 %v5403
        %5899 = vmatprep.subr.bf16.mxu0 0
        %5900 = vmatpush1.bf16.msra.mxu0 %v5404
        %5901 = vmatprep.subr.bf16.mxu0 0
        %5902 = vmatpush1.bf16.msra.mxu0 %v5405
        %5903 = vmatprep.subr.bf16.mxu0 0
        %5904 = vmatpush1.bf16.msra.mxu0 %v5406
        %5905 = vmatprep.subr.bf16.mxu0 0
        %5906 = vmatpush1.bf16.msra.mxu0 %v5407
        %5907 = vmatprep.subr.bf16.mxu0 0
        %5908 = vmatpush1.bf16.msra.mxu0 %v5408
        %5909 = vmatprep.subr.bf16.mxu0 0
        %5910 = vmatpush1.bf16.msra.mxu0 %v5409
        %5911 = vmatprep.subr.bf16.mxu0 0
        %5912 = vmatpush1.bf16.msra.mxu0 %v5410
        %5913 = vmatprep.subr.bf16.mxu0 0
        %5914 = vmatpush1.bf16.msra.mxu0 %v5411
        %5915 = vmatprep.subr.bf16.mxu0 0
        %5916 = vmatpush1.bf16.msra.mxu0 %v5412
        %5917 = vmatprep.mubr.bf16.mxu0 %v4320
        %5918 = vmatmul.mubr.bf16.gmra.mrb[0].mxu0 %v4319
        %v5919 = vpop.f32.mrb[0].mxu0
        %v5920 = vadd.f32 %v5880, %v5919
        %v5921 = vpop.f32.mrb[0].mxu0
        %v5922 = vpop.f32.mrb[0].mxu0
        %v5923 = vpop.f32.mrb[0].mxu0
        %5924 = vdwg.mxu0
        %5925 = vmatprep.subr.bf16.mxu0 0
        %5926 = vmatpush1.bf16.msra.mxu0 %v5413
        %5927 = vmatprep.subr.bf16.mxu0 0
        %5928 = vmatpush1.bf16.msra.mxu0 %v5414
        %5929 = vmatprep.subr.bf16.mxu0 0
        %5930 = vmatpush1.bf16.msra.mxu0 %v5415
        %5931 = vmatprep.subr.bf16.mxu0 0
        %5932 = vmatpush1.bf16.msra.mxu0 %v5416
        %5933 = vmatprep.subr.bf16.mxu0 0
        %5934 = vmatpush1.bf16.msra.mxu0 %v5417
        %5935 = vmatprep.subr.bf16.mxu0 0
        %5936 = vmatpush1.bf16.msra.mxu0 %v5418
        %5937 = vmatprep.subr.bf16.mxu0 0
        %5938 = vmatpush1.bf16.msra.mxu0 %v5419
        %5939 = vmatprep.subr.bf16.mxu0 0
        %5940 = vmatpush1.bf16.msra.mxu0 %v5420
        %5941 = vmatprep.subr.bf16.mxu0 0
        %5942 = vmatpush1.bf16.msra.mxu0 %v5421
        %5943 = vmatprep.subr.bf16.mxu0 0
        %5944 = vmatpush1.bf16.msra.mxu0 %v5422
        %5945 = vmatprep.subr.bf16.mxu0 0
        %5946 = vmatpush1.bf16.msra.mxu0 %v5423
        %5947 = vmatprep.subr.bf16.mxu0 0
        %5948 = vmatpush1.bf16.msra.mxu0 %v5424
        %5949 = vmatprep.subr.bf16.mxu0 0
        %5950 = vmatpush1.bf16.msra.mxu0 %v5425
        %5951 = vmatprep.subr.bf16.mxu0 0
        %5952 = vmatpush1.bf16.msra.mxu0 %v5426
        %5953 = vmatprep.subr.bf16.mxu0 0
        %5954 = vmatpush1.bf16.msra.mxu0 %v5427
        %5955 = vmatprep.subr.bf16.mxu0 0
        %5956 = vmatpush1.bf16.msra.mxu0 %v5428
        %5957 = vmatprep.mubr.bf16.mxu0 %v4322
        %5958 = vmatmul.mubr.bf16.gmra.mrb[0].mxu0 %v4321
        %v5959 = vpop.f32.mrb[0].mxu0
        %v5960 = vadd.f32 %v5920, %v5959
        %v5961 = vpop.f32.mrb[0].mxu0
        %v5962 = vpop.f32.mrb[0].mxu0
        %v5963 = vpop.f32.mrb[0].mxu0
        %5964 = vdwg.mxu0
        %5965 = vmatprep.subr.bf16.mxu0 0
        %5966 = vmatpush1.bf16.msra.mxu0 %v5429
        %5967 = vmatprep.subr.bf16.mxu0 0
        %5968 = vmatpush1.bf16.msra.mxu0 %v5430
        %5969 = vmatprep.subr.bf16.mxu0 0
        %5970 = vmatpush1.bf16.msra.mxu0 %v5431
        %5971 = vmatprep.subr.bf16.mxu0 0
        %5972 = vmatpush1.bf16.msra.mxu0 %v5432
        %5973 = vmatprep.subr.bf16.mxu0 0
        %5974 = vmatpush1.bf16.msra.mxu0 %v5433
        %5975 = vmatprep.subr.bf16.mxu0 0
        %5976 = vmatpush1.bf16.msra.mxu0 %v5434
        %5977 = vmatprep.subr.bf16.mxu0 0
        %5978 = vmatpush1.bf16.msra.mxu0 %v5435
        %5979 = vmatprep.subr.bf16.mxu0 0
        %5980 = vmatpush1.bf16.msra.mxu0 %v5436
        %5981 = vmatprep.subr.bf16.mxu0 0
        %5982 = vmatpush1.bf16.msra.mxu0 %v5437
        %5983 = vmatprep.subr.bf16.mxu0 0
        %5984 = vmatpush1.bf16.msra.mxu0 %v5438
        %5985 = vmatprep.subr.bf16.mxu0 0
        %5986 = vmatpush1.bf16.msra.mxu0 %v5439
        %5987 = vmatprep.subr.bf16.mxu0 0
        %5988 = vmatpush1.bf16.msra.mxu0 %v5440
        %5989 = vmatprep.subr.bf16.mxu0 0
        %5990 = vmatpush1.bf16.msra.mxu0 %v5441
        %5991 = vmatprep.subr.bf16.mxu0 0
        %5992 = vmatpush1.bf16.msra.mxu0 %v5442
        %5993 = vmatprep.subr.bf16.mxu0 0
        %5994 = vmatpush1.bf16.msra.mxu0 %v5443
        %5995 = vmatprep.subr.bf16.mxu0 0
        %5996 = vmatpush1.bf16.msra.mxu0 %v5444
        %5997 = vmatprep.mubr.bf16.mxu0 %v4324
        %5998 = vmatmul.mubr.bf16.gmra.mrb[0].mxu0 %v4323
        %v5999 = vpop.f32.mrb[0].mxu0
        %v6000 = vadd.f32 %v5960, %v5999
        %v6001 = vpop.f32.mrb[0].mxu0
        %v6002 = vpop.f32.mrb[0].mxu0
        %v6003 = vpop.f32.mrb[0].mxu0
        %6004 = vdwg.mxu0
        %v6005 = vadd.f32 %v4304, %v6000
        %6006 = vst [vmem:[#allocation11] sm:$0xff] %v6005
        // Predicated region
        $region69: #{toy_model_forward.1} parent=43 // pred_check
          %p6007 = pneg %p219
        $region70: #{toy_model_forward.1} parent=43 // pred_check_branch
          %6009 = sbr.rel (%p6007) target = $region72
        $region71: #{toy_model_forward.1} parent=43 // pred_region
          %s6011 = ssub.s32 128, 128
          %6012 = vsyncadd [#allocation4], %s6011
          %s6013 = smul.addr %s31, 128
          %s6014 = scalar_lea.hbm %s6, %s6013
          %s6016 = sshll.u32 [#allocation11], 4
          %s6017 = int_to_ptr.vmem [resolvable:$true] %s6016
          %6019 = dma.vmem_to_hbm [thread:$0]  %s6017, 128, %s6014, [#allocation4]
        $region72: #{toy_model_forward.1} parent=43 // pred_fallthru
          _
        // Predicated region
        $region73: #{toy_model_forward.1} parent=43 // pred_check
          %p6020 = pneg %p219
        $region74: #{toy_model_forward.1} parent=43 // pred_check_branch
          %6022 = sbr.rel (%p6020) target = $region76
        $region75: #{toy_model_forward.1} parent=43 // pred_region
          %6023 = dma.done [#allocation4], 128
        $region76: #{toy_model_forward.1} parent=43 // pred_fallthru
          _
      $region44: #{toy_model_forward.1} parent=5 // pred_fallthru
        _
      %p6024 = scmp.le.s32.totalorder 2, %s22
      // Predicated region
      $region77: #{toy_model_forward.1} parent=5 // pred_check
        %p6025 = pneg %p6024
      $region78: #{toy_model_forward.1} parent=5 // pred_check_branch
        %6027 = sbr.rel (%p6025) target = $region80
      $region79: #{toy_model_forward.1} parent=5 // pred_region
        %s6028 = ssub.s32 %s22, 2
      $region80: #{toy_model_forward.1} parent=5 // pred_fallthru
        _
    $region6: #{toy_model_forward.1} parent=1 // loop_footer
      %s26 = sadd.s32 1, %s22
    $region7: #{toy_model_forward.1} parent=1 // loop_footer_branch
      %21 = sbr.rel target = $region3
    $region8: #{toy_model_forward.1} parent=1 // loop_exit
      _
    %6029 = vsyncpa [#allocation3], 1
    %s6030 = scalar_lea.sflag [#allocation3], 1
    %6031 = vsyncpa %s6030, 1
    %6032 = vsyncpa [#allocation6], 1
    %s6033 = scalar_lea.sflag [#allocation6], 1
    %6034 = vsyncpa %s6033, 1
    %6035 = vsyncpa [#allocation9], 1
    %s6036 = scalar_lea.sflag [#allocation9], 1
    %6037 = vsyncpa %s6036, 1
    %6038 = vsyncpa [#allocation4], 1
    %s6039 = scalar_lea.sflag [#allocation4], 1
    %6040 = vsyncpa %s6039, 1

</llo_original>
